<compile_context>
chip_gen: v6e
topology: v6e:2x2x1
jax: 0.10.0
libtpu: 0.0.40
codegen_flags: <defaults>
</compile_context>

<pallas_src>
import math

import jax
import jax.numpy as jnp
from jax.experimental import pallas as pl
from jax.experimental.pallas import tpu as pltpu

BN_EPS = 1e-5  # PyTorch BatchNorm2d default


# ---------------------------------------------------------------------------
# BN folding + structured ("slab") weight construction (trace-time, tiny)
# ---------------------------------------------------------------------------
def fold_bn(gamma, beta, mean, var):
    scale = gamma / jnp.sqrt(var + BN_EPS)
    shift = beta - mean * scale
    return scale, shift


def _build_structured_weights(params, width, scale_cfg, nums, w_sp):
    """Fold BN into weights and build lane-dense slab weight matrices.

    Slab layout = (H, W*C) 2-D view of an (H, W, C) image (lane dim = W*C).
      * 1x1 conv  -> matmul with kron(I_W, w)        (block-diagonal)
      * 3x3 conv  -> 3 row-shifted matmuls with banded matrices (one per dh);
                     the W-direction zero padding is encoded in the bands.
    """
    f32 = jnp.float32
    eye_w = jnp.eye(w_sp, dtype=f32)

    # conv1 (1x1) + bn1, split by output channel group
    s1, b1 = fold_bn(*params["bn1"])
    w1s = params["w1"] * s1[None, :]                                 # (cin, cmid)
    w1bd = jnp.stack([jnp.kron(eye_w, w1s[:, g * width:(g + 1) * width])
                      for g in range(scale_cfg)])                    # (scale, W*cin, W*width)
    b1slab = jnp.stack([jnp.tile(b1[g * width:(g + 1) * width], w_sp)[None, :]
                        for g in range(scale_cfg)])                  # (scale, 1, W*width)

    # 3x3 convs + bns, as banded matrices per dh
    wrow_l, bc_l = [], []
    for i in range(nums):
        si, bi = fold_bn(*params["bns"][i])
        ki = params["convs"][i] * si[None, None, None, :]            # (3,3,width,width) HWIO
        rows = []
        for dh in range(3):
            m = sum(jnp.kron(jnp.eye(w_sp, k=1 - dw, dtype=f32), ki[dh, dw])
                    for dw in range(3))                              # (W*width, W*width)
            rows.append(m)
        wrow_l.append(jnp.stack(rows))
        bc_l.append(jnp.tile(bi, w_sp)[None, :])
    wrow = jnp.stack(wrow_l)                                         # (nums, 3, W*width, W*width)
    bcslab = jnp.stack(bc_l)                                         # (nums, 1, W*width)

    # conv3 (1x1) + bn3, split by input channel group
    s3, b3 = fold_bn(*params["bn3"])
    w3s = params["w3"] * s3[None, :]                                 # (cmid, cout)
    w3bd = jnp.stack([jnp.kron(eye_w, w3s[g * width:(g + 1) * width, :])
                      for g in range(scale_cfg)])                    # (scale, W*width, W*cout)
    b3slab = jnp.tile(b3, w_sp)[None, :]                             # (1, W*cout)
    return w1bd, b1slab, wrow, bcslab, w3bd, b3slab


# ---------------------------------------------------------------------------
# Fused forward pass (single pallas_call)
# ---------------------------------------------------------------------------
def bottle2neck_pallas(x_nchw, params, width, scale_cfg, nums):
    x = jnp.transpose(x_nchw, (0, 2, 3, 1)).astype(jnp.float32)      # NCHW -> NHWC
    n, h, w_sp, cin = x.shape
    cout = params["w3"].shape[1]
    assert cout == cin, "downsample=None requires planes*expansion == inplanes"

    w1bd, b1slab, wrow, bcslab, w3bd, b3slab = _build_structured_weights(
        params, width, scale_cfg, nums, w_sp)

    gw = w_sp * width                        # group slab lane width (W*width)
    x_slab = x.reshape(n * h, w_sp * cin)    # lane-dense (N*H, W*Cin)

    def kernel(x_ref, w1_ref, b1_ref, wr_ref, bc_ref, w3_ref, b3_ref,
               o_ref, pad_ref):
        # Halo scratch: rows 0 and h+1 stay zero (H padding); interior is
        # fully overwritten each branch.  W padding is baked into the bands.
        pad_ref[...] = jnp.zeros((h + 2, gw), jnp.float32)

        xs = x_ref[...]                                              # (H, W*Cin)

        # conv1 (1x1, BN folded) + relu, one matmul per channel group
        grp = []
        for g in range(scale_cfg):
            y = jnp.dot(xs, w1_ref[g], preferred_element_type=jnp.float32)
            grp.append(jnp.maximum(y + b1_ref[g], 0.0))              # (H, W*width)

        # sequential 3x3 branches: sp = relu(bn(conv3x3(sp_prev + spx[i])))
        sp = None
        outs = []
        for i in range(nums):
            sp_in = grp[i] if i == 0 else sp + grp[i]
            pad_ref[1:h + 1, :] = sp_in
            acc = jnp.dot(pad_ref[0:h, :], wr_ref[i, 0],
                          preferred_element_type=jnp.float32)
            acc = acc + jnp.dot(pad_ref[1:h + 1, :], wr_ref[i, 1],
                                preferred_element_type=jnp.float32)
            acc = acc + jnp.dot(pad_ref[2:h + 2, :], wr_ref[i, 2],
                                preferred_element_type=jnp.float32)
            sp = jnp.maximum(acc + bc_ref[i], 0.0)
            outs.append(sp)
        if scale_cfg != 1:                                           # stype == 'normal'
            outs.append(grp[nums])

        # conv3 (1x1, BN folded) + residual + relu (implicit concat via sum)
        acc3 = jnp.dot(outs[0], w3_ref[0], preferred_element_type=jnp.float32)
        for g in range(1, scale_cfg):
            acc3 = acc3 + jnp.dot(outs[g], w3_ref[g],
                                  preferred_element_type=jnp.float32)
        o_ref[...] = jnp.maximum(acc3 + b3_ref[...] + xs, 0.0).astype(o_ref.dtype)

    out_slab = pl.pallas_call(
        kernel,
        out_shape=jax.ShapeDtypeStruct((n * h, w_sp * cout), jnp.float32),
        grid_spec=pltpu.PrefetchScalarGridSpec(
            num_scalar_prefetch=0,
            grid=(n,),
            in_specs=[
                pl.BlockSpec((h, w_sp * cin), lambda b: (b, 0)),
                pl.BlockSpec(w1bd.shape, lambda b: (0, 0, 0)),
                pl.BlockSpec(b1slab.shape, lambda b: (0, 0, 0)),
                pl.BlockSpec(wrow.shape, lambda b: (0, 0, 0, 0)),
                pl.BlockSpec(bcslab.shape, lambda b: (0, 0, 0)),
                pl.BlockSpec(w3bd.shape, lambda b: (0, 0, 0)),
                pl.BlockSpec(b3slab.shape, lambda b: (0, 0)),
            ],
            out_specs=pl.BlockSpec((h, w_sp * cout), lambda b: (b, 0)),
            scratch_shapes=[pltpu.VMEM((h + 2, gw), jnp.float32)],
        ),
        compiler_params=pltpu.CompilerParams(
            dimension_semantics=("parallel",)),
    )(x_slab, w1bd, b1slab, wrow, bcslab, w3bd, b3slab)

    out = out_slab.reshape(n, h, w_sp, cout)
    return jnp.transpose(out, (0, 3, 1, 2))                          # NHWC -> NCHW


# ---------------------------------------------------------------------------
# Parameter setup (random, deterministic)
# ---------------------------------------------------------------------------
def bn_params(key, c):
    k1, k2, k3, k4 = jax.random.split(key, 4)
    gamma = 1.0 + 0.1 * jax.random.normal(k1, (c,), jnp.float32)
    beta = 0.1 * jax.random.normal(k2, (c,), jnp.float32)
    mean = 0.1 * jax.random.normal(k3, (c,), jnp.float32)
    var = jax.random.uniform(k4, (c,), jnp.float32, 0.5, 1.5)
    return gamma, beta, mean, var


def init_params(key, inplanes, planes, base_width=26, scale_cfg=4):
    width = int(math.floor(planes * (base_width / 32.0)))
    nums = 1 if scale_cfg == 1 else scale_cfg - 1
    cmid = width * scale_cfg
    cout = planes * 4
    keys = iter(jax.random.split(key, 4 + 2 * nums))
    p = {}
    p["w1"] = 0.2 * jax.random.normal(next(keys), (inplanes, cmid), jnp.float32)
    p["bn1"] = bn_params(next(keys), cmid)
    p["convs"] = [0.2 * jax.random.normal(next(keys), (3, 3, width, width), jnp.float32)
                  for _ in range(nums)]
    p["bns"] = [bn_params(next(keys), width) for _ in range(nums)]
    p["w3"] = 0.2 * jax.random.normal(next(keys), (cmid, cout), jnp.float32)
    p["bn3"] = bn_params(next(keys), cout)
    return p


# ---------------------------------------------------------------------------
# Pure-JAX reference (for correctness check)
# ---------------------------------------------------------------------------
def bottle2neck_ref(x_nchw, params, width, scale_cfg, nums):
    x = jnp.transpose(x_nchw, (0, 2, 3, 1)).astype(jnp.float32)
    dn = ("NHWC", "HWIO", "NHWC")

    def bn(y, g, b, m, v):
        return (y - m) / jnp.sqrt(v + BN_EPS) * g + b

    w1 = params["w1"].reshape(1, 1, *params["w1"].shape)
    out = jax.lax.conv_general_dilated(x, w1, (1, 1), "VALID", dimension_numbers=dn)
    out = jax.nn.relu(bn(out, *params["bn1"]))
    spx = [out[..., i * width:(i + 1) * width] for i in range(scale_cfg)]
    pieces = []
    sp = None
    for i in range(nums):
        sp = spx[i] if i == 0 else sp + spx[i]
        sp = jax.lax.conv_general_dilated(sp, params["convs"][i], (1, 1), "SAME",
                                          dimension_numbers=dn)
        sp = jax.nn.relu(bn(sp, *params["bns"][i]))
        pieces.append(sp)
    if scale_cfg != 1:
        pieces.append(spx[nums])
    out = jnp.concatenate(pieces, axis=-1)
    w3 = params["w3"].reshape(1, 1, *params["w3"].shape)
    out = jax.lax.conv_general_dilated(out, w3, (1, 1), "VALID", dimension_numbers=dn)
    out = bn(out, *params["bn3"])
    out = jax.nn.relu(out + x)
    return jnp.transpose(out, (0, 3, 1, 2))


# ---------------------------------------------------------------------------
if __name__ == "__main__":
    inplanes, planes, base_width, scale_cfg = 32, 8, 26, 4
    width = int(math.floor(planes * (base_width / 32.0)))    # 6
    nums = 1 if scale_cfg == 1 else scale_cfg - 1             # 3
    assert planes * 4 == inplanes  # residual add requires downsample=None

    key = jax.random.PRNGKey(0)
    kx, kp = jax.random.split(key)
    x = jax.random.normal(kx, (2, inplanes, 16, 16), jnp.float32)   # NCHW
    params = init_params(kp, inplanes, planes, base_width, scale_cfg)

    fwd = jax.jit(bottle2neck_pallas, static_argnums=(2, 3, 4))
    out = jax.block_until_ready(fwd(x, params, width, scale_cfg, nums))

    ref = bottle2neck_ref(x, params, width, scale_cfg, nums)
    assert out.shape == (2, planes * 4, 16, 16), out.shape
    max_err = float(jnp.max(jnp.abs(out - ref)))
    assert jnp.allclose(out, ref, atol=2e-3, rtol=2e-3), max_err

    print("KERNEL_OK")
</pallas_src>

<mosaic_0001>
module attributes {stable_mosaic.version = 11 : i64} {
  func.func @kernel(%arg0: i32, %arg1: memref<16x512xf32, #tpu.memory_space<vmem>>, %arg2: memref<4x512x96xf32, #tpu.memory_space<vmem>>, %arg3: memref<4x1x96xf32, #tpu.memory_space<vmem>>, %arg4: memref<3x3x96x96xf32, #tpu.memory_space<vmem>>, %arg5: memref<3x1x96xf32, #tpu.memory_space<vmem>>, %arg6: memref<4x96x512xf32, #tpu.memory_space<vmem>>, %arg7: memref<1x512xf32, #tpu.memory_space<vmem>>, %arg8: memref<16x512xf32, #tpu.memory_space<vmem>>, %arg9: memref<18x96xf32, #tpu.memory_space<vmem>>) attributes {dimension_semantics = [#tpu.dimension_semantics<parallel>], iteration_bounds = array<i64: 2>, scalar_prefetch = 0 : i64, scratch_operands = 1 : i64, tpu.core_type = #tpu.core_type<tc>, window_params = [{transform_indices = @transform_0, window_bounds = array<i64: 16, 512>}, {pipeline_mode = #tpu.pipeline_mode<synchronous>, transform_indices = @transform_1, window_bounds = array<i64: 4, 512, 96>}, {pipeline_mode = #tpu.pipeline_mode<synchronous>, transform_indices = @transform_2, window_bounds = array<i64: 4, 1, 96>}, {pipeline_mode = #tpu.pipeline_mode<synchronous>, transform_indices = @transform_3, window_bounds = array<i64: 3, 3, 96, 96>}, {pipeline_mode = #tpu.pipeline_mode<synchronous>, transform_indices = @transform_4, window_bounds = array<i64: 3, 1, 96>}, {pipeline_mode = #tpu.pipeline_mode<synchronous>, transform_indices = @transform_5, window_bounds = array<i64: 4, 96, 512>}, {pipeline_mode = #tpu.pipeline_mode<synchronous>, transform_indices = @transform_6, window_bounds = array<i64: 1, 512>}, {transform_indices = @transform_7, window_bounds = array<i64: 16, 512>}]} {
    %cst = arith.constant 0.000000e+00 : f32
    %0 = vector.broadcast %cst : f32 to vector<18x96xf32>
    %c0 = arith.constant 0 : index
    %c0_0 = arith.constant 0 : index
    %1 = vector.load %arg9[%c0, %c0_0] : memref<18x96xf32, #tpu.memory_space<vmem>>, vector<18x96xf32>
    tpu.vector_store %arg9[%c0, %c0_0], %0 {strides = array<i32>} : memref<18x96xf32, #tpu.memory_space<vmem>>, vector<18x96xf32>,
    %c0_1 = arith.constant 0 : index
    %c0_2 = arith.constant 0 : index
    %2 = vector.load %arg1[%c0_1, %c0_2] : memref<16x512xf32, #tpu.memory_space<vmem>>, vector<16x512xf32>
    %c0_3 = arith.constant 0 : index
    %c0_4 = arith.constant 0 : index
    %c0_5 = arith.constant 0 : index
    %3 = vector.load %arg2[%c0_3, %c0_4, %c0_5] : memref<4x512x96xf32, #tpu.memory_space<vmem>>, vector<1x512x96xf32>
    %4 = vector.shape_cast %3 : vector<1x512x96xf32> to vector<512x96xf32>
    %cst_6 = arith.constant dense<0.000000e+00> : vector<16x96xf32>
    %5 = tpu.matmul %2, %4, %cst_6 {dimension_numbers = #tpu.dot_dimension_numbers<[1], [0], [0], [1], [0, 0, 1, 1], [], []>} : vector<16x512xf32>, vector<512x96xf32>, vector<16x96xf32> -> vector<16x96xf32>
    %c0_7 = arith.constant 0 : index
    %c0_8 = arith.constant 0 : index
    %c0_9 = arith.constant 0 : index
    %6 = vector.load %arg3[%c0_7, %c0_8, %c0_9] : memref<4x1x96xf32, #tpu.memory_space<vmem>>, vector<1x1x96xf32>
    %7 = vector.shape_cast %6 : vector<1x1x96xf32> to vector<1x96xf32>
    %8 = vector.broadcast %7 : vector<1x96xf32> to vector<16x96xf32>
    %9 = arith.addf %5, %8 : vector<16x96xf32>
    %cst_10 = arith.constant 0.000000e+00 : f32
    %10 = vector.broadcast %cst_10 : f32 to vector<16x96xf32>
    %11 = arith.maximumf %9, %10 : vector<16x96xf32>
    %c1 = arith.constant 1 : index
    %c0_11 = arith.constant 0 : index
    %c0_12 = arith.constant 0 : index
    %12 = vector.load %arg2[%c1, %c0_11, %c0_12] : memref<4x512x96xf32, #tpu.memory_space<vmem>>, vector<1x512x96xf32>
    %13 = vector.shape_cast %12 : vector<1x512x96xf32> to vector<512x96xf32>
    %cst_13 = arith.constant dense<0.000000e+00> : vector<16x96xf32>
    %14 = tpu.matmul %2, %13, %cst_13 {dimension_numbers = #tpu.dot_dimension_numbers<[1], [0], [0], [1], [0, 0, 1, 1], [], []>} : vector<16x512xf32>, vector<512x96xf32>, vector<16x96xf32> -> vector<16x96xf32>
    %c1_14 = arith.constant 1 : index
    %c0_15 = arith.constant 0 : index
    %c0_16 = arith.constant 0 : index
    %15 = vector.load %arg3[%c1_14, %c0_15, %c0_16] : memref<4x1x96xf32, #tpu.memory_space<vmem>>, vector<1x1x96xf32>
    %16 = vector.shape_cast %15 : vector<1x1x96xf32> to vector<1x96xf32>
    %17 = vector.broadcast %16 : vector<1x96xf32> to vector<16x96xf32>
    %18 = arith.addf %14, %17 : vector<16x96xf32>
    %cst_17 = arith.constant 0.000000e+00 : f32
    %19 = vector.broadcast %cst_17 : f32 to vector<16x96xf32>
    %20 = arith.maximumf %18, %19 : vector<16x96xf32>
    %c2 = arith.constant 2 : index
    %c0_18 = arith.constant 0 : index
    %c0_19 = arith.constant 0 : index
    %21 = vector.load %arg2[%c2, %c0_18, %c0_19] : memref<4x512x96xf32, #tpu.memory_space<vmem>>, vector<1x512x96xf32>
    %22 = vector.shape_cast %21 : vector<1x512x96xf32> to vector<512x96xf32>
    %cst_20 = arith.constant dense<0.000000e+00> : vector<16x96xf32>
    %23 = tpu.matmul %2, %22, %cst_20 {dimension_numbers = #tpu.dot_dimension_numbers<[1], [0], [0], [1], [0, 0, 1, 1], [], []>} : vector<16x512xf32>, vector<512x96xf32>, vector<16x96xf32> -> vector<16x96xf32>
    %c2_21 = arith.constant 2 : index
    %c0_22 = arith.constant 0 : index
    %c0_23 = arith.constant 0 : index
    %24 = vector.load %arg3[%c2_21, %c0_22, %c0_23] : memref<4x1x96xf32, #tpu.memory_space<vmem>>, vector<1x1x96xf32>
    %25 = vector.shape_cast %24 : vector<1x1x96xf32> to vector<1x96xf32>
    %26 = vector.broadcast %25 : vector<1x96xf32> to vector<16x96xf32>
    %27 = arith.addf %23, %26 : vector<16x96xf32>
    %cst_24 = arith.constant 0.000000e+00 : f32
    %28 = vector.broadcast %cst_24 : f32 to vector<16x96xf32>
    %29 = arith.maximumf %27, %28 : vector<16x96xf32>
    %c3 = arith.constant 3 : index
    %c0_25 = arith.constant 0 : index
    %c0_26 = arith.constant 0 : index
    %30 = vector.load %arg2[%c3, %c0_25, %c0_26] : memref<4x512x96xf32, #tpu.memory_space<vmem>>, vector<1x512x96xf32>
    %31 = vector.shape_cast %30 : vector<1x512x96xf32> to vector<512x96xf32>
    %cst_27 = arith.constant dense<0.000000e+00> : vector<16x96xf32>
    %32 = tpu.matmul %2, %31, %cst_27 {dimension_numbers = #tpu.dot_dimension_numbers<[1], [0], [0], [1], [0, 0, 1, 1], [], []>} : vector<16x512xf32>, vector<512x96xf32>, vector<16x96xf32> -> vector<16x96xf32>
    %c3_28 = arith.constant 3 : index
    %c0_29 = arith.constant 0 : index
    %c0_30 = arith.constant 0 : index
    %33 = vector.load %arg3[%c3_28, %c0_29, %c0_30] : memref<4x1x96xf32, #tpu.memory_space<vmem>>, vector<1x1x96xf32>
    %34 = vector.shape_cast %33 : vector<1x1x96xf32> to vector<1x96xf32>
    %35 = vector.broadcast %34 : vector<1x96xf32> to vector<16x96xf32>
    %36 = arith.addf %32, %35 : vector<16x96xf32>
    %cst_31 = arith.constant 0.000000e+00 : f32
    %37 = vector.broadcast %cst_31 : f32 to vector<16x96xf32>
    %38 = arith.maximumf %36, %37 : vector<16x96xf32>
    %c1_32 = arith.constant 1 : index
    %c0_33 = arith.constant 0 : index
    %39 = vector.load %arg9[%c1_32, %c0_33] : memref<18x96xf32, #tpu.memory_space<vmem>>, vector<16x96xf32>
    tpu.vector_store %arg9[%c1_32, %c0_33], %11 {strides = array<i32>} : memref<18x96xf32, #tpu.memory_space<vmem>>, vector<16x96xf32>,
    %c0_34 = arith.constant 0 : index
    %c0_35 = arith.constant 0 : index
    %40 = vector.load %arg9[%c0_34, %c0_35] : memref<18x96xf32, #tpu.memory_space<vmem>>, vector<16x96xf32>
    %c0_36 = arith.constant 0 : index
    %c0_37 = arith.constant 0 : index
    %c0_38 = arith.constant 0 : index
    %c0_39 = arith.constant 0 : index
    %41 = vector.load %arg4[%c0_36, %c0_37, %c0_38, %c0_39] : memref<3x3x96x96xf32, #tpu.memory_space<vmem>>, vector<1x1x96x96xf32>
    %42 = vector.shape_cast %41 : vector<1x1x96x96xf32> to vector<96x96xf32>
    %cst_40 = arith.constant dense<0.000000e+00> : vector<16x96xf32>
    %43 = tpu.matmul %40, %42, %cst_40 {dimension_numbers = #tpu.dot_dimension_numbers<[1], [0], [0], [1], [0, 0, 1, 1], [], []>} : vector<16x96xf32>, vector<96x96xf32>, vector<16x96xf32> -> vector<16x96xf32>
    %c1_41 = arith.constant 1 : index
    %c0_42 = arith.constant 0 : index
    %44 = vector.load %arg9[%c1_41, %c0_42] : memref<18x96xf32, #tpu.memory_space<vmem>>, vector<16x96xf32>
    %c0_43 = arith.constant 0 : index
    %c1_44 = arith.constant 1 : index
    %c0_45 = arith.constant 0 : index
    %c0_46 = arith.constant 0 : index
    %45 = vector.load %arg4[%c0_43, %c1_44, %c0_45, %c0_46] : memref<3x3x96x96xf32, #tpu.memory_space<vmem>>, vector<1x1x96x96xf32>
    %46 = vector.shape_cast %45 : vector<1x1x96x96xf32> to vector<96x96xf32>
    %cst_47 = arith.constant dense<0.000000e+00> : vector<16x96xf32>
    %47 = tpu.matmul %44, %46, %cst_47 {dimension_numbers = #tpu.dot_dimension_numbers<[1], [0], [0], [1], [0, 0, 1, 1], [], []>} : vector<16x96xf32>, vector<96x96xf32>, vector<16x96xf32> -> vector<16x96xf32>
    %48 = arith.addf %43, %47 : vector<16x96xf32>
    %c2_48 = arith.constant 2 : index
    %c0_49 = arith.constant 0 : index
    %49 = vector.load %arg9[%c2_48, %c0_49] : memref<18x96xf32, #tpu.memory_space<vmem>>, vector<16x96xf32>
    %c0_50 = arith.constant 0 : index
    %c2_51 = arith.constant 2 : index
    %c0_52 = arith.constant 0 : index
    %c0_53 = arith.constant 0 : index
    %50 = vector.load %arg4[%c0_50, %c2_51, %c0_52, %c0_53] : memref<3x3x96x96xf32, #tpu.memory_space<vmem>>, vector<1x1x96x96xf32>
    %51 = vector.shape_cast %50 : vector<1x1x96x96xf32> to vector<96x96xf32>
    %cst_54 = arith.constant dense<0.000000e+00> : vector<16x96xf32>
    %52 = tpu.matmul %49, %51, %cst_54 {dimension_numbers = #tpu.dot_dimension_numbers<[1], [0], [0], [1], [0, 0, 1, 1], [], []>} : vector<16x96xf32>, vector<96x96xf32>, vector<16x96xf32> -> vector<16x96xf32>
    %53 = arith.addf %48, %52 : vector<16x96xf32>
    %c0_55 = arith.constant 0 : index
    %c0_56 = arith.constant 0 : index
    %c0_57 = arith.constant 0 : index
    %54 = vector.load %arg5[%c0_55, %c0_56, %c0_57] : memref<3x1x96xf32, #tpu.memory_space<vmem>>, vector<1x1x96xf32>
    %55 = vector.shape_cast %54 : vector<1x1x96xf32> to vector<1x96xf32>
    %56 = vector.broadcast %55 : vector<1x96xf32> to vector<16x96xf32>
    %57 = arith.addf %53, %56 : vector<16x96xf32>
    %cst_58 = arith.constant 0.000000e+00 : f32
    %58 = vector.broadcast %cst_58 : f32 to vector<16x96xf32>
    %59 = arith.maximumf %57, %58 : vector<16x96xf32>
    %60 = arith.addf %59, %20 : vector<16x96xf32>
    %c1_59 = arith.constant 1 : index
    %c0_60 = arith.constant 0 : index
    %61 = vector.load %arg9[%c1_59, %c0_60] : memref<18x96xf32, #tpu.memory_space<vmem>>, vector<16x96xf32>
    tpu.vector_store %arg9[%c1_59, %c0_60], %60 {strides = array<i32>} : memref<18x96xf32, #tpu.memory_space<vmem>>, vector<16x96xf32>,
    %c0_61 = arith.constant 0 : index
    %c0_62 = arith.constant 0 : index
    %62 = vector.load %arg9[%c0_61, %c0_62] : memref<18x96xf32, #tpu.memory_space<vmem>>, vector<16x96xf32>
    %c1_63 = arith.constant 1 : index
    %c0_64 = arith.constant 0 : index
    %c0_65 = arith.constant 0 : index
    %c0_66 = arith.constant 0 : index
    %63 = vector.load %arg4[%c1_63, %c0_64, %c0_65, %c0_66] : memref<3x3x96x96xf32, #tpu.memory_space<vmem>>, vector<1x1x96x96xf32>
    %64 = vector.shape_cast %63 : vector<1x1x96x96xf32> to vector<96x96xf32>
    %cst_67 = arith.constant dense<0.000000e+00> : vector<16x96xf32>
    %65 = tpu.matmul %62, %64, %cst_67 {dimension_numbers = #tpu.dot_dimension_numbers<[1], [0], [0], [1], [0, 0, 1, 1], [], []>} : vector<16x96xf32>, vector<96x96xf32>, vector<16x96xf32> -> vector<16x96xf32>
    %c1_68 = arith.constant 1 : index
    %c0_69 = arith.constant 0 : index
    %66 = vector.load %arg9[%c1_68, %c0_69] : memref<18x96xf32, #tpu.memory_space<vmem>>, vector<16x96xf32>
    %c1_70 = arith.constant 1 : index
    %c1_71 = arith.constant 1 : index
    %c0_72 = arith.constant 0 : index
    %c0_73 = arith.constant 0 : index
    %67 = vector.load %arg4[%c1_70, %c1_71, %c0_72, %c0_73] : memref<3x3x96x96xf32, #tpu.memory_space<vmem>>, vector<1x1x96x96xf32>
    %68 = vector.shape_cast %67 : vector<1x1x96x96xf32> to vector<96x96xf32>
    %cst_74 = arith.constant dense<0.000000e+00> : vector<16x96xf32>
    %69 = tpu.matmul %66, %68, %cst_74 {dimension_numbers = #tpu.dot_dimension_numbers<[1], [0], [0], [1], [0, 0, 1, 1], [], []>} : vector<16x96xf32>, vector<96x96xf32>, vector<16x96xf32> -> vector<16x96xf32>
    %70 = arith.addf %65, %69 : vector<16x96xf32>
    %c2_75 = arith.constant 2 : index
    %c0_76 = arith.constant 0 : index
    %71 = vector.load %arg9[%c2_75, %c0_76] : memref<18x96xf32, #tpu.memory_space<vmem>>, vector<16x96xf32>
    %c1_77 = arith.constant 1 : index
    %c2_78 = arith.constant 2 : index
    %c0_79 = arith.constant 0 : index
    %c0_80 = arith.constant 0 : index
    %72 = vector.load %arg4[%c1_77, %c2_78, %c0_79, %c0_80] : memref<3x3x96x96xf32, #tpu.memory_space<vmem>>, vector<1x1x96x96xf32>
    %73 = vector.shape_cast %72 : vector<1x1x96x96xf32> to vector<96x96xf32>
    %cst_81 = arith.constant dense<0.000000e+00> : vector<16x96xf32>
    %74 = tpu.matmul %71, %73, %cst_81 {dimension_numbers = #tpu.dot_dimension_numbers<[1], [0], [0], [1], [0, 0, 1, 1], [], []>} : vector<16x96xf32>, vector<96x96xf32>, vector<16x96xf32> -> vector<16x96xf32>
    %75 = arith.addf %70, %74 : vector<16x96xf32>
    %c1_82 = arith.constant 1 : index
    %c0_83 = arith.constant 0 : index
    %c0_84 = arith.constant 0 : index
    %76 = vector.load %arg5[%c1_82, %c0_83, %c0_84] : memref<3x1x96xf32, #tpu.memory_space<vmem>>, vector<1x1x96xf32>
    %77 = vector.shape_cast %76 : vector<1x1x96xf32> to vector<1x96xf32>
    %78 = vector.broadcast %77 : vector<1x96xf32> to vector<16x96xf32>
    %79 = arith.addf %75, %78 : vector<16x96xf32>
    %cst_85 = arith.constant 0.000000e+00 : f32
    %80 = vector.broadcast %cst_85 : f32 to vector<16x96xf32>
    %81 = arith.maximumf %79, %80 : vector<16x96xf32>
    %82 = arith.addf %81, %29 : vector<16x96xf32>
    %c1_86 = arith.constant 1 : index
    %c0_87 = arith.constant 0 : index
    %83 = vector.load %arg9[%c1_86, %c0_87] : memref<18x96xf32, #tpu.memory_space<vmem>>, vector<16x96xf32>
    tpu.vector_store %arg9[%c1_86, %c0_87], %82 {strides = array<i32>} : memref<18x96xf32, #tpu.memory_space<vmem>>, vector<16x96xf32>,
    %c0_88 = arith.constant 0 : index
    %c0_89 = arith.constant 0 : index
    %84 = vector.load %arg9[%c0_88, %c0_89] : memref<18x96xf32, #tpu.memory_space<vmem>>, vector<16x96xf32>
    %c2_90 = arith.constant 2 : index
    %c0_91 = arith.constant 0 : index
    %c0_92 = arith.constant 0 : index
    %c0_93 = arith.constant 0 : index
    %85 = vector.load %arg4[%c2_90, %c0_91, %c0_92, %c0_93] : memref<3x3x96x96xf32, #tpu.memory_space<vmem>>, vector<1x1x96x96xf32>
    %86 = vector.shape_cast %85 : vector<1x1x96x96xf32> to vector<96x96xf32>
    %cst_94 = arith.constant dense<0.000000e+00> : vector<16x96xf32>
    %87 = tpu.matmul %84, %86, %cst_94 {dimension_numbers = #tpu.dot_dimension_numbers<[1], [0], [0], [1], [0, 0, 1, 1], [], []>} : vector<16x96xf32>, vector<96x96xf32>, vector<16x96xf32> -> vector<16x96xf32>
    %c1_95 = arith.constant 1 : index
    %c0_96 = arith.constant 0 : index
    %88 = vector.load %arg9[%c1_95, %c0_96] : memref<18x96xf32, #tpu.memory_space<vmem>>, vector<16x96xf32>
    %c2_97 = arith.constant 2 : index
    %c1_98 = arith.constant 1 : index
    %c0_99 = arith.constant 0 : index
    %c0_100 = arith.constant 0 : index
    %89 = vector.load %arg4[%c2_97, %c1_98, %c0_99, %c0_100] : memref<3x3x96x96xf32, #tpu.memory_space<vmem>>, vector<1x1x96x96xf32>
    %90 = vector.shape_cast %89 : vector<1x1x96x96xf32> to vector<96x96xf32>
    %cst_101 = arith.constant dense<0.000000e+00> : vector<16x96xf32>
    %91 = tpu.matmul %88, %90, %cst_101 {dimension_numbers = #tpu.dot_dimension_numbers<[1], [0], [0], [1], [0, 0, 1, 1], [], []>} : vector<16x96xf32>, vector<96x96xf32>, vector<16x96xf32> -> vector<16x96xf32>
    %92 = arith.addf %87, %91 : vector<16x96xf32>
    %c2_102 = arith.constant 2 : index
    %c0_103 = arith.constant 0 : index
    %93 = vector.load %arg9[%c2_102, %c0_103] : memref<18x96xf32, #tpu.memory_space<vmem>>, vector<16x96xf32>
    %c2_104 = arith.constant 2 : index
    %c2_105 = arith.constant 2 : index
    %c0_106 = arith.constant 0 : index
    %c0_107 = arith.constant 0 : index
    %94 = vector.load %arg4[%c2_104, %c2_105, %c0_106, %c0_107] : memref<3x3x96x96xf32, #tpu.memory_space<vmem>>, vector<1x1x96x96xf32>
    %95 = vector.shape_cast %94 : vector<1x1x96x96xf32> to vector<96x96xf32>
    %cst_108 = arith.constant dense<0.000000e+00> : vector<16x96xf32>
    %96 = tpu.matmul %93, %95, %cst_108 {dimension_numbers = #tpu.dot_dimension_numbers<[1], [0], [0], [1], [0, 0, 1, 1], [], []>} : vector<16x96xf32>, vector<96x96xf32>, vector<16x96xf32> -> vector<16x96xf32>
    %97 = arith.addf %92, %96 : vector<16x96xf32>
    %c2_109 = arith.constant 2 : index
    %c0_110 = arith.constant 0 : index
    %c0_111 = arith.constant 0 : index
    %98 = vector.load %arg5[%c2_109, %c0_110, %c0_111] : memref<3x1x96xf32, #tpu.memory_space<vmem>>, vector<1x1x96xf32>
    %99 = vector.shape_cast %98 : vector<1x1x96xf32> to vector<1x96xf32>
    %100 = vector.broadcast %99 : vector<1x96xf32> to vector<16x96xf32>
    %101 = arith.addf %97, %100 : vector<16x96xf32>
    %cst_112 = arith.constant 0.000000e+00 : f32
    %102 = vector.broadcast %cst_112 : f32 to vector<16x96xf32>
    %103 = arith.maximumf %101, %102 : vector<16x96xf32>
    %c0_113 = arith.constant 0 : index
    %c0_114 = arith.constant 0 : index
    %c0_115 = arith.constant 0 : index
    %104 = vector.load %arg6[%c0_113, %c0_114, %c0_115] : memref<4x96x512xf32, #tpu.memory_space<vmem>>, vector<1x96x512xf32>
    %105 = vector.shape_cast %104 : vector<1x96x512xf32> to vector<96x512xf32>
    %cst_116 = arith.constant dense<0.000000e+00> : vector<16x512xf32>
    %106 = tpu.matmul %59, %105, %cst_116 {dimension_numbers = #tpu.dot_dimension_numbers<[1], [0], [0], [1], [0, 0, 1, 1], [], []>} : vector<16x96xf32>, vector<96x512xf32>, vector<16x512xf32> -> vector<16x512xf32>
    %c1_117 = arith.constant 1 : index
    %c0_118 = arith.constant 0 : index
    %c0_119 = arith.constant 0 : index
    %107 = vector.load %arg6[%c1_117, %c0_118, %c0_119] : memref<4x96x512xf32, #tpu.memory_space<vmem>>, vector<1x96x512xf32>
    %108 = vector.shape_cast %107 : vector<1x96x512xf32> to vector<96x512xf32>
    %cst_120 = arith.constant dense<0.000000e+00> : vector<16x512xf32>
    %109 = tpu.matmul %81, %108, %cst_120 {dimension_numbers = #tpu.dot_dimension_numbers<[1], [0], [0], [1], [0, 0, 1, 1], [], []>} : vector<16x96xf32>, vector<96x512xf32>, vector<16x512xf32> -> vector<16x512xf32>
    %110 = arith.addf %106, %109 : vector<16x512xf32>
    %c2_121 = arith.constant 2 : index
    %c0_122 = arith.constant 0 : index
    %c0_123 = arith.constant 0 : index
    %111 = vector.load %arg6[%c2_121, %c0_122, %c0_123] : memref<4x96x512xf32, #tpu.memory_space<vmem>>, vector<1x96x512xf32>
    %112 = vector.shape_cast %111 : vector<1x96x512xf32> to vector<96x512xf32>
    %cst_124 = arith.constant dense<0.000000e+00> : vector<16x512xf32>
    %113 = tpu.matmul %103, %112, %cst_124 {dimension_numbers = #tpu.dot_dimension_numbers<[1], [0], [0], [1], [0, 0, 1, 1], [], []>} : vector<16x96xf32>, vector<96x512xf32>, vector<16x512xf32> -> vector<16x512xf32>
    %114 = arith.addf %110, %113 : vector<16x512xf32>
    %c3_125 = arith.constant 3 : index
    %c0_126 = arith.constant 0 : index
    %c0_127 = arith.constant 0 : index
    %115 = vector.load %arg6[%c3_125, %c0_126, %c0_127] : memref<4x96x512xf32, #tpu.memory_space<vmem>>, vector<1x96x512xf32>
    %116 = vector.shape_cast %115 : vector<1x96x512xf32> to vector<96x512xf32>
    %cst_128 = arith.constant dense<0.000000e+00> : vector<16x512xf32>
    %117 = tpu.matmul %38, %116, %cst_128 {dimension_numbers = #tpu.dot_dimension_numbers<[1], [0], [0], [1], [0, 0, 1, 1], [], []>} : vector<16x96xf32>, vector<96x512xf32>, vector<16x512xf32> -> vector<16x512xf32>
    %118 = arith.addf %114, %117 : vector<16x512xf32>
    %c0_129 = arith.constant 0 : index
    %c0_130 = arith.constant 0 : index
    %119 = vector.load %arg7[%c0_129, %c0_130] : memref<1x512xf32, #tpu.memory_space<vmem>>, vector<1x512xf32>
    %120 = vector.broadcast %119 : vector<1x512xf32> to vector<16x512xf32>
    %121 = arith.addf %118, %120 : vector<16x512xf32>
    %122 = arith.addf %121, %2 : vector<16x512xf32>
    %cst_131 = arith.constant 0.000000e+00 : f32
    %123 = vector.broadcast %cst_131 : f32 to vector<16x512xf32>
    %124 = arith.maximumf %122, %123 : vector<16x512xf32>
    %c0_132 = arith.constant 0 : index
    %c0_133 = arith.constant 0 : index
    %125 = vector.load %arg8[%c0_132, %c0_133] : memref<16x512xf32, #tpu.memory_space<vmem>>, vector<16x512xf32>
    tpu.vector_store %arg8[%c0_132, %c0_133], %124 {strides = array<i32>} : memref<16x512xf32, #tpu.memory_space<vmem>>, vector<16x512xf32>,
    return
  }
  func.func @transform_0(%arg0: i32) -> (i32, i32) {
    %c0_i32 = arith.constant 0 : i32
    %c0_i32_0 = arith.constant 0 : i32
    return %arg0, %c0_i32 : i32, i32
  }
  func.func @transform_1(%arg0: i32) -> (i32, i32, i32) {
    %c0_i32 = arith.constant 0 : i32
    %c0_i32_0 = arith.constant 0 : i32
    %c0_i32_1 = arith.constant 0 : i32
    %c0_i32_2 = arith.constant 0 : i32
    return %c0_i32, %c0_i32_0, %c0_i32_1 : i32, i32, i32
  }
  func.func @transform_2(%arg0: i32) -> (i32, i32, i32) {
    %c0_i32 = arith.constant 0 : i32
    %c0_i32_0 = arith.constant 0 : i32
    %c0_i32_1 = arith.constant 0 : i32
    %c0_i32_2 = arith.constant 0 : i32
    return %c0_i32, %c0_i32_0, %c0_i32_1 : i32, i32, i32
  }
  func.func @transform_3(%arg0: i32) -> (i32, i32, i32, i32) {
    %c0_i32 = arith.constant 0 : i32
    %c0_i32_0 = arith.constant 0 : i32
    %c0_i32_1 = arith.constant 0 : i32
    %c0_i32_2 = arith.constant 0 : i32
    %c0_i32_3 = arith.constant 0 : i32
    return %c0_i32, %c0_i32_0, %c0_i32_1, %c0_i32_2 : i32, i32, i32, i32
  }
  func.func @transform_4(%arg0: i32) -> (i32, i32, i32) {
    %c0_i32 = arith.constant 0 : i32
    %c0_i32_0 = arith.constant 0 : i32
    %c0_i32_1 = arith.constant 0 : i32
    %c0_i32_2 = arith.constant 0 : i32
    return %c0_i32, %c0_i32_0, %c0_i32_1 : i32, i32, i32
  }
  func.func @transform_5(%arg0: i32) -> (i32, i32, i32) {
    %c0_i32 = arith.constant 0 : i32
    %c0_i32_0 = arith.constant 0 : i32
    %c0_i32_1 = arith.constant 0 : i32
    %c0_i32_2 = arith.constant 0 : i32
    return %c0_i32, %c0_i32_0, %c0_i32_1 : i32, i32, i32
  }
  func.func @transform_6(%arg0: i32) -> (i32, i32) {
    %c0_i32 = arith.constant 0 : i32
    %c0_i32_0 = arith.constant 0 : i32
    %c0_i32_1 = arith.constant 0 : i32
    return %c0_i32, %c0_i32_0 : i32, i32
  }
  func.func @transform_7(%arg0: i32) -> (i32, i32) {
    %c0_i32 = arith.constant 0 : i32
    %c0_i32_0 = arith.constant 0 : i32
    return %arg0, %c0_i32 : i32, i32
  }
}

</mosaic_0001>

<llo_original>
// kernel: tile.43
$region0: #{tile.43}
  #allocation0 [shape = 's32[1]{0}', space=sflag, size = 0x4, scoped, tag = 'scoped memory for tile.43']
  %s0 = inlined_call_operand.vmem [shape: f32[6], index: 0, kind: input, shape index: {}]
  %s1 = inlined_call_operand.vmem [shape: f32[16,6], index: 1, kind: output, shape index: {}]
  // Predicated region
  $region2: #{tile.43} parent=0 // pred_check
    _
  $region3: #{tile.43} parent=0 // pred_check_branch
    %3 = sbr.rel (0) target = $region5
  $region4: #{tile.43} parent=0 // pred_region
    _
  $region5: #{tile.43} parent=0 // pred_fallthru
    _
  %v4 = vld [vmem:[%s0] ss:$0 sm:$0xff]
  %5 = vst [vmem:[%s1] sm:$0xff] %v4
  %s6 = scalar_lea.vmem %s1, 8
  %7 = vst [vmem:[%s6] sm:$0xff] %v4

// kernel: tile.56
$region0: #{tile.56}
  %s0 = inlined_call_operand.vmem [shape: f32[16,6], index: 0, kind: input, shape index: {}]
  %s1 = inlined_call_operand.vmem [shape: f32[1,1,96], index: 1, kind: output, shape index: {}]
  $region1: #{tile.56} parent=0
    #allocation0 [shape = 'u8[4096]{0}', space=vmem, size = 0x1000, scoped, tag = 'scoped mem for output reshape']
    %v2 = vld [vmem:[%s0] sm:$0x1]
    %vm3 = vcmask 48128
    %4 = vst.msk [vmem:[#allocation0] sm:$0x1] %vm3, %v2
    %s5 = scalar_lea.vmem %s0, 15
    %v6 = vld [vmem:[%s5] sm:$0x1]
    %7 = vrot.lane.b32.xlu0 %v6, 90
    %v8 = vpop.permute.xlu0 %7
    %vm9 = vcmask 786128
    %10 = vst.msk [vmem:[#allocation0] sm:$0x1] %vm9, %v8
    %s11 = scalar_lea.vmem %s0, 14
    %v12 = vld [vmem:[%s11] sm:$0x1]
    %13 = vrot.lane.b32.xlu0 %v12, 84
    %v14 = vpop.permute.xlu0 %13
    %vm15 = vcmask 736928
    %16 = vst.msk [vmem:[#allocation0] sm:$0x1] %vm15, %v14
    %s17 = scalar_lea.vmem %s0, 13
    %v18 = vld [vmem:[%s17] sm:$0x1]
    %19 = vrot.lane.b32.xlu0 %v18, 78
    %v20 = vpop.permute.xlu0 %19
    %vm21 = vcmask 687728
    %22 = vst.msk [vmem:[#allocation0] sm:$0x1] %vm21, %v20
    %s23 = scalar_lea.vmem %s0, 12
    %v24 = vld [vmem:[%s23] sm:$0x1]
    %25 = vrot.lane.b32.xlu0 %v24, 72
    %v26 = vpop.permute.xlu0 %25
    %vm27 = vcmask 638528
    %28 = vst.msk [vmem:[#allocation0] sm:$0x1] %vm27, %v26
    %s29 = scalar_lea.vmem %s0, 11
    %v30 = vld [vmem:[%s29] sm:$0x1]
    %31 = vrot.lane.b32.xlu0 %v30, 66
    %v32 = vpop.permute.xlu0 %31
    %vm33 = vcmask 589328
    %34 = vst.msk [vmem:[#allocation0] sm:$0x1] %vm33, %v32
    %s35 = scalar_lea.vmem %s0, 10
    %v36 = vld [vmem:[%s35] sm:$0x1]
    %37 = vrot.lane.b32.xlu0 %v36, 60
    %v38 = vpop.permute.xlu0 %37
    %vm39 = vcmask 540128
    %40 = vst.msk [vmem:[#allocation0] sm:$0x1] %vm39, %v38
    %s41 = scalar_lea.vmem %s0, 9
    %v42 = vld [vmem:[%s41] sm:$0x1]
    %43 = vrot.lane.b32.xlu0 %v42, 54
    %v44 = vpop.permute.xlu0 %43
    %vm45 = vcmask 490928
    %46 = vst.msk [vmem:[#allocation0] sm:$0x1] %vm45, %v44
    %s47 = scalar_lea.vmem %s0, 8
    %v48 = vld [vmem:[%s47] sm:$0x1]
    %49 = vrot.lane.b32.xlu0 %v48, 48
    %v50 = vpop.permute.xlu0 %49
    %vm51 = vcmask 441728
    %52 = vst.msk [vmem:[#allocation0] sm:$0x1] %vm51, %v50
    %s53 = scalar_lea.vmem %s0, 7
    %v54 = vld [vmem:[%s53] sm:$0x1]
    %55 = vrot.lane.b32.xlu0 %v54, 42
    %v56 = vpop.permute.xlu0 %55
    %vm57 = vcmask 392528
    %58 = vst.msk [vmem:[#allocation0] sm:$0x1] %vm57, %v56
    %s59 = scalar_lea.vmem %s0, 6
    %v60 = vld [vmem:[%s59] sm:$0x1]
    %61 = vrot.lane.b32.xlu0 %v60, 36
    %v62 = vpop.permute.xlu0 %61
    %vm63 = vcmask 343328
    %64 = vst.msk [vmem:[#allocation0] sm:$0x1] %vm63, %v62
    %s65 = scalar_lea.vmem %s0, 5
    %v66 = vld [vmem:[%s65] sm:$0x1]
    %67 = vrot.lane.b32.xlu0 %v66, 30
    %v68 = vpop.permute.xlu0 %67
    %vm69 = vcmask 294128
    %70 = vst.msk [vmem:[#allocation0] sm:$0x1] %vm69, %v68
    %s71 = scalar_lea.vmem %s0, 4
    %v72 = vld [vmem:[%s71] sm:$0x1]
    %73 = vrot.lane.b32.xlu0 %v72, 24
    %v74 = vpop.permute.xlu0 %73
    %vm75 = vcmask 244928
    %76 = vst.msk [vmem:[#allocation0] sm:$0x1] %vm75, %v74
    %s77 = scalar_lea.vmem %s0, 3
    %v78 = vld [vmem:[%s77] sm:$0x1]
    %79 = vrot.lane.b32.xlu0 %v78, 18
    %v80 = vpop.permute.xlu0 %79
    %vm81 = vcmask 195728
    %82 = vst.msk [vmem:[#allocation0] sm:$0x1] %vm81, %v80
    %s83 = scalar_lea.vmem %s0, 2
    %v84 = vld [vmem:[%s83] sm:$0x1]
    %85 = vrot.lane.b32.xlu0 %v84, 12
    %v86 = vpop.permute.xlu0 %85
    %vm87 = vcmask 146528
    %88 = vst.msk [vmem:[#allocation0] sm:$0x1] %vm87, %v86
    %s89 = scalar_lea.vmem %s0, 1
    %v90 = vld [vmem:[%s89] sm:$0x1]
    %91 = vrot.lane.b32.xlu0 %v90, 6
    %v92 = vpop.permute.xlu0 %91
    %vm93 = vcmask 97328
    %94 = vst.msk [vmem:[#allocation0] sm:$0x1] %vm93, %v92
    %s96 = sshll.u32 1, 1
    %s97 = ssub.s32 %s96, 1
    %v99 = vld [vmem:[#allocation0] sm:%s97]
    %s100 = sshll.u32 1, 1
    %s101 = ssub.s32 %s100, 1
    %102 = vst [vmem:[%s1] sm:%s101] %v99

// kernel: tile.78
$region0: #{tile.78}
  #allocation0 [shape = 's32[1]{0}', space=sflag, size = 0x4, scoped, tag = 'scoped memory for tile.78']
  %s0 = inlined_call_operand.vmem [shape: f32[32], index: 0, kind: input, shape index: {}]
  %s1 = inlined_call_operand.vmem [shape: f32[16,32], index: 1, kind: output, shape index: {}]
  // Predicated region
  $region2: #{tile.78} parent=0 // pred_check
    _
  $region3: #{tile.78} parent=0 // pred_check_branch
    %3 = sbr.rel (0) target = $region5
  $region4: #{tile.78} parent=0 // pred_region
    _
  $region5: #{tile.78} parent=0 // pred_fallthru
    _
  %v4 = vld [vmem:[%s0] ss:$0 sm:$0xff]
  %5 = vst [vmem:[%s1] sm:$0xff] %v4
  %s6 = scalar_lea.vmem %s1, 8
  %7 = vst [vmem:[%s6] sm:$0xff] %v4

// kernel: tile.79
$region0: #{tile.79}
  %s0 = inlined_call_operand.vmem [shape: f32[16,32], index: 0, kind: input, shape index: {}]
  %s1 = inlined_call_operand.vmem [shape: f32[1,512], index: 1, kind: output, shape index: {}]
  $region1: #{tile.79} parent=0
    #allocation0 [shape = 'u8[16384]{0}', space=vmem, size = 0x4000, scoped, tag = 'scoped mem for output reshape']
    %v2 = vld [vmem:[%s0] ss:$4 sm:$0xf]
    %vm3 = vcmask 261120
    %4 = vst.msk [vmem:[#allocation0] ss:$8 sm:$0xf] %vm3, %v2
    %s5 = scalar_lea.vmem %s0, 3
    %v6 = vld [vmem:[%s5] ss:$4 sm:$0xf]
    %7 = vrot.lane.b32.xlu0 %v6, 96
    %v8 = vpop.permute.xlu0 %7
    %vm9 = vcmask 1048320
    %10 = vst.msk [vmem:[#allocation0] ss:$8 sm:$0xf] %vm9, %v8
    %s11 = scalar_lea.vmem %s0, 2
    %v12 = vld [vmem:[%s11] ss:$4 sm:$0xf]
    %13 = vrot.lane.b32.xlu0 %v12, 64
    %v14 = vpop.permute.xlu0 %13
    %vm15 = vcmask 785920
    %16 = vst.msk [vmem:[#allocation0] ss:$8 sm:$0xf] %vm15, %v14
    %s17 = scalar_lea.vmem %s0, 1
    %v18 = vld [vmem:[%s17] ss:$4 sm:$0xf]
    %19 = vrot.lane.b32.xlu0 %v18, 32
    %v20 = vpop.permute.xlu0 %19
    %vm21 = vcmask 523520
    %22 = vst.msk [vmem:[#allocation0] ss:$8 sm:$0xf] %vm21, %v20
    %s24 = sshll.u32 1, 1
    %s25 = ssub.s32 %s24, 1
    %v27 = vld [vmem:[#allocation0] sm:%s25]
    %s28 = sshll.u32 1, 1
    %s29 = ssub.s32 %s28, 1
    %30 = vst [vmem:[%s1] sm:%s29] %v27
    %s31 = scalar_lea.vmem [#allocation0], 8
    %v32 = vld [vmem:[%s31] sm:%s25]
    %s33 = sshll.u32 1, 1
    %s34 = ssub.s32 %s33, 1
    %s35 = scalar_lea.vmem %s1, 1
    %36 = vst [vmem:[%s35] sm:%s34] %v32
    %s37 = scalar_lea.vmem [#allocation0], 16
    %v38 = vld [vmem:[%s37] sm:%s25]
    %s39 = sshll.u32 1, 1
    %s40 = ssub.s32 %s39, 1
    %s41 = smul.addr 1, 2
    %s42 = scalar_lea.vmem %s1, %s41
    %43 = vst [vmem:[%s42] sm:%s40] %v38
    %s44 = scalar_lea.vmem [#allocation0], 24
    %v45 = vld [vmem:[%s44] sm:%s25]
    %s46 = sshll.u32 1, 1
    %s47 = ssub.s32 %s46, 1
    %s48 = smul.addr 1, 3
    %s49 = scalar_lea.vmem %s1, %s48
    %50 = vst [vmem:[%s49] sm:%s47] %v45

// kernel: bottle2neck_pallas.1
$region0: #{bottle2neck_pallas.1}
  #allocation0 [shape = 'u32[]', space=smem, size = 0x4, offset = 0x4, fixed_abs, tag = 'smem constant byte address 0x4 - core index']
  #allocation1 [shape = 'u32[144,128]{1,0:T(1,128)}', space=vmem, size = 0x12000, scoped, tag = 'internal scratch']
  #allocation2 [shape = 'f32[18,96]{1,0:T(8,128)}', space=vmem, size = 0x3000, scoped, tag = 'scratch operand']
  %s0 = inlined_call_operand.vmem [shape: f32[32,512], index: 0, kind: input, shape index: {}]
  %s1 = inlined_call_operand.vmem [shape: f32[4,512,96], index: 1, kind: input, shape index: {}]
  %s2 = inlined_call_operand.vmem [shape: f32[4,1,96], index: 2, kind: input, shape index: {}]
  %s3 = inlined_call_operand.vmem [shape: f32[3,3,96,96], index: 3, kind: input, shape index: {}]
  %s4 = inlined_call_operand.vmem [shape: f32[3,1,96], index: 4, kind: input, shape index: {}]
  %s5 = inlined_call_operand.vmem [shape: f32[4,96,512], index: 5, kind: input, shape index: {}]
  %s6 = inlined_call_operand.vmem [shape: f32[1,512], index: 6, kind: input, shape index: {}]
  %s7 = inlined_call_operand.vmem [shape: f32[32,512], index: 7, kind: output, shape index: {}]
  %s8 = sld [smem:[#allocation0]]
  $region61: #{bottle2neck_pallas.1} parent=0
    _
  %s10 = ssub.s32 1, %s8
  %s11 = scalar_select 0, %s10, %s8
  loop: start=0, step=1, limit=4
  $region2: #{bottle2neck_pallas.1} parent=0 // loop_pre_header
    _
  $region3: #{bottle2neck_pallas.1} parent=0 // loop_header
    %s13 = sphi 0, %s17
    %p14 = scmp.ge.s32.totalorder %s13, 4
    %s23 = sphi 0, %s25
    %s26 = sphi 0, %s23
    %s27 = sphi 0, %s26
    %s43 = sphi 0, %s27
    %s47 = sphi 0, %s47
    %s49 = sphi 0, %s47
    %s50 = sphi 0, %s49
    %s64 = sphi 0, %s50
    %s68 = sphi 0, %s68
    %s70 = sphi 0, %s68
    %s71 = sphi 0, %s70
    %s85 = sphi 0, %s71
    %s89 = sphi 0, %s89
    %s91 = sphi 0, %s89
    %s92 = sphi 0, %s91
    %s106 = sphi 0, %s92
    %s110 = sphi 0, %s110
    %s112 = sphi 0, %s110
    %s113 = sphi 0, %s112
    %s127 = sphi 0, %s113
    %s131 = sphi 0, %s131
    %s133 = sphi 0, %s131
    %s134 = sphi 0, %s133
    %s148 = sphi 0, %s134
    %s152 = sphi 0, %s152
    %s154 = sphi 0, %s152
    %s155 = sphi 0, %s154
    %s169 = sphi 0, %s155
    %s175 = sphi 0, %s177
    %s178 = sphi 0, %s175
    %s179 = sphi 0, %s178
    %s195 = sphi 0, %s179
  $region4: #{bottle2neck_pallas.1} parent=0 // loop_header_branch
    %16 = sbr.rel (%p14) target = $region8
  $region5: #{bottle2neck_pallas.1} parent=0 // loop_body
    %s18 = ssub.s32 %s13, 1
    %s19 = ssub.s32 %s13, 2
    %s20 = sadd.s32 %s13, 1
    %s21 = ssub.s32 %s13, %s20
    %p22 = scmp.eq.s32.totalorder %s21, 0
    %s24 = sadd.s32 %s23, 1
    %s25 = scalar_select %p22, %s23, %s24
    %p28 = pneg %p22
    %p29 = scmp.eq.s32.totalorder %s13, 1
    %p30 = por %p28, %p29
    %p31 = scmp.ne.s32.totalorder %s23, %s26
    %p32 = scmp.eq.s32.totalorder %s13, 0
    %p33 = por %p31, %p32
    %p34 = scmp.ne.s32.totalorder %s23, %s26
    %p35 = scmp.eq.s32.totalorder %s18, 1
    %p36 = por %p34, %p35
    %p37 = scmp.ne.s32.totalorder %s26, %s27
    %p38 = scmp.eq.s32.totalorder %s18, 0
    %p39 = por %p37, %p38
    %p40 = scmp.ne.s32.totalorder %s26, %s27
    %p41 = scmp.eq.s32.totalorder %s19, 1
    %p42 = por %p40, %p41
    %p44 = scmp.ne.s32.totalorder %s27, %s43
    %p45 = scmp.eq.s32.totalorder %s19, 0
    %p46 = por %p44, %p45
    %s48 = sadd.s32 %s47, 1
    %p51 = scmp.eq.s32.totalorder %s13, 1
    %p52 = scmp.ne.s32.totalorder %s47, %s49
    %p53 = scmp.eq.s32.totalorder %s13, 0
    %p54 = por %p52, %p53
    %p55 = scmp.ne.s32.totalorder %s47, %s49
    %p56 = scmp.eq.s32.totalorder %s18, 1
    %p57 = por %p55, %p56
    %p58 = scmp.ne.s32.totalorder %s49, %s50
    %p59 = scmp.eq.s32.totalorder %s18, 0
    %p60 = por %p58, %p59
    %p61 = scmp.ne.s32.totalorder %s49, %s50
    %p62 = scmp.eq.s32.totalorder %s19, 1
    %p63 = por %p61, %p62
    %p65 = scmp.ne.s32.totalorder %s50, %s64
    %p66 = scmp.eq.s32.totalorder %s19, 0
    %p67 = por %p65, %p66
    %s69 = sadd.s32 %s68, 1
    %p72 = scmp.eq.s32.totalorder %s13, 1
    %p73 = scmp.ne.s32.totalorder %s68, %s70
    %p74 = scmp.eq.s32.totalorder %s13, 0
    %p75 = por %p73, %p74
    %p76 = scmp.ne.s32.totalorder %s68, %s70
    %p77 = scmp.eq.s32.totalorder %s18, 1
    %p78 = por %p76, %p77
    %p79 = scmp.ne.s32.totalorder %s70, %s71
    %p80 = scmp.eq.s32.totalorder %s18, 0
    %p81 = por %p79, %p80
    %p82 = scmp.ne.s32.totalorder %s70, %s71
    %p83 = scmp.eq.s32.totalorder %s19, 1
    %p84 = por %p82, %p83
    %p86 = scmp.ne.s32.totalorder %s71, %s85
    %p87 = scmp.eq.s32.totalorder %s19, 0
    %p88 = por %p86, %p87
    %s90 = sadd.s32 %s89, 1
    %p93 = scmp.eq.s32.totalorder %s13, 1
    %p94 = scmp.ne.s32.totalorder %s89, %s91
    %p95 = scmp.eq.s32.totalorder %s13, 0
    %p96 = por %p94, %p95
    %p97 = scmp.ne.s32.totalorder %s89, %s91
    %p98 = scmp.eq.s32.totalorder %s18, 1
    %p99 = por %p97, %p98
    %p100 = scmp.ne.s32.totalorder %s91, %s92
    %p101 = scmp.eq.s32.totalorder %s18, 0
    %p102 = por %p100, %p101
    %p103 = scmp.ne.s32.totalorder %s91, %s92
    %p104 = scmp.eq.s32.totalorder %s19, 1
    %p105 = por %p103, %p104
    %p107 = scmp.ne.s32.totalorder %s92, %s106
    %p108 = scmp.eq.s32.totalorder %s19, 0
    %p109 = por %p107, %p108
    %s111 = sadd.s32 %s110, 1
    %p114 = scmp.eq.s32.totalorder %s13, 1
    %p115 = scmp.ne.s32.totalorder %s110, %s112
    %p116 = scmp.eq.s32.totalorder %s13, 0
    %p117 = por %p115, %p116
    %p118 = scmp.ne.s32.totalorder %s110, %s112
    %p119 = scmp.eq.s32.totalorder %s18, 1
    %p120 = por %p118, %p119
    %p121 = scmp.ne.s32.totalorder %s112, %s113
    %p122 = scmp.eq.s32.totalorder %s18, 0
    %p123 = por %p121, %p122
    %p124 = scmp.ne.s32.totalorder %s112, %s113
    %p125 = scmp.eq.s32.totalorder %s19, 1
    %p126 = por %p124, %p125
    %p128 = scmp.ne.s32.totalorder %s113, %s127
    %p129 = scmp.eq.s32.totalorder %s19, 0
    %p130 = por %p128, %p129
    %s132 = sadd.s32 %s131, 1
    %p135 = scmp.eq.s32.totalorder %s13, 1
    %p136 = scmp.ne.s32.totalorder %s131, %s133
    %p137 = scmp.eq.s32.totalorder %s13, 0
    %p138 = por %p136, %p137
    %p139 = scmp.ne.s32.totalorder %s131, %s133
    %p140 = scmp.eq.s32.totalorder %s18, 1
    %p141 = por %p139, %p140
    %p142 = scmp.ne.s32.totalorder %s133, %s134
    %p143 = scmp.eq.s32.totalorder %s18, 0
    %p144 = por %p142, %p143
    %p145 = scmp.ne.s32.totalorder %s133, %s134
    %p146 = scmp.eq.s32.totalorder %s19, 1
    %p147 = por %p145, %p146
    %p149 = scmp.ne.s32.totalorder %s134, %s148
    %p150 = scmp.eq.s32.totalorder %s19, 0
    %p151 = por %p149, %p150
    %s153 = sadd.s32 %s152, 1
    %p156 = scmp.eq.s32.totalorder %s13, 1
    %p157 = scmp.ne.s32.totalorder %s152, %s154
    %p158 = scmp.eq.s32.totalorder %s13, 0
    %p159 = por %p157, %p158
    %p160 = scmp.ne.s32.totalorder %s152, %s154
    %p161 = scmp.eq.s32.totalorder %s18, 1
    %p162 = por %p160, %p161
    %p163 = scmp.ne.s32.totalorder %s154, %s155
    %p164 = scmp.eq.s32.totalorder %s18, 0
    %p165 = por %p163, %p164
    %p166 = scmp.ne.s32.totalorder %s154, %s155
    %p167 = scmp.eq.s32.totalorder %s19, 1
    %p168 = por %p166, %p167
    %p170 = scmp.ne.s32.totalorder %s155, %s169
    %p171 = scmp.eq.s32.totalorder %s19, 0
    %p172 = por %p170, %p171
    %s173 = ssub.s32 %s13, %s20
    %p174 = scmp.eq.s32.totalorder %s173, 0
    %s176 = sadd.s32 %s175, 1
    %s177 = scalar_select %p174, %s175, %s176
    %p180 = pneg %p174
    %p181 = scmp.eq.s32.totalorder %s13, 1
    %p182 = por %p180, %p181
    %p183 = scmp.ne.s32.totalorder %s175, %s178
    %p184 = scmp.eq.s32.totalorder %s13, 0
    %p185 = por %p183, %p184
    %p186 = scmp.ne.s32.totalorder %s175, %s178
    %p187 = scmp.eq.s32.totalorder %s18, 1
    %p188 = por %p186, %p187
    %p189 = scmp.ne.s32.totalorder %s178, %s179
    %p190 = scmp.eq.s32.totalorder %s18, 0
    %p191 = por %p189, %p190
    %p192 = scmp.ne.s32.totalorder %s178, %s179
    %p193 = scmp.eq.s32.totalorder %s19, 1
    %p194 = por %p192, %p193
    %p196 = scmp.ne.s32.totalorder %s179, %s195
    %p197 = scmp.eq.s32.totalorder %s19, 0
    %p198 = por %p196, %p197
    %p199 = scmp.le.s32.totalorder 1, %s13
    %p200 = scmp.lt.s32.totalorder %s13, 3
    %p201 = pnand %p199, %p200
    %p202 = pneg %p201
    // Predicated region
    $region9: #{bottle2neck_pallas.1} parent=5 // pred_check
      _
    $region10: #{bottle2neck_pallas.1} parent=5 // pred_check_branch
      %204 = sbr.rel (%p201) target = $region12
    $region11: #{bottle2neck_pallas.1} parent=5 // pred_region
      %s205 = ssub.s32 %s13, 1
      // Predicated region
      $region13: #{bottle2neck_pallas.1} parent=11 // pred_check
        %p206 = pneg %p60
      $region14: #{bottle2neck_pallas.1} parent=11 // pred_check_branch
        %208 = sbr.rel (%p206) target = $region16
      $region15: #{bottle2neck_pallas.1} parent=11 // pred_region
        _
      $region16: #{bottle2neck_pallas.1} parent=11 // pred_fallthru
        _
      // Predicated region
      $region17: #{bottle2neck_pallas.1} parent=11 // pred_check
        %p209 = pneg %p81
      $region18: #{bottle2neck_pallas.1} parent=11 // pred_check_branch
        %211 = sbr.rel (%p209) target = $region20
      $region19: #{bottle2neck_pallas.1} parent=11 // pred_region
        _
      $region20: #{bottle2neck_pallas.1} parent=11 // pred_fallthru
        _
      // Predicated region
      $region21: #{bottle2neck_pallas.1} parent=11 // pred_check
        %p212 = pneg %p102
      $region22: #{bottle2neck_pallas.1} parent=11 // pred_check_branch
        %214 = sbr.rel (%p212) target = $region24
      $region23: #{bottle2neck_pallas.1} parent=11 // pred_region
        _
      $region24: #{bottle2neck_pallas.1} parent=11 // pred_fallthru
        _
      // Predicated region
      $region25: #{bottle2neck_pallas.1} parent=11 // pred_check
        %p215 = pneg %p123
      $region26: #{bottle2neck_pallas.1} parent=11 // pred_check_branch
        %217 = sbr.rel (%p215) target = $region28
      $region27: #{bottle2neck_pallas.1} parent=11 // pred_region
        _
      $region28: #{bottle2neck_pallas.1} parent=11 // pred_fallthru
        _
      // Predicated region
      $region29: #{bottle2neck_pallas.1} parent=11 // pred_check
        %p218 = pneg %p144
      $region30: #{bottle2neck_pallas.1} parent=11 // pred_check_branch
        %220 = sbr.rel (%p218) target = $region32
      $region31: #{bottle2neck_pallas.1} parent=11 // pred_region
        _
      $region32: #{bottle2neck_pallas.1} parent=11 // pred_fallthru
        _
      // Predicated region
      $region33: #{bottle2neck_pallas.1} parent=11 // pred_check
        %p221 = pneg %p165
      $region34: #{bottle2neck_pallas.1} parent=11 // pred_check_branch
        %223 = sbr.rel (%p221) target = $region36
      $region35: #{bottle2neck_pallas.1} parent=11 // pred_region
        _
      $region36: #{bottle2neck_pallas.1} parent=11 // pred_fallthru
        _
    $region12: #{bottle2neck_pallas.1} parent=5 // pred_fallthru
      _
    %p224 = scmp.lt.s32.totalorder %s13, 2
    // Predicated region
    $region37: #{bottle2neck_pallas.1} parent=5 // pred_check
      %p225 = pneg %p224
    $region38: #{bottle2neck_pallas.1} parent=5 // pred_check_branch
      %227 = sbr.rel (%p225) target = $region40
    $region39: #{bottle2neck_pallas.1} parent=5 // pred_region
      // Predicated region
      $region41: #{bottle2neck_pallas.1} parent=39 // pred_check
        %p228 = pneg %p33
      $region42: #{bottle2neck_pallas.1} parent=39 // pred_check_branch
        %230 = sbr.rel (%p228) target = $region44
      $region43: #{bottle2neck_pallas.1} parent=39 // pred_region
        %s231 = smul.u32 2, %s13
        %p232 = scmp.lt.s32.totalorder %s231, 3
        %s233 = scalar_select %p232, %s231, 3
        %s234 = smul.addr %s233, 4
        %s235 = smul.addr %s234, 8
        %s236 = scalar_lea.vmem %s0, %s235
        %s237 = smul.u32 2, %s13
      $region44: #{bottle2neck_pallas.1} parent=39 // pred_fallthru
        _
    $region40: #{bottle2neck_pallas.1} parent=5 // pred_fallthru
      _
    %p238 = scmp.le.s32.totalorder 1, %s13
    %p239 = scmp.lt.s32.totalorder %s13, 3
    %p240 = pnand %p238, %p239
    %p241 = pneg %p240
    // Predicated region
    $region45: #{bottle2neck_pallas.1} parent=5 // pred_check
      _
    $region46: #{bottle2neck_pallas.1} parent=5 // pred_check_branch
      %243 = sbr.rel (%p240) target = $region48
    $region47: #{bottle2neck_pallas.1} parent=5 // pred_region
      %s244 = ssub.s32 %s13, 1
      %s245 = smul.u32 2, %s18
      %p246 = scmp.lt.s32.totalorder %s245, 3
      %s247 = scalar_select %p246, %s245, 3
      %s248 = smul.addr %s247, 4
      %s249 = smul.addr %s248, 8
      %s250 = scalar_lea.vmem %s0, %s249
      %p251 = pneg %p39
      %p252 = pneg %p36
      %p253 = pneg %p60
      %p254 = pneg %p57
      %p255 = pneg %p81
      %p256 = pneg %p78
      %p257 = pneg %p102
      %p258 = pneg %p99
      %p259 = pneg %p123
      %p260 = pneg %p120
      %p261 = pneg %p144
      %p262 = pneg %p141
      %p263 = pneg %p165
      %p264 = pneg %p162
      %p265 = pneg %p191
      %p266 = pneg %p188
      %s267 = smul.u32 2, %s18
      %p268 = scmp.lt.s32.totalorder %s267, 3
      %s269 = scalar_select %p268, %s267, 3
      %s270 = smul.addr %s269, 4
      %s271 = smul.addr %s270, 8
      %s272 = scalar_lea.vmem %s7, %s271
      %s273 = smul.u32 2, %s18
      %p274 = scmp.lt.s32.totalorder %s273, 3
      %s275 = scalar_select %p274, %s273, 3
      %s276 = smul.addr %s275, 4
      %s277 = smul.addr %s276, 8
      %s278 = scalar_lea.vmem %s0, %s277
      %s279 = smul.u32 2, %s18
      %s280 = smul.u32 2, %s18
      %p281 = scmp.lt.s32.totalorder %s280, 3
      %s282 = scalar_select %p281, %s280, 3
      %s283 = smul.addr %s282, 4
      %s284 = smul.addr %s283, 8
      %s285 = scalar_lea.vmem %s7, %s284
      %s286 = smul.u32 2, %s18
      %vm287 = vcmask 785408
      %288 = vst.msk [vmem:[#allocation2] sm:$0xff] %vm287, 0.0
      %289 = vst.msk [vmem:[#allocation2 + $0x8] sm:$0xff] %vm287, 0.0
      %vm290 = vcmask 779264
      %291 = vst.msk [vmem:[#allocation2 + $0x10] sm:$0x3] %vm290, 0.0
      %v292 = vld [vmem:[%s278] sm:$0xff]
      %v293 = vld [vmem:[%s278 + $0x8] sm:$0xff]
      %v294 = vld [vmem:[%s278 + $0x10] sm:$0xff]
      %v295 = vld [vmem:[%s278 + $0x18] sm:$0xff]
      %v296 = vld [vmem:[%s278 + $0x20] sm:$0xff]
      %v297 = vld [vmem:[%s278 + $0x28] sm:$0xff]
      %v298 = vld [vmem:[%s278 + $0x30] sm:$0xff]
      %v299 = vld [vmem:[%s278 + $0x38] sm:$0xff]
      %v300 = vld [vmem:[%s1] sm:$0xff]
      %v301 = vld [vmem:[%s1 + $0x8] sm:$0xff]
      %v302 = vld [vmem:[%s1 + $0x10] sm:$0xff]
      %v303 = vld [vmem:[%s1 + $0x18] sm:$0xff]
      %v304 = vld [vmem:[%s1 + $0x20] sm:$0xff]
      %v305 = vld [vmem:[%s1 + $0x28] sm:$0xff]
      %v306 = vld [vmem:[%s1 + $0x30] sm:$0xff]
      %v307 = vld [vmem:[%s1 + $0x38] sm:$0xff]
      %v308 = vld [vmem:[%s1 + $0x40] sm:$0xff]
      %v309 = vld [vmem:[%s1 + $0x48] sm:$0xff]
      %v310 = vld [vmem:[%s1 + $0x50] sm:$0xff]
      %v311 = vld [vmem:[%s1 + $0x58] sm:$0xff]
      %v312 = vld [vmem:[%s1 + $0x60] sm:$0xff]
      %v313 = vld [vmem:[%s1 + $0x68] sm:$0xff]
      %v314 = vld [vmem:[%s1 + $0x70] sm:$0xff]
      %v315 = vld [vmem:[%s1 + $0x78] sm:$0xff]
      %v316 = vld [vmem:[%s1 + $0x80] sm:$0xff]
      %v317 = vld [vmem:[%s1 + $0x88] sm:$0xff]
      %v318 = vld [vmem:[%s1 + $0x90] sm:$0xff]
      %v319 = vld [vmem:[%s1 + $0x98] sm:$0xff]
      %v320 = vld [vmem:[%s1 + $0xa0] sm:$0xff]
      %v321 = vld [vmem:[%s1 + $0xa8] sm:$0xff]
      %v322 = vld [vmem:[%s1 + $0xb0] sm:$0xff]
      %v323 = vld [vmem:[%s1 + $0xb8] sm:$0xff]
      %v324 = vld [vmem:[%s1 + $0xc0] sm:$0xff]
      %v325 = vld [vmem:[%s1 + $0xc8] sm:$0xff]
      %v326 = vld [vmem:[%s1 + $0xd0] sm:$0xff]
      %v327 = vld [vmem:[%s1 + $0xd8] sm:$0xff]
      %v328 = vld [vmem:[%s1 + $0xe0] sm:$0xff]
      %v329 = vld [vmem:[%s1 + $0xe8] sm:$0xff]
      %v330 = vld [vmem:[%s1 + $0xf0] sm:$0xff]
      %v331 = vld [vmem:[%s1 + $0xf8] sm:$0xff]
      %v332 = vld [vmem:[%s1 + $0x100] sm:$0xff]
      %v333 = vld [vmem:[%s1 + $0x108] sm:$0xff]
      %v334 = vld [vmem:[%s1 + $0x110] sm:$0xff]
      %v335 = vld [vmem:[%s1 + $0x118] sm:$0xff]
      %v336 = vld [vmem:[%s1 + $0x120] sm:$0xff]
      %v337 = vld [vmem:[%s1 + $0x128] sm:$0xff]
      %v338 = vld [vmem:[%s1 + $0x130] sm:$0xff]
      %v339 = vld [vmem:[%s1 + $0x138] sm:$0xff]
      %v340 = vld [vmem:[%s1 + $0x140] sm:$0xff]
      %v341 = vld [vmem:[%s1 + $0x148] sm:$0xff]
      %v342 = vld [vmem:[%s1 + $0x150] sm:$0xff]
      %v343 = vld [vmem:[%s1 + $0x158] sm:$0xff]
      %v344 = vld [vmem:[%s1 + $0x160] sm:$0xff]
      %v345 = vld [vmem:[%s1 + $0x168] sm:$0xff]
      %v346 = vld [vmem:[%s1 + $0x170] sm:$0xff]
      %v347 = vld [vmem:[%s1 + $0x178] sm:$0xff]
      %v348 = vld [vmem:[%s1 + $0x180] sm:$0xff]
      %v349 = vld [vmem:[%s1 + $0x188] sm:$0xff]
      %v350 = vld [vmem:[%s1 + $0x190] sm:$0xff]
      %v351 = vld [vmem:[%s1 + $0x198] sm:$0xff]
      %v352 = vld [vmem:[%s1 + $0x1a0] sm:$0xff]
      %v353 = vld [vmem:[%s1 + $0x1a8] sm:$0xff]
      %v354 = vld [vmem:[%s1 + $0x1b0] sm:$0xff]
      %v355 = vld [vmem:[%s1 + $0x1b8] sm:$0xff]
      %v356 = vld [vmem:[%s1 + $0x1c0] sm:$0xff]
      %v357 = vld [vmem:[%s1 + $0x1c8] sm:$0xff]
      %v358 = vld [vmem:[%s1 + $0x1d0] sm:$0xff]
      %v359 = vld [vmem:[%s1 + $0x1d8] sm:$0xff]
      %v360 = vld [vmem:[%s1 + $0x1e0] sm:$0xff]
      %v361 = vld [vmem:[%s1 + $0x1e8] sm:$0xff]
      %v362 = vld [vmem:[%s1 + $0x1f0] sm:$0xff]
      %v363 = vld [vmem:[%s1 + $0x1f8] sm:$0xff]
      %v364 = vld [vmem:[%s2] sm:$0x1]
      %v366 = vlaneseq
      %v367 = vshrl.u32 %v366, 7
      %v368 = vsub.s32 0, %v367
      %v369 = vrot.slane %v364, %v368
      %371 = vmatprep.subr.mxu0 0.0
      %372 = vmatpush1.msra.mxu0 %v315
      %373 = vmatprep.subr.mxu0 0.0
      %374 = vmatpush1.msra.mxu0 %v314
      %375 = vmatprep.subr.mxu0 0.0
      %376 = vmatpush1.msra.mxu0 %v313
      %377 = vmatprep.subr.mxu0 0.0
      %378 = vmatpush1.msra.mxu0 %v312
      %379 = vmatprep.subr.mxu0 0.0
      %380 = vmatpush1.msra.mxu0 %v311
      %381 = vmatprep.subr.mxu0 0.0
      %382 = vmatpush1.msra.mxu0 %v310
      %383 = vmatprep.subr.mxu0 0.0
      %384 = vmatpush1.msra.mxu0 %v309
      %385 = vmatprep.subr.mxu0 0.0
      %386 = vmatpush1.msra.mxu0 %v308
      %387 = vmatprep.subr.mxu0 0.0
      %388 = vmatpush1.msra.mxu0 %v307
      %389 = vmatprep.subr.mxu0 0.0
      %390 = vmatpush1.msra.mxu0 %v306
      %391 = vmatprep.subr.mxu0 0.0
      %392 = vmatpush1.msra.mxu0 %v305
      %393 = vmatprep.subr.mxu0 0.0
      %394 = vmatpush1.msra.mxu0 %v304
      %395 = vmatprep.subr.mxu0 0.0
      %396 = vmatpush1.msra.mxu0 %v303
      %397 = vmatprep.subr.mxu0 0.0
      %398 = vmatpush1.msra.mxu0 %v302
      %399 = vmatprep.subr.mxu0 0.0
      %400 = vmatpush1.msra.mxu0 %v301
      %401 = vmatprep.subr.mxu0 0.0
      %402 = vmatpush1.msra.mxu0 %v300
      %403 = vmatprep.subr.mxu0 0.0
      %404 = vmatpush2.msra.mxu0 %v331
      %405 = vmatprep.subr.mxu0 0.0
      %406 = vmatpush2.msra.mxu0 %v330
      %407 = vmatprep.subr.mxu0 0.0
      %408 = vmatpush2.msra.mxu0 %v329
      %409 = vmatprep.subr.mxu0 0.0
      %410 = vmatpush2.msra.mxu0 %v328
      %411 = vmatprep.subr.mxu0 0.0
      %412 = vmatpush2.msra.mxu0 %v327
      %413 = vmatprep.subr.mxu0 0.0
      %414 = vmatpush2.msra.mxu0 %v326
      %415 = vmatprep.subr.mxu0 0.0
      %416 = vmatpush2.msra.mxu0 %v325
      %417 = vmatprep.subr.mxu0 0.0
      %418 = vmatpush2.msra.mxu0 %v324
      %419 = vmatprep.subr.mxu0 0.0
      %420 = vmatpush2.msra.mxu0 %v323
      %421 = vmatprep.subr.mxu0 0.0
      %422 = vmatpush2.msra.mxu0 %v322
      %423 = vmatprep.subr.mxu0 0.0
      %424 = vmatpush2.msra.mxu0 %v321
      %425 = vmatprep.subr.mxu0 0.0
      %426 = vmatpush2.msra.mxu0 %v320
      %427 = vmatprep.subr.mxu0 0.0
      %428 = vmatpush2.msra.mxu0 %v319
      %429 = vmatprep.subr.mxu0 0.0
      %430 = vmatpush2.msra.mxu0 %v318
      %431 = vmatprep.subr.mxu0 0.0
      %432 = vmatpush2.msra.mxu0 %v317
      %433 = vmatprep.subr.mxu0 0.0
      %434 = vmatpush2.msra.mxu0 %v316
      %435 = vmatprep.mubr.f32.mxu0 %v293
      %436 = vmatmul.mubr.f32.gmra.mxu0 %v292
      %v437 = vpop.f32.mrf.mxu0
      %v438 = vadd.f32 %v369, %v437
      %v439 = vpop.f32.mrf.mxu0
      %440 = vmatprep.mubr.f32.mxu0 %v297
      %441 = vmatmul.mubr.f32.gmra.mxu0 %v296
      %v442 = vpop.f32.mrf.mxu0
      %v443 = vadd.f32 %v369, %v442
      %v444 = vpop.f32.mrf.mxu0
      %445 = vdwg.mxu0
      %446 = vmatprep.subr.mxu0 0.0
      %447 = vmatpush1.msra.mxu0 %v347
      %448 = vmatprep.subr.mxu0 0.0
      %449 = vmatpush1.msra.mxu0 %v346
      %450 = vmatprep.subr.mxu0 0.0
      %451 = vmatpush1.msra.mxu0 %v345
      %452 = vmatprep.subr.mxu0 0.0
      %453 = vmatpush1.msra.mxu0 %v344
      %454 = vmatprep.subr.mxu0 0.0
      %455 = vmatpush1.msra.mxu0 %v343
      %456 = vmatprep.subr.mxu0 0.0
      %457 = vmatpush1.msra.mxu0 %v342
      %458 = vmatprep.subr.mxu0 0.0
      %459 = vmatpush1.msra.mxu0 %v341
      %460 = vmatprep.subr.mxu0 0.0
      %461 = vmatpush1.msra.mxu0 %v340
      %462 = vmatprep.subr.mxu0 0.0
      %463 = vmatpush1.msra.mxu0 %v339
      %464 = vmatprep.subr.mxu0 0.0
      %465 = vmatpush1.msra.mxu0 %v338
      %466 = vmatprep.subr.mxu0 0.0
      %467 = vmatpush1.msra.mxu0 %v337
      %468 = vmatprep.subr.mxu0 0.0
      %469 = vmatpush1.msra.mxu0 %v336
      %470 = vmatprep.subr.mxu0 0.0
      %471 = vmatpush1.msra.mxu0 %v335
      %472 = vmatprep.subr.mxu0 0.0
      %473 = vmatpush1.msra.mxu0 %v334
      %474 = vmatprep.subr.mxu0 0.0
      %475 = vmatpush1.msra.mxu0 %v333
      %476 = vmatprep.subr.mxu0 0.0
      %477 = vmatpush1.msra.mxu0 %v332
      %478 = vmatprep.subr.mxu0 0.0
      %479 = vmatpush2.msra.mxu0 %v363
      %480 = vmatprep.subr.mxu0 0.0
      %481 = vmatpush2.msra.mxu0 %v362
      %482 = vmatprep.subr.mxu0 0.0
      %483 = vmatpush2.msra.mxu0 %v361
      %484 = vmatprep.subr.mxu0 0.0
      %485 = vmatpush2.msra.mxu0 %v360
      %486 = vmatprep.subr.mxu0 0.0
      %487 = vmatpush2.msra.mxu0 %v359
      %488 = vmatprep.subr.mxu0 0.0
      %489 = vmatpush2.msra.mxu0 %v358
      %490 = vmatprep.subr.mxu0 0.0
      %491 = vmatpush2.msra.mxu0 %v357
      %492 = vmatprep.subr.mxu0 0.0
      %493 = vmatpush2.msra.mxu0 %v356
      %494 = vmatprep.subr.mxu0 0.0
      %495 = vmatpush2.msra.mxu0 %v355
      %496 = vmatprep.subr.mxu0 0.0
      %497 = vmatpush2.msra.mxu0 %v354
      %498 = vmatprep.subr.mxu0 0.0
      %499 = vmatpush2.msra.mxu0 %v353
      %500 = vmatprep.subr.mxu0 0.0
      %501 = vmatpush2.msra.mxu0 %v352
      %502 = vmatprep.subr.mxu0 0.0
      %503 = vmatpush2.msra.mxu0 %v351
      %504 = vmatprep.subr.mxu0 0.0
      %505 = vmatpush2.msra.mxu0 %v350
      %506 = vmatprep.subr.mxu0 0.0
      %507 = vmatpush2.msra.mxu0 %v349
      %508 = vmatprep.subr.mxu0 0.0
      %509 = vmatpush2.msra.mxu0 %v348
      %510 = vmatprep.mubr.f32.mxu0 %v295
      %511 = vmatmul.mubr.f32.gmra.mxu0 %v294
      %v512 = vpop.f32.mrf.mxu0
      %v513 = vadd.f32 %v438, %v512
      %v514 = vpop.f32.mrf.mxu0
      %515 = vmatprep.mubr.f32.mxu0 %v299
      %516 = vmatmul.mubr.f32.gmra.mxu0 %v298
      %v517 = vpop.f32.mrf.mxu0
      %v518 = vadd.f32 %v443, %v517
      %v519 = vpop.f32.mrf.mxu0
      %520 = vdwg.mxu0
      %v521 = vmax.f32 %v513, 0.0
      %v522 = vmax.f32 %v518, 0.0
      %s523 = scalar_lea.vmem %s1, 512
      %v524 = vld [vmem:[%s523] sm:$0xff]
      %v525 = vld [vmem:[%s523 + $0x8] sm:$0xff]
      %v526 = vld [vmem:[%s523 + $0x10] sm:$0xff]
      %v527 = vld [vmem:[%s523 + $0x18] sm:$0xff]
      %v528 = vld [vmem:[%s523 + $0x20] sm:$0xff]
      %v529 = vld [vmem:[%s523 + $0x28] sm:$0xff]
      %v530 = vld [vmem:[%s523 + $0x30] sm:$0xff]
      %v531 = vld [vmem:[%s523 + $0x38] sm:$0xff]
      %v532 = vld [vmem:[%s523 + $0x40] sm:$0xff]
      %v533 = vld [vmem:[%s523 + $0x48] sm:$0xff]
      %v534 = vld [vmem:[%s523 + $0x50] sm:$0xff]
      %v535 = vld [vmem:[%s523 + $0x58] sm:$0xff]
      %v536 = vld [vmem:[%s523 + $0x60] sm:$0xff]
      %v537 = vld [vmem:[%s523 + $0x68] sm:$0xff]
      %v538 = vld [vmem:[%s523 + $0x70] sm:$0xff]
      %v539 = vld [vmem:[%s523 + $0x78] sm:$0xff]
      %v540 = vld [vmem:[%s523 + $0x80] sm:$0xff]
      %v541 = vld [vmem:[%s523 + $0x88] sm:$0xff]
      %v542 = vld [vmem:[%s523 + $0x90] sm:$0xff]
      %v543 = vld [vmem:[%s523 + $0x98] sm:$0xff]
      %v544 = vld [vmem:[%s523 + $0xa0] sm:$0xff]
      %v545 = vld [vmem:[%s523 + $0xa8] sm:$0xff]
      %v546 = vld [vmem:[%s523 + $0xb0] sm:$0xff]
      %v547 = vld [vmem:[%s523 + $0xb8] sm:$0xff]
      %v548 = vld [vmem:[%s523 + $0xc0] sm:$0xff]
      %v549 = vld [vmem:[%s523 + $0xc8] sm:$0xff]
      %v550 = vld [vmem:[%s523 + $0xd0] sm:$0xff]
      %v551 = vld [vmem:[%s523 + $0xd8] sm:$0xff]
      %v552 = vld [vmem:[%s523 + $0xe0] sm:$0xff]
      %v553 = vld [vmem:[%s523 + $0xe8] sm:$0xff]
      %v554 = vld [vmem:[%s523 + $0xf0] sm:$0xff]
      %v555 = vld [vmem:[%s523 + $0xf8] sm:$0xff]
      %v556 = vld [vmem:[%s523 + $0x100] sm:$0xff]
      %v557 = vld [vmem:[%s523 + $0x108] sm:$0xff]
      %v558 = vld [vmem:[%s523 + $0x110] sm:$0xff]
      %v559 = vld [vmem:[%s523 + $0x118] sm:$0xff]
      %v560 = vld [vmem:[%s523 + $0x120] sm:$0xff]
      %v561 = vld [vmem:[%s523 + $0x128] sm:$0xff]
      %v562 = vld [vmem:[%s523 + $0x130] sm:$0xff]
      %v563 = vld [vmem:[%s523 + $0x138] sm:$0xff]
      %v564 = vld [vmem:[%s523 + $0x140] sm:$0xff]
      %v565 = vld [vmem:[%s523 + $0x148] sm:$0xff]
      %v566 = vld [vmem:[%s523 + $0x150] sm:$0xff]
      %v567 = vld [vmem:[%s523 + $0x158] sm:$0xff]
      %v568 = vld [vmem:[%s523 + $0x160] sm:$0xff]
      %v569 = vld [vmem:[%s523 + $0x168] sm:$0xff]
      %v570 = vld [vmem:[%s523 + $0x170] sm:$0xff]
      %v571 = vld [vmem:[%s523 + $0x178] sm:$0xff]
      %v572 = vld [vmem:[%s523 + $0x180] sm:$0xff]
      %v573 = vld [vmem:[%s523 + $0x188] sm:$0xff]
      %v574 = vld [vmem:[%s523 + $0x190] sm:$0xff]
      %v575 = vld [vmem:[%s523 + $0x198] sm:$0xff]
      %v576 = vld [vmem:[%s523 + $0x1a0] sm:$0xff]
      %v577 = vld [vmem:[%s523 + $0x1a8] sm:$0xff]
      %v578 = vld [vmem:[%s523 + $0x1b0] sm:$0xff]
      %v579 = vld [vmem:[%s523 + $0x1b8] sm:$0xff]
      %v580 = vld [vmem:[%s523 + $0x1c0] sm:$0xff]
      %v581 = vld [vmem:[%s523 + $0x1c8] sm:$0xff]
      %v582 = vld [vmem:[%s523 + $0x1d0] sm:$0xff]
      %v583 = vld [vmem:[%s523 + $0x1d8] sm:$0xff]
      %v584 = vld [vmem:[%s523 + $0x1e0] sm:$0xff]
      %v585 = vld [vmem:[%s523 + $0x1e8] sm:$0xff]
      %v586 = vld [vmem:[%s523 + $0x1f0] sm:$0xff]
      %v587 = vld [vmem:[%s523 + $0x1f8] sm:$0xff]
      %s588 = scalar_lea.vmem %s2, 1
      %v589 = vld [vmem:[%s588] sm:$0x1]
      %v591 = vlaneseq
      %v592 = vshrl.u32 %v591, 7
      %v593 = vsub.s32 0, %v592
      %v594 = vrot.slane %v589, %v593
      %596 = vmatprep.subr.mxu0 0.0
      %597 = vmatpush1.msra.mxu0 %v539
      %598 = vmatprep.subr.mxu0 0.0
      %599 = vmatpush1.msra.mxu0 %v538
      %600 = vmatprep.subr.mxu0 0.0
      %601 = vmatpush1.msra.mxu0 %v537
      %602 = vmatprep.subr.mxu0 0.0
      %603 = vmatpush1.msra.mxu0 %v536
      %604 = vmatprep.subr.mxu0 0.0
      %605 = vmatpush1.msra.mxu0 %v535
      %606 = vmatprep.subr.mxu0 0.0
      %607 = vmatpush1.msra.mxu0 %v534
      %608 = vmatprep.subr.mxu0 0.0
      %609 = vmatpush1.msra.mxu0 %v533
      %610 = vmatprep.subr.mxu0 0.0
      %611 = vmatpush1.msra.mxu0 %v532
      %612 = vmatprep.subr.mxu0 0.0
      %613 = vmatpush1.msra.mxu0 %v531
      %614 = vmatprep.subr.mxu0 0.0
      %615 = vmatpush1.msra.mxu0 %v530
      %616 = vmatprep.subr.mxu0 0.0
      %617 = vmatpush1.msra.mxu0 %v529
      %618 = vmatprep.subr.mxu0 0.0
      %619 = vmatpush1.msra.mxu0 %v528
      %620 = vmatprep.subr.mxu0 0.0
      %621 = vmatpush1.msra.mxu0 %v527
      %622 = vmatprep.subr.mxu0 0.0
      %623 = vmatpush1.msra.mxu0 %v526
      %624 = vmatprep.subr.mxu0 0.0
      %625 = vmatpush1.msra.mxu0 %v525
      %626 = vmatprep.subr.mxu0 0.0
      %627 = vmatpush1.msra.mxu0 %v524
      %628 = vmatprep.subr.mxu0 0.0
      %629 = vmatpush2.msra.mxu0 %v555
      %630 = vmatprep.subr.mxu0 0.0
      %631 = vmatpush2.msra.mxu0 %v554
      %632 = vmatprep.subr.mxu0 0.0
      %633 = vmatpush2.msra.mxu0 %v553
      %634 = vmatprep.subr.mxu0 0.0
      %635 = vmatpush2.msra.mxu0 %v552
      %636 = vmatprep.subr.mxu0 0.0
      %637 = vmatpush2.msra.mxu0 %v551
      %638 = vmatprep.subr.mxu0 0.0
      %639 = vmatpush2.msra.mxu0 %v550
      %640 = vmatprep.subr.mxu0 0.0
      %641 = vmatpush2.msra.mxu0 %v549
      %642 = vmatprep.subr.mxu0 0.0
      %643 = vmatpush2.msra.mxu0 %v548
      %644 = vmatprep.subr.mxu0 0.0
      %645 = vmatpush2.msra.mxu0 %v547
      %646 = vmatprep.subr.mxu0 0.0
      %647 = vmatpush2.msra.mxu0 %v546
      %648 = vmatprep.subr.mxu0 0.0
      %649 = vmatpush2.msra.mxu0 %v545
      %650 = vmatprep.subr.mxu0 0.0
      %651 = vmatpush2.msra.mxu0 %v544
      %652 = vmatprep.subr.mxu0 0.0
      %653 = vmatpush2.msra.mxu0 %v543
      %654 = vmatprep.subr.mxu0 0.0
      %655 = vmatpush2.msra.mxu0 %v542
      %656 = vmatprep.subr.mxu0 0.0
      %657 = vmatpush2.msra.mxu0 %v541
      %658 = vmatprep.subr.mxu0 0.0
      %659 = vmatpush2.msra.mxu0 %v540
      %660 = vmatprep.mubr.f32.mxu0 %v293
      %661 = vmatmul.mubr.f32.gmra.mxu0 %v292
      %v662 = vpop.f32.mrf.mxu0
      %v663 = vadd.f32 %v594, %v662
      %v664 = vpop.f32.mrf.mxu0
      %665 = vmatprep.mubr.f32.mxu0 %v297
      %666 = vmatmul.mubr.f32.gmra.mxu0 %v296
      %v667 = vpop.f32.mrf.mxu0
      %v668 = vadd.f32 %v594, %v667
      %v669 = vpop.f32.mrf.mxu0
      %670 = vdwg.mxu0
      %671 = vmatprep.subr.mxu0 0.0
      %672 = vmatpush1.msra.mxu0 %v571
      %673 = vmatprep.subr.mxu0 0.0
      %674 = vmatpush1.msra.mxu0 %v570
      %675 = vmatprep.subr.mxu0 0.0
      %676 = vmatpush1.msra.mxu0 %v569
      %677 = vmatprep.subr.mxu0 0.0
      %678 = vmatpush1.msra.mxu0 %v568
      %679 = vmatprep.subr.mxu0 0.0
      %680 = vmatpush1.msra.mxu0 %v567
      %681 = vmatprep.subr.mxu0 0.0
      %682 = vmatpush1.msra.mxu0 %v566
      %683 = vmatprep.subr.mxu0 0.0
      %684 = vmatpush1.msra.mxu0 %v565
      %685 = vmatprep.subr.mxu0 0.0
      %686 = vmatpush1.msra.mxu0 %v564
      %687 = vmatprep.subr.mxu0 0.0
      %688 = vmatpush1.msra.mxu0 %v563
      %689 = vmatprep.subr.mxu0 0.0
      %690 = vmatpush1.msra.mxu0 %v562
      %691 = vmatprep.subr.mxu0 0.0
      %692 = vmatpush1.msra.mxu0 %v561
      %693 = vmatprep.subr.mxu0 0.0
      %694 = vmatpush1.msra.mxu0 %v560
      %695 = vmatprep.subr.mxu0 0.0
      %696 = vmatpush1.msra.mxu0 %v559
      %697 = vmatprep.subr.mxu0 0.0
      %698 = vmatpush1.msra.mxu0 %v558
      %699 = vmatprep.subr.mxu0 0.0
      %700 = vmatpush1.msra.mxu0 %v557
      %701 = vmatprep.subr.mxu0 0.0
      %702 = vmatpush1.msra.mxu0 %v556
      %703 = vmatprep.subr.mxu0 0.0
      %704 = vmatpush2.msra.mxu0 %v587
      %705 = vmatprep.subr.mxu0 0.0
      %706 = vmatpush2.msra.mxu0 %v586
      %707 = vmatprep.subr.mxu0 0.0
      %708 = vmatpush2.msra.mxu0 %v585
      %709 = vmatprep.subr.mxu0 0.0
      %710 = vmatpush2.msra.mxu0 %v584
      %711 = vmatprep.subr.mxu0 0.0
      %712 = vmatpush2.msra.mxu0 %v583
      %713 = vmatprep.subr.mxu0 0.0
      %714 = vmatpush2.msra.mxu0 %v582
      %715 = vmatprep.subr.mxu0 0.0
      %716 = vmatpush2.msra.mxu0 %v581
      %717 = vmatprep.subr.mxu0 0.0
      %718 = vmatpush2.msra.mxu0 %v580
      %719 = vmatprep.subr.mxu0 0.0
      %720 = vmatpush2.msra.mxu0 %v579
      %721 = vmatprep.subr.mxu0 0.0
      %722 = vmatpush2.msra.mxu0 %v578
      %723 = vmatprep.subr.mxu0 0.0
      %724 = vmatpush2.msra.mxu0 %v577
      %725 = vmatprep.subr.mxu0 0.0
      %726 = vmatpush2.msra.mxu0 %v576
      %727 = vmatprep.subr.mxu0 0.0
      %728 = vmatpush2.msra.mxu0 %v575
      %729 = vmatprep.subr.mxu0 0.0
      %730 = vmatpush2.msra.mxu0 %v574
      %731 = vmatprep.subr.mxu0 0.0
      %732 = vmatpush2.msra.mxu0 %v573
      %733 = vmatprep.subr.mxu0 0.0
      %734 = vmatpush2.msra.mxu0 %v572
      %735 = vmatprep.mubr.f32.mxu0 %v295
      %736 = vmatmul.mubr.f32.gmra.mxu0 %v294
      %v737 = vpop.f32.mrf.mxu0
      %v738 = vadd.f32 %v663, %v737
      %v739 = vpop.f32.mrf.mxu0
      %740 = vmatprep.mubr.f32.mxu0 %v299
      %741 = vmatmul.mubr.f32.gmra.mxu0 %v298
      %v742 = vpop.f32.mrf.mxu0
      %v743 = vadd.f32 %v668, %v742
      %v744 = vpop.f32.mrf.mxu0
      %745 = vdwg.mxu0
      %v746 = vmax.f32 %v738, 0.0
      %v747 = vmax.f32 %v743, 0.0
      %s748 = scalar_lea.vmem %s1, 1024
      %v749 = vld [vmem:[%s748] sm:$0xff]
      %v750 = vld [vmem:[%s748 + $0x8] sm:$0xff]
      %v751 = vld [vmem:[%s748 + $0x10] sm:$0xff]
      %v752 = vld [vmem:[%s748 + $0x18] sm:$0xff]
      %v753 = vld [vmem:[%s748 + $0x20] sm:$0xff]
      %v754 = vld [vmem:[%s748 + $0x28] sm:$0xff]
      %v755 = vld [vmem:[%s748 + $0x30] sm:$0xff]
      %v756 = vld [vmem:[%s748 + $0x38] sm:$0xff]
      %v757 = vld [vmem:[%s748 + $0x40] sm:$0xff]
      %v758 = vld [vmem:[%s748 + $0x48] sm:$0xff]
      %v759 = vld [vmem:[%s748 + $0x50] sm:$0xff]
      %v760 = vld [vmem:[%s748 + $0x58] sm:$0xff]
      %v761 = vld [vmem:[%s748 + $0x60] sm:$0xff]
      %v762 = vld [vmem:[%s748 + $0x68] sm:$0xff]
      %v763 = vld [vmem:[%s748 + $0x70] sm:$0xff]
      %v764 = vld [vmem:[%s748 + $0x78] sm:$0xff]
      %v765 = vld [vmem:[%s748 + $0x80] sm:$0xff]
      %v766 = vld [vmem:[%s748 + $0x88] sm:$0xff]
      %v767 = vld [vmem:[%s748 + $0x90] sm:$0xff]
      %v768 = vld [vmem:[%s748 + $0x98] sm:$0xff]
      %v769 = vld [vmem:[%s748 + $0xa0] sm:$0xff]
      %v770 = vld [vmem:[%s748 + $0xa8] sm:$0xff]
      %v771 = vld [vmem:[%s748 + $0xb0] sm:$0xff]
      %v772 = vld [vmem:[%s748 + $0xb8] sm:$0xff]
      %v773 = vld [vmem:[%s748 + $0xc0] sm:$0xff]
      %v774 = vld [vmem:[%s748 + $0xc8] sm:$0xff]
      %v775 = vld [vmem:[%s748 + $0xd0] sm:$0xff]
      %v776 = vld [vmem:[%s748 + $0xd8] sm:$0xff]
      %v777 = vld [vmem:[%s748 + $0xe0] sm:$0xff]
      %v778 = vld [vmem:[%s748 + $0xe8] sm:$0xff]
      %v779 = vld [vmem:[%s748 + $0xf0] sm:$0xff]
      %v780 = vld [vmem:[%s748 + $0xf8] sm:$0xff]
      %v781 = vld [vmem:[%s748 + $0x100] sm:$0xff]
      %v782 = vld [vmem:[%s748 + $0x108] sm:$0xff]
      %v783 = vld [vmem:[%s748 + $0x110] sm:$0xff]
      %v784 = vld [vmem:[%s748 + $0x118] sm:$0xff]
      %v785 = vld [vmem:[%s748 + $0x120] sm:$0xff]
      %v786 = vld [vmem:[%s748 + $0x128] sm:$0xff]
      %v787 = vld [vmem:[%s748 + $0x130] sm:$0xff]
      %v788 = vld [vmem:[%s748 + $0x138] sm:$0xff]
      %v789 = vld [vmem:[%s748 + $0x140] sm:$0xff]
      %v790 = vld [vmem:[%s748 + $0x148] sm:$0xff]
      %v791 = vld [vmem:[%s748 + $0x150] sm:$0xff]
      %v792 = vld [vmem:[%s748 + $0x158] sm:$0xff]
      %v793 = vld [vmem:[%s748 + $0x160] sm:$0xff]
      %v794 = vld [vmem:[%s748 + $0x168] sm:$0xff]
      %v795 = vld [vmem:[%s748 + $0x170] sm:$0xff]
      %v796 = vld [vmem:[%s748 + $0x178] sm:$0xff]
      %v797 = vld [vmem:[%s748 + $0x180] sm:$0xff]
      %v798 = vld [vmem:[%s748 + $0x188] sm:$0xff]
      %v799 = vld [vmem:[%s748 + $0x190] sm:$0xff]
      %v800 = vld [vmem:[%s748 + $0x198] sm:$0xff]
      %v801 = vld [vmem:[%s748 + $0x1a0] sm:$0xff]
      %v802 = vld [vmem:[%s748 + $0x1a8] sm:$0xff]
      %v803 = vld [vmem:[%s748 + $0x1b0] sm:$0xff]
      %v804 = vld [vmem:[%s748 + $0x1b8] sm:$0xff]
      %v805 = vld [vmem:[%s748 + $0x1c0] sm:$0xff]
      %v806 = vld [vmem:[%s748 + $0x1c8] sm:$0xff]
      %v807 = vld [vmem:[%s748 + $0x1d0] sm:$0xff]
      %v808 = vld [vmem:[%s748 + $0x1d8] sm:$0xff]
      %v809 = vld [vmem:[%s748 + $0x1e0] sm:$0xff]
      %v810 = vld [vmem:[%s748 + $0x1e8] sm:$0xff]
      %v811 = vld [vmem:[%s748 + $0x1f0] sm:$0xff]
      %v812 = vld [vmem:[%s748 + $0x1f8] sm:$0xff]
      %s813 = scalar_lea.vmem %s2, 2
      %v814 = vld [vmem:[%s813] sm:$0x1]
      %v816 = vlaneseq
      %v817 = vshrl.u32 %v816, 7
      %v818 = vsub.s32 0, %v817
      %v819 = vrot.slane %v814, %v818
      %821 = vmatprep.subr.mxu0 0.0
      %822 = vmatpush1.msra.mxu0 %v764
      %823 = vmatprep.subr.mxu0 0.0
      %824 = vmatpush1.msra.mxu0 %v763
      %825 = vmatprep.subr.mxu0 0.0
      %826 = vmatpush1.msra.mxu0 %v762
      %827 = vmatprep.subr.mxu0 0.0
      %828 = vmatpush1.msra.mxu0 %v761
      %829 = vmatprep.subr.mxu0 0.0
      %830 = vmatpush1.msra.mxu0 %v760
      %831 = vmatprep.subr.mxu0 0.0
      %832 = vmatpush1.msra.mxu0 %v759
      %833 = vmatprep.subr.mxu0 0.0
      %834 = vmatpush1.msra.mxu0 %v758
      %835 = vmatprep.subr.mxu0 0.0
      %836 = vmatpush1.msra.mxu0 %v757
      %837 = vmatprep.subr.mxu0 0.0
      %838 = vmatpush1.msra.mxu0 %v756
      %839 = vmatprep.subr.mxu0 0.0
      %840 = vmatpush1.msra.mxu0 %v755
      %841 = vmatprep.subr.mxu0 0.0
      %842 = vmatpush1.msra.mxu0 %v754
      %843 = vmatprep.subr.mxu0 0.0
      %844 = vmatpush1.msra.mxu0 %v753
      %845 = vmatprep.subr.mxu0 0.0
      %846 = vmatpush1.msra.mxu0 %v752
      %847 = vmatprep.subr.mxu0 0.0
      %848 = vmatpush1.msra.mxu0 %v751
      %849 = vmatprep.subr.mxu0 0.0
      %850 = vmatpush1.msra.mxu0 %v750
      %851 = vmatprep.subr.mxu0 0.0
      %852 = vmatpush1.msra.mxu0 %v749
      %853 = vmatprep.subr.mxu0 0.0
      %854 = vmatpush2.msra.mxu0 %v780
      %855 = vmatprep.subr.mxu0 0.0
      %856 = vmatpush2.msra.mxu0 %v779
      %857 = vmatprep.subr.mxu0 0.0
      %858 = vmatpush2.msra.mxu0 %v778
      %859 = vmatprep.subr.mxu0 0.0
      %860 = vmatpush2.msra.mxu0 %v777
      %861 = vmatprep.subr.mxu0 0.0
      %862 = vmatpush2.msra.mxu0 %v776
      %863 = vmatprep.subr.mxu0 0.0
      %864 = vmatpush2.msra.mxu0 %v775
      %865 = vmatprep.subr.mxu0 0.0
      %866 = vmatpush2.msra.mxu0 %v774
      %867 = vmatprep.subr.mxu0 0.0
      %868 = vmatpush2.msra.mxu0 %v773
      %869 = vmatprep.subr.mxu0 0.0
      %870 = vmatpush2.msra.mxu0 %v772
      %871 = vmatprep.subr.mxu0 0.0
      %872 = vmatpush2.msra.mxu0 %v771
      %873 = vmatprep.subr.mxu0 0.0
      %874 = vmatpush2.msra.mxu0 %v770
      %875 = vmatprep.subr.mxu0 0.0
      %876 = vmatpush2.msra.mxu0 %v769
      %877 = vmatprep.subr.mxu0 0.0
      %878 = vmatpush2.msra.mxu0 %v768
      %879 = vmatprep.subr.mxu0 0.0
      %880 = vmatpush2.msra.mxu0 %v767
      %881 = vmatprep.subr.mxu0 0.0
      %882 = vmatpush2.msra.mxu0 %v766
      %883 = vmatprep.subr.mxu0 0.0
      %884 = vmatpush2.msra.mxu0 %v765
      %885 = vmatprep.mubr.f32.mxu0 %v293
      %886 = vmatmul.mubr.f32.gmra.mxu0 %v292
      %v887 = vpop.f32.mrf.mxu0
      %v888 = vadd.f32 %v819, %v887
      %v889 = vpop.f32.mrf.mxu0
      %890 = vmatprep.mubr.f32.mxu0 %v297
      %891 = vmatmul.mubr.f32.gmra.mxu0 %v296
      %v892 = vpop.f32.mrf.mxu0
      %v893 = vadd.f32 %v819, %v892
      %v894 = vpop.f32.mrf.mxu0
      %895 = vdwg.mxu0
      %896 = vmatprep.subr.mxu0 0.0
      %897 = vmatpush1.msra.mxu0 %v796
      %898 = vmatprep.subr.mxu0 0.0
      %899 = vmatpush1.msra.mxu0 %v795
      %900 = vmatprep.subr.mxu0 0.0
      %901 = vmatpush1.msra.mxu0 %v794
      %902 = vmatprep.subr.mxu0 0.0
      %903 = vmatpush1.msra.mxu0 %v793
      %904 = vmatprep.subr.mxu0 0.0
      %905 = vmatpush1.msra.mxu0 %v792
      %906 = vmatprep.subr.mxu0 0.0
      %907 = vmatpush1.msra.mxu0 %v791
      %908 = vmatprep.subr.mxu0 0.0
      %909 = vmatpush1.msra.mxu0 %v790
      %910 = vmatprep.subr.mxu0 0.0
      %911 = vmatpush1.msra.mxu0 %v789
      %912 = vmatprep.subr.mxu0 0.0
      %913 = vmatpush1.msra.mxu0 %v788
      %914 = vmatprep.subr.mxu0 0.0
      %915 = vmatpush1.msra.mxu0 %v787
      %916 = vmatprep.subr.mxu0 0.0
      %917 = vmatpush1.msra.mxu0 %v786
      %918 = vmatprep.subr.mxu0 0.0
      %919 = vmatpush1.msra.mxu0 %v785
      %920 = vmatprep.subr.mxu0 0.0
      %921 = vmatpush1.msra.mxu0 %v784
      %922 = vmatprep.subr.mxu0 0.0
      %923 = vmatpush1.msra.mxu0 %v783
      %924 = vmatprep.subr.mxu0 0.0
      %925 = vmatpush1.msra.mxu0 %v782
      %926 = vmatprep.subr.mxu0 0.0
      %927 = vmatpush1.msra.mxu0 %v781
      %928 = vmatprep.subr.mxu0 0.0
      %929 = vmatpush2.msra.mxu0 %v812
      %930 = vmatprep.subr.mxu0 0.0
      %931 = vmatpush2.msra.mxu0 %v811
      %932 = vmatprep.subr.mxu0 0.0
      %933 = vmatpush2.msra.mxu0 %v810
      %934 = vmatprep.subr.mxu0 0.0
      %935 = vmatpush2.msra.mxu0 %v809
      %936 = vmatprep.subr.mxu0 0.0
      %937 = vmatpush2.msra.mxu0 %v808
      %938 = vmatprep.subr.mxu0 0.0
      %939 = vmatpush2.msra.mxu0 %v807
      %940 = vmatprep.subr.mxu0 0.0
      %941 = vmatpush2.msra.mxu0 %v806
      %942 = vmatprep.subr.mxu0 0.0
      %943 = vmatpush2.msra.mxu0 %v805
      %944 = vmatprep.subr.mxu0 0.0
      %945 = vmatpush2.msra.mxu0 %v804
      %946 = vmatprep.subr.mxu0 0.0
      %947 = vmatpush2.msra.mxu0 %v803
      %948 = vmatprep.subr.mxu0 0.0
      %949 = vmatpush2.msra.mxu0 %v802
      %950 = vmatprep.subr.mxu0 0.0
      %951 = vmatpush2.msra.mxu0 %v801
      %952 = vmatprep.subr.mxu0 0.0
      %953 = vmatpush2.msra.mxu0 %v800
      %954 = vmatprep.subr.mxu0 0.0
      %955 = vmatpush2.msra.mxu0 %v799
      %956 = vmatprep.subr.mxu0 0.0
      %957 = vmatpush2.msra.mxu0 %v798
      %958 = vmatprep.subr.mxu0 0.0
      %959 = vmatpush2.msra.mxu0 %v797
      %960 = vmatprep.mubr.f32.mxu0 %v295
      %961 = vmatmul.mubr.f32.gmra.mxu0 %v294
      %v962 = vpop.f32.mrf.mxu0
      %v963 = vadd.f32 %v888, %v962
      %v964 = vpop.f32.mrf.mxu0
      %965 = vmatprep.mubr.f32.mxu0 %v299
      %966 = vmatmul.mubr.f32.gmra.mxu0 %v298
      %v967 = vpop.f32.mrf.mxu0
      %v968 = vadd.f32 %v893, %v967
      %v969 = vpop.f32.mrf.mxu0
      %970 = vdwg.mxu0
      %v971 = vmax.f32 %v963, 0.0
      %v972 = vmax.f32 %v968, 0.0
      %s973 = scalar_lea.vmem %s1, 1536
      %v974 = vld [vmem:[%s973] sm:$0xff]
      %v975 = vld [vmem:[%s973 + $0x8] sm:$0xff]
      %v976 = vld [vmem:[%s973 + $0x10] sm:$0xff]
      %v977 = vld [vmem:[%s973 + $0x18] sm:$0xff]
      %v978 = vld [vmem:[%s973 + $0x20] sm:$0xff]
      %v979 = vld [vmem:[%s973 + $0x28] sm:$0xff]
      %v980 = vld [vmem:[%s973 + $0x30] sm:$0xff]
      %v981 = vld [vmem:[%s973 + $0x38] sm:$0xff]
      %v982 = vld [vmem:[%s973 + $0x40] sm:$0xff]
      %v983 = vld [vmem:[%s973 + $0x48] sm:$0xff]
      %v984 = vld [vmem:[%s973 + $0x50] sm:$0xff]
      %v985 = vld [vmem:[%s973 + $0x58] sm:$0xff]
      %v986 = vld [vmem:[%s973 + $0x60] sm:$0xff]
      %v987 = vld [vmem:[%s973 + $0x68] sm:$0xff]
      %v988 = vld [vmem:[%s973 + $0x70] sm:$0xff]
      %v989 = vld [vmem:[%s973 + $0x78] sm:$0xff]
      %v990 = vld [vmem:[%s973 + $0x80] sm:$0xff]
      %v991 = vld [vmem:[%s973 + $0x88] sm:$0xff]
      %v992 = vld [vmem:[%s973 + $0x90] sm:$0xff]
      %v993 = vld [vmem:[%s973 + $0x98] sm:$0xff]
      %v994 = vld [vmem:[%s973 + $0xa0] sm:$0xff]
      %v995 = vld [vmem:[%s973 + $0xa8] sm:$0xff]
      %v996 = vld [vmem:[%s973 + $0xb0] sm:$0xff]
      %v997 = vld [vmem:[%s973 + $0xb8] sm:$0xff]
      %v998 = vld [vmem:[%s973 + $0xc0] sm:$0xff]
      %v999 = vld [vmem:[%s973 + $0xc8] sm:$0xff]
      %v1000 = vld [vmem:[%s973 + $0xd0] sm:$0xff]
      %v1001 = vld [vmem:[%s973 + $0xd8] sm:$0xff]
      %v1002 = vld [vmem:[%s973 + $0xe0] sm:$0xff]
      %v1003 = vld [vmem:[%s973 + $0xe8] sm:$0xff]
      %v1004 = vld [vmem:[%s973 + $0xf0] sm:$0xff]
      %v1005 = vld [vmem:[%s973 + $0xf8] sm:$0xff]
      %v1006 = vld [vmem:[%s973 + $0x100] sm:$0xff]
      %v1007 = vld [vmem:[%s973 + $0x108] sm:$0xff]
      %v1008 = vld [vmem:[%s973 + $0x110] sm:$0xff]
      %v1009 = vld [vmem:[%s973 + $0x118] sm:$0xff]
      %v1010 = vld [vmem:[%s973 + $0x120] sm:$0xff]
      %v1011 = vld [vmem:[%s973 + $0x128] sm:$0xff]
      %v1012 = vld [vmem:[%s973 + $0x130] sm:$0xff]
      %v1013 = vld [vmem:[%s973 + $0x138] sm:$0xff]
      %v1014 = vld [vmem:[%s973 + $0x140] sm:$0xff]
      %v1015 = vld [vmem:[%s973 + $0x148] sm:$0xff]
      %v1016 = vld [vmem:[%s973 + $0x150] sm:$0xff]
      %v1017 = vld [vmem:[%s973 + $0x158] sm:$0xff]
      %v1018 = vld [vmem:[%s973 + $0x160] sm:$0xff]
      %v1019 = vld [vmem:[%s973 + $0x168] sm:$0xff]
      %v1020 = vld [vmem:[%s973 + $0x170] sm:$0xff]
      %v1021 = vld [vmem:[%s973 + $0x178] sm:$0xff]
      %v1022 = vld [vmem:[%s973 + $0x180] sm:$0xff]
      %v1023 = vld [vmem:[%s973 + $0x188] sm:$0xff]
      %v1024 = vld [vmem:[%s973 + $0x190] sm:$0xff]
      %v1025 = vld [vmem:[%s973 + $0x198] sm:$0xff]
      %v1026 = vld [vmem:[%s973 + $0x1a0] sm:$0xff]
      %v1027 = vld [vmem:[%s973 + $0x1a8] sm:$0xff]
      %v1028 = vld [vmem:[%s973 + $0x1b0] sm:$0xff]
      %v1029 = vld [vmem:[%s973 + $0x1b8] sm:$0xff]
      %v1030 = vld [vmem:[%s973 + $0x1c0] sm:$0xff]
      %v1031 = vld [vmem:[%s973 + $0x1c8] sm:$0xff]
      %v1032 = vld [vmem:[%s973 + $0x1d0] sm:$0xff]
      %v1033 = vld [vmem:[%s973 + $0x1d8] sm:$0xff]
      %v1034 = vld [vmem:[%s973 + $0x1e0] sm:$0xff]
      %v1035 = vld [vmem:[%s973 + $0x1e8] sm:$0xff]
      %v1036 = vld [vmem:[%s973 + $0x1f0] sm:$0xff]
      %v1037 = vld [vmem:[%s973 + $0x1f8] sm:$0xff]
      %s1038 = scalar_lea.vmem %s2, 3
      %v1039 = vld [vmem:[%s1038] sm:$0x1]
      %v1041 = vlaneseq
      %v1042 = vshrl.u32 %v1041, 7
      %v1043 = vsub.s32 0, %v1042
      %v1044 = vrot.slane %v1039, %v1043
      %1046 = vmatprep.subr.mxu0 0.0
      %1047 = vmatpush1.msra.mxu0 %v989
      %1048 = vmatprep.subr.mxu0 0.0
      %1049 = vmatpush1.msra.mxu0 %v988
      %1050 = vmatprep.subr.mxu0 0.0
      %1051 = vmatpush1.msra.mxu0 %v987
      %1052 = vmatprep.subr.mxu0 0.0
      %1053 = vmatpush1.msra.mxu0 %v986
      %1054 = vmatprep.subr.mxu0 0.0
      %1055 = vmatpush1.msra.mxu0 %v985
      %1056 = vmatprep.subr.mxu0 0.0
      %1057 = vmatpush1.msra.mxu0 %v984
      %1058 = vmatprep.subr.mxu0 0.0
      %1059 = vmatpush1.msra.mxu0 %v983
      %1060 = vmatprep.subr.mxu0 0.0
      %1061 = vmatpush1.msra.mxu0 %v982
      %1062 = vmatprep.subr.mxu0 0.0
      %1063 = vmatpush1.msra.mxu0 %v981
      %1064 = vmatprep.subr.mxu0 0.0
      %1065 = vmatpush1.msra.mxu0 %v980
      %1066 = vmatprep.subr.mxu0 0.0
      %1067 = vmatpush1.msra.mxu0 %v979
      %1068 = vmatprep.subr.mxu0 0.0
      %1069 = vmatpush1.msra.mxu0 %v978
      %1070 = vmatprep.subr.mxu0 0.0
      %1071 = vmatpush1.msra.mxu0 %v977
      %1072 = vmatprep.subr.mxu0 0.0
      %1073 = vmatpush1.msra.mxu0 %v976
      %1074 = vmatprep.subr.mxu0 0.0
      %1075 = vmatpush1.msra.mxu0 %v975
      %1076 = vmatprep.subr.mxu0 0.0
      %1077 = vmatpush1.msra.mxu0 %v974
      %1078 = vmatprep.subr.mxu0 0.0
      %1079 = vmatpush2.msra.mxu0 %v1005
      %1080 = vmatprep.subr.mxu0 0.0
      %1081 = vmatpush2.msra.mxu0 %v1004
      %1082 = vmatprep.subr.mxu0 0.0
      %1083 = vmatpush2.msra.mxu0 %v1003
      %1084 = vmatprep.subr.mxu0 0.0
      %1085 = vmatpush2.msra.mxu0 %v1002
      %1086 = vmatprep.subr.mxu0 0.0
      %1087 = vmatpush2.msra.mxu0 %v1001
      %1088 = vmatprep.subr.mxu0 0.0
      %1089 = vmatpush2.msra.mxu0 %v1000
      %1090 = vmatprep.subr.mxu0 0.0
      %1091 = vmatpush2.msra.mxu0 %v999
      %1092 = vmatprep.subr.mxu0 0.0
      %1093 = vmatpush2.msra.mxu0 %v998
      %1094 = vmatprep.subr.mxu0 0.0
      %1095 = vmatpush2.msra.mxu0 %v997
      %1096 = vmatprep.subr.mxu0 0.0
      %1097 = vmatpush2.msra.mxu0 %v996
      %1098 = vmatprep.subr.mxu0 0.0
      %1099 = vmatpush2.msra.mxu0 %v995
      %1100 = vmatprep.subr.mxu0 0.0
      %1101 = vmatpush2.msra.mxu0 %v994
      %1102 = vmatprep.subr.mxu0 0.0
      %1103 = vmatpush2.msra.mxu0 %v993
      %1104 = vmatprep.subr.mxu0 0.0
      %1105 = vmatpush2.msra.mxu0 %v992
      %1106 = vmatprep.subr.mxu0 0.0
      %1107 = vmatpush2.msra.mxu0 %v991
      %1108 = vmatprep.subr.mxu0 0.0
      %1109 = vmatpush2.msra.mxu0 %v990
      %1110 = vmatprep.mubr.f32.mxu0 %v293
      %1111 = vmatmul.mubr.f32.gmra.mxu0 %v292
      %v1112 = vpop.f32.mrf.mxu0
      %v1113 = vadd.f32 %v1044, %v1112
      %v1114 = vpop.f32.mrf.mxu0
      %1115 = vmatprep.mubr.f32.mxu0 %v297
      %1116 = vmatmul.mubr.f32.gmra.mxu0 %v296
      %v1117 = vpop.f32.mrf.mxu0
      %v1118 = vadd.f32 %v1044, %v1117
      %v1119 = vpop.f32.mrf.mxu0
      %1120 = vdwg.mxu0
      %1121 = vmatprep.subr.mxu0 0.0
      %1122 = vmatpush1.msra.mxu0 %v1021
      %1123 = vmatprep.subr.mxu0 0.0
      %1124 = vmatpush1.msra.mxu0 %v1020
      %1125 = vmatprep.subr.mxu0 0.0
      %1126 = vmatpush1.msra.mxu0 %v1019
      %1127 = vmatprep.subr.mxu0 0.0
      %1128 = vmatpush1.msra.mxu0 %v1018
      %1129 = vmatprep.subr.mxu0 0.0
      %1130 = vmatpush1.msra.mxu0 %v1017
      %1131 = vmatprep.subr.mxu0 0.0
      %1132 = vmatpush1.msra.mxu0 %v1016
      %1133 = vmatprep.subr.mxu0 0.0
      %1134 = vmatpush1.msra.mxu0 %v1015
      %1135 = vmatprep.subr.mxu0 0.0
      %1136 = vmatpush1.msra.mxu0 %v1014
      %1137 = vmatprep.subr.mxu0 0.0
      %1138 = vmatpush1.msra.mxu0 %v1013
      %1139 = vmatprep.subr.mxu0 0.0
      %1140 = vmatpush1.msra.mxu0 %v1012
      %1141 = vmatprep.subr.mxu0 0.0
      %1142 = vmatpush1.msra.mxu0 %v1011
      %1143 = vmatprep.subr.mxu0 0.0
      %1144 = vmatpush1.msra.mxu0 %v1010
      %1145 = vmatprep.subr.mxu0 0.0
      %1146 = vmatpush1.msra.mxu0 %v1009
      %1147 = vmatprep.subr.mxu0 0.0
      %1148 = vmatpush1.msra.mxu0 %v1008
      %1149 = vmatprep.subr.mxu0 0.0
      %1150 = vmatpush1.msra.mxu0 %v1007
      %1151 = vmatprep.subr.mxu0 0.0
      %1152 = vmatpush1.msra.mxu0 %v1006
      %1153 = vmatprep.subr.mxu0 0.0
      %1154 = vmatpush2.msra.mxu0 %v1037
      %1155 = vmatprep.subr.mxu0 0.0
      %1156 = vmatpush2.msra.mxu0 %v1036
      %1157 = vmatprep.subr.mxu0 0.0
      %1158 = vmatpush2.msra.mxu0 %v1035
      %1159 = vmatprep.subr.mxu0 0.0
      %1160 = vmatpush2.msra.mxu0 %v1034
      %1161 = vmatprep.subr.mxu0 0.0
      %1162 = vmatpush2.msra.mxu0 %v1033
      %1163 = vmatprep.subr.mxu0 0.0
      %1164 = vmatpush2.msra.mxu0 %v1032
      %1165 = vmatprep.subr.mxu0 0.0
      %1166 = vmatpush2.msra.mxu0 %v1031
      %1167 = vmatprep.subr.mxu0 0.0
      %1168 = vmatpush2.msra.mxu0 %v1030
      %1169 = vmatprep.subr.mxu0 0.0
      %1170 = vmatpush2.msra.mxu0 %v1029
      %1171 = vmatprep.subr.mxu0 0.0
      %1172 = vmatpush2.msra.mxu0 %v1028
      %1173 = vmatprep.subr.mxu0 0.0
      %1174 = vmatpush2.msra.mxu0 %v1027
      %1175 = vmatprep.subr.mxu0 0.0
      %1176 = vmatpush2.msra.mxu0 %v1026
      %1177 = vmatprep.subr.mxu0 0.0
      %1178 = vmatpush2.msra.mxu0 %v1025
      %1179 = vmatprep.subr.mxu0 0.0
      %1180 = vmatpush2.msra.mxu0 %v1024
      %1181 = vmatprep.subr.mxu0 0.0
      %1182 = vmatpush2.msra.mxu0 %v1023
      %1183 = vmatprep.subr.mxu0 0.0
      %1184 = vmatpush2.msra.mxu0 %v1022
      %1185 = vmatprep.mubr.f32.mxu0 %v295
      %1186 = vmatmul.mubr.f32.gmra.mxu0 %v294
      %v1187 = vpop.f32.mrf.mxu0
      %v1188 = vadd.f32 %v1113, %v1187
      %v1189 = vpop.f32.mrf.mxu0
      %1190 = vmatprep.mubr.f32.mxu0 %v299
      %1191 = vmatmul.mubr.f32.gmra.mxu0 %v298
      %v1192 = vpop.f32.mrf.mxu0
      %v1193 = vadd.f32 %v1118, %v1192
      %v1194 = vpop.f32.mrf.mxu0
      %1195 = vdwg.mxu0
      %v1196 = vmax.f32 %v1188, 0.0
      %v1197 = vmax.f32 %v1193, 0.0
      %1198 = vst.msk [vmem:[#allocation2 + $0x1] sm:$0xff] %vm287, %v521
      %1199 = vst.msk [vmem:[#allocation2 + $0x9] sm:$0xff] %vm287, %v522
      %v1200 = vld [vmem:[#allocation2] sm:$0xff]
      %v1201 = vld [vmem:[#allocation2 + $0x8] sm:$0xff]
      %v1202 = vld [vmem:[%s3] sm:$0xff]
      %v1203 = vld [vmem:[%s3 + $0x8] sm:$0xff]
      %v1204 = vld [vmem:[%s3 + $0x10] sm:$0xff]
      %v1205 = vld [vmem:[%s3 + $0x18] sm:$0xff]
      %v1206 = vld [vmem:[%s3 + $0x20] sm:$0xff]
      %v1207 = vld [vmem:[%s3 + $0x28] sm:$0xff]
      %v1208 = vld [vmem:[%s3 + $0x30] sm:$0xff]
      %v1209 = vld [vmem:[%s3 + $0x38] sm:$0xff]
      %v1210 = vld [vmem:[%s3 + $0x40] sm:$0xff]
      %v1211 = vld [vmem:[%s3 + $0x48] sm:$0xff]
      %v1212 = vld [vmem:[%s3 + $0x50] sm:$0xff]
      %v1213 = vld [vmem:[%s3 + $0x58] sm:$0xff]
      %v1214 = vld [vmem:[#allocation2 + $0x1] sm:$0xff]
      %v1215 = vld [vmem:[#allocation2 + $0x9] sm:$0xff]
      %s1216 = scalar_lea.vmem %s3, 96
      %v1217 = vld [vmem:[%s1216] sm:$0xff]
      %v1218 = vld [vmem:[%s1216 + $0x8] sm:$0xff]
      %v1219 = vld [vmem:[%s1216 + $0x10] sm:$0xff]
      %v1220 = vld [vmem:[%s1216 + $0x18] sm:$0xff]
      %v1221 = vld [vmem:[%s1216 + $0x20] sm:$0xff]
      %v1222 = vld [vmem:[%s1216 + $0x28] sm:$0xff]
      %v1223 = vld [vmem:[%s1216 + $0x30] sm:$0xff]
      %v1224 = vld [vmem:[%s1216 + $0x38] sm:$0xff]
      %v1225 = vld [vmem:[%s1216 + $0x40] sm:$0xff]
      %v1226 = vld [vmem:[%s1216 + $0x48] sm:$0xff]
      %v1227 = vld [vmem:[%s1216 + $0x50] sm:$0xff]
      %v1228 = vld [vmem:[%s1216 + $0x58] sm:$0xff]
      %v1230 = vsel %vm287, %v1214, 0
      %v1233 = vsel %vm287, %v1215, 0
      %1235 = vmatprep.subr.mxu0 0.0
      %1236 = vmatpush1.msra.mxu0 0.0
      %1237 = vmatprep.subr.mxu0 0.0
      %1238 = vmatpush1.msra.mxu0 0.0
      %1239 = vmatprep.subr.mxu0 0.0
      %1240 = vmatpush1.msra.mxu0 0.0
      %1241 = vmatprep.subr.mxu0 0.0
      %1242 = vmatpush1.msra.mxu0 0.0
      %1243 = vmatprep.subr.mxu0 0.0
      %1244 = vmatpush1.msra.mxu0 %v1228
      %1245 = vmatprep.subr.mxu0 0.0
      %1246 = vmatpush1.msra.mxu0 %v1227
      %1247 = vmatprep.subr.mxu0 0.0
      %1248 = vmatpush1.msra.mxu0 %v1226
      %1249 = vmatprep.subr.mxu0 0.0
      %1250 = vmatpush1.msra.mxu0 %v1225
      %1251 = vmatprep.subr.mxu0 0.0
      %1252 = vmatpush1.msra.mxu0 %v1224
      %1253 = vmatprep.subr.mxu0 0.0
      %1254 = vmatpush1.msra.mxu0 %v1223
      %1255 = vmatprep.subr.mxu0 0.0
      %1256 = vmatpush1.msra.mxu0 %v1222
      %1257 = vmatprep.subr.mxu0 0.0
      %1258 = vmatpush1.msra.mxu0 %v1221
      %1259 = vmatprep.subr.mxu0 0.0
      %1260 = vmatpush1.msra.mxu0 %v1220
      %1261 = vmatprep.subr.mxu0 0.0
      %1262 = vmatpush1.msra.mxu0 %v1219
      %1263 = vmatprep.subr.mxu0 0.0
      %1264 = vmatpush1.msra.mxu0 %v1218
      %1265 = vmatprep.subr.mxu0 0.0
      %1266 = vmatpush1.msra.mxu0 %v1217
      %1267 = vmatprep.subr.mxu0 0.0
      %1268 = vmatpush2.msra.mxu0 0.0
      %1269 = vmatprep.subr.mxu0 0.0
      %1270 = vmatpush2.msra.mxu0 0.0
      %1271 = vmatprep.subr.mxu0 0.0
      %1272 = vmatpush2.msra.mxu0 0.0
      %1273 = vmatprep.subr.mxu0 0.0
      %1274 = vmatpush2.msra.mxu0 0.0
      %1275 = vmatprep.subr.mxu0 0.0
      %1276 = vmatpush2.msra.mxu0 0.0
      %1277 = vmatprep.subr.mxu0 0.0
      %1278 = vmatpush2.msra.mxu0 0.0
      %1279 = vmatprep.subr.mxu0 0.0
      %1280 = vmatpush2.msra.mxu0 0.0
      %1281 = vmatprep.subr.mxu0 0.0
      %1282 = vmatpush2.msra.mxu0 0.0
      %1283 = vmatprep.subr.mxu0 0.0
      %1284 = vmatpush2.msra.mxu0 0.0
      %1285 = vmatprep.subr.mxu0 0.0
      %1286 = vmatpush2.msra.mxu0 0.0
      %1287 = vmatprep.subr.mxu0 0.0
      %1288 = vmatpush2.msra.mxu0 0.0
      %1289 = vmatprep.subr.mxu0 0.0
      %1290 = vmatpush2.msra.mxu0 0.0
      %1291 = vmatprep.subr.mxu0 0.0
      %1292 = vmatpush2.msra.mxu0 0.0
      %1293 = vmatprep.subr.mxu0 0.0
      %1294 = vmatpush2.msra.mxu0 0.0
      %1295 = vmatprep.subr.mxu0 0.0
      %1296 = vmatpush2.msra.mxu0 0.0
      %1297 = vmatprep.subr.mxu0 0.0
      %1298 = vmatpush2.msra.mxu0 0.0
      %1299 = vmatprep.mubr.f32.mxu0 0.0
      %1300 = vmatmul.mubr.f32.gmra.mxu0 %v1230
      %v1301 = vpop.f32.mrf.mxu0
      %v1302 = vadd.f32 0.0, %v1301
      %v1303 = vpop.f32.mrf.mxu0
      %1304 = vmatprep.mubr.f32.mxu0 0.0
      %1305 = vmatmul.mubr.f32.gmra.mxu0 %v1233
      %v1306 = vpop.f32.mrf.mxu0
      %v1307 = vadd.f32 0.0, %v1306
      %v1308 = vpop.f32.mrf.mxu0
      %1309 = vdwg.mxu0
      %v1311 = vsel %vm287, %v1200, 0
      %v1314 = vsel %vm287, %v1201, 0
      %1316 = vmatprep.subr.mxu0 0.0
      %1317 = vmatpush1.msra.mxu0 0.0
      %1318 = vmatprep.subr.mxu0 0.0
      %1319 = vmatpush1.msra.mxu0 0.0
      %1320 = vmatprep.subr.mxu0 0.0
      %1321 = vmatpush1.msra.mxu0 0.0
      %1322 = vmatprep.subr.mxu0 0.0
      %1323 = vmatpush1.msra.mxu0 0.0
      %1324 = vmatprep.subr.mxu0 0.0
      %1325 = vmatpush1.msra.mxu0 %v1213
      %1326 = vmatprep.subr.mxu0 0.0
      %1327 = vmatpush1.msra.mxu0 %v1212
      %1328 = vmatprep.subr.mxu0 0.0
      %1329 = vmatpush1.msra.mxu0 %v1211
      %1330 = vmatprep.subr.mxu0 0.0
      %1331 = vmatpush1.msra.mxu0 %v1210
      %1332 = vmatprep.subr.mxu0 0.0
      %1333 = vmatpush1.msra.mxu0 %v1209
      %1334 = vmatprep.subr.mxu0 0.0
      %1335 = vmatpush1.msra.mxu0 %v1208
      %1336 = vmatprep.subr.mxu0 0.0
      %1337 = vmatpush1.msra.mxu0 %v1207
      %1338 = vmatprep.subr.mxu0 0.0
      %1339 = vmatpush1.msra.mxu0 %v1206
      %1340 = vmatprep.subr.mxu0 0.0
      %1341 = vmatpush1.msra.mxu0 %v1205
      %1342 = vmatprep.subr.mxu0 0.0
      %1343 = vmatpush1.msra.mxu0 %v1204
      %1344 = vmatprep.subr.mxu0 0.0
      %1345 = vmatpush1.msra.mxu0 %v1203
      %1346 = vmatprep.subr.mxu0 0.0
      %1347 = vmatpush1.msra.mxu0 %v1202
      %1348 = vmatprep.subr.mxu0 0.0
      %1349 = vmatpush2.msra.mxu0 0.0
      %1350 = vmatprep.subr.mxu0 0.0
      %1351 = vmatpush2.msra.mxu0 0.0
      %1352 = vmatprep.subr.mxu0 0.0
      %1353 = vmatpush2.msra.mxu0 0.0
      %1354 = vmatprep.subr.mxu0 0.0
      %1355 = vmatpush2.msra.mxu0 0.0
      %1356 = vmatprep.subr.mxu0 0.0
      %1357 = vmatpush2.msra.mxu0 0.0
      %1358 = vmatprep.subr.mxu0 0.0
      %1359 = vmatpush2.msra.mxu0 0.0
      %1360 = vmatprep.subr.mxu0 0.0
      %1361 = vmatpush2.msra.mxu0 0.0
      %1362 = vmatprep.subr.mxu0 0.0
      %1363 = vmatpush2.msra.mxu0 0.0
      %1364 = vmatprep.subr.mxu0 0.0
      %1365 = vmatpush2.msra.mxu0 0.0
      %1366 = vmatprep.subr.mxu0 0.0
      %1367 = vmatpush2.msra.mxu0 0.0
      %1368 = vmatprep.subr.mxu0 0.0
      %1369 = vmatpush2.msra.mxu0 0.0
      %1370 = vmatprep.subr.mxu0 0.0
      %1371 = vmatpush2.msra.mxu0 0.0
      %1372 = vmatprep.subr.mxu0 0.0
      %1373 = vmatpush2.msra.mxu0 0.0
      %1374 = vmatprep.subr.mxu0 0.0
      %1375 = vmatpush2.msra.mxu0 0.0
      %1376 = vmatprep.subr.mxu0 0.0
      %1377 = vmatpush2.msra.mxu0 0.0
      %1378 = vmatprep.subr.mxu0 0.0
      %1379 = vmatpush2.msra.mxu0 0.0
      %1380 = vmatprep.mubr.f32.mxu0 0.0
      %1381 = vmatmul.mubr.f32.gmra.mxu0 %v1311
      %v1382 = vpop.f32.mrf.mxu0
      %v1383 = vadd.f32 %v1302, %v1382
      %v1384 = vpop.f32.mrf.mxu0
      %1385 = vmatprep.mubr.f32.mxu0 0.0
      %1386 = vmatmul.mubr.f32.gmra.mxu0 %v1314
      %v1387 = vpop.f32.mrf.mxu0
      %v1388 = vadd.f32 %v1307, %v1387
      %v1389 = vpop.f32.mrf.mxu0
      %1390 = vdwg.mxu0
      %v1391 = vld [vmem:[#allocation2 + $0x2] sm:$0xff]
      %v1392 = vld [vmem:[#allocation2 + $0xa] sm:$0xff]
      %s1393 = scalar_lea.vmem %s3, 192
      %v1394 = vld [vmem:[%s1393] sm:$0xff]
      %v1395 = vld [vmem:[%s1393 + $0x8] sm:$0xff]
      %v1396 = vld [vmem:[%s1393 + $0x10] sm:$0xff]
      %v1397 = vld [vmem:[%s1393 + $0x18] sm:$0xff]
      %v1398 = vld [vmem:[%s1393 + $0x20] sm:$0xff]
      %v1399 = vld [vmem:[%s1393 + $0x28] sm:$0xff]
      %v1400 = vld [vmem:[%s1393 + $0x30] sm:$0xff]
      %v1401 = vld [vmem:[%s1393 + $0x38] sm:$0xff]
      %v1402 = vld [vmem:[%s1393 + $0x40] sm:$0xff]
      %v1403 = vld [vmem:[%s1393 + $0x48] sm:$0xff]
      %v1404 = vld [vmem:[%s1393 + $0x50] sm:$0xff]
      %v1405 = vld [vmem:[%s1393 + $0x58] sm:$0xff]
      %v1407 = vsel %vm287, %v1391, 0
      %v1410 = vsel %vm287, %v1392, 0
      %1412 = vmatprep.subr.mxu0 0.0
      %1413 = vmatpush1.msra.mxu0 0.0
      %1414 = vmatprep.subr.mxu0 0.0
      %1415 = vmatpush1.msra.mxu0 0.0
      %1416 = vmatprep.subr.mxu0 0.0
      %1417 = vmatpush1.msra.mxu0 0.0
      %1418 = vmatprep.subr.mxu0 0.0
      %1419 = vmatpush1.msra.mxu0 0.0
      %1420 = vmatprep.subr.mxu0 0.0
      %1421 = vmatpush1.msra.mxu0 %v1405
      %1422 = vmatprep.subr.mxu0 0.0
      %1423 = vmatpush1.msra.mxu0 %v1404
      %1424 = vmatprep.subr.mxu0 0.0
      %1425 = vmatpush1.msra.mxu0 %v1403
      %1426 = vmatprep.subr.mxu0 0.0
      %1427 = vmatpush1.msra.mxu0 %v1402
      %1428 = vmatprep.subr.mxu0 0.0
      %1429 = vmatpush1.msra.mxu0 %v1401
      %1430 = vmatprep.subr.mxu0 0.0
      %1431 = vmatpush1.msra.mxu0 %v1400
      %1432 = vmatprep.subr.mxu0 0.0
      %1433 = vmatpush1.msra.mxu0 %v1399
      %1434 = vmatprep.subr.mxu0 0.0
      %1435 = vmatpush1.msra.mxu0 %v1398
      %1436 = vmatprep.subr.mxu0 0.0
      %1437 = vmatpush1.msra.mxu0 %v1397
      %1438 = vmatprep.subr.mxu0 0.0
      %1439 = vmatpush1.msra.mxu0 %v1396
      %1440 = vmatprep.subr.mxu0 0.0
      %1441 = vmatpush1.msra.mxu0 %v1395
      %1442 = vmatprep.subr.mxu0 0.0
      %1443 = vmatpush1.msra.mxu0 %v1394
      %1444 = vmatprep.subr.mxu0 0.0
      %1445 = vmatpush2.msra.mxu0 0.0
      %1446 = vmatprep.subr.mxu0 0.0
      %1447 = vmatpush2.msra.mxu0 0.0
      %1448 = vmatprep.subr.mxu0 0.0
      %1449 = vmatpush2.msra.mxu0 0.0
      %1450 = vmatprep.subr.mxu0 0.0
      %1451 = vmatpush2.msra.mxu0 0.0
      %1452 = vmatprep.subr.mxu0 0.0
      %1453 = vmatpush2.msra.mxu0 0.0
      %1454 = vmatprep.subr.mxu0 0.0
      %1455 = vmatpush2.msra.mxu0 0.0
      %1456 = vmatprep.subr.mxu0 0.0
      %1457 = vmatpush2.msra.mxu0 0.0
      %1458 = vmatprep.subr.mxu0 0.0
      %1459 = vmatpush2.msra.mxu0 0.0
      %1460 = vmatprep.subr.mxu0 0.0
      %1461 = vmatpush2.msra.mxu0 0.0
      %1462 = vmatprep.subr.mxu0 0.0
      %1463 = vmatpush2.msra.mxu0 0.0
      %1464 = vmatprep.subr.mxu0 0.0
      %1465 = vmatpush2.msra.mxu0 0.0
      %1466 = vmatprep.subr.mxu0 0.0
      %1467 = vmatpush2.msra.mxu0 0.0
      %1468 = vmatprep.subr.mxu0 0.0
      %1469 = vmatpush2.msra.mxu0 0.0
      %1470 = vmatprep.subr.mxu0 0.0
      %1471 = vmatpush2.msra.mxu0 0.0
      %1472 = vmatprep.subr.mxu0 0.0
      %1473 = vmatpush2.msra.mxu0 0.0
      %1474 = vmatprep.subr.mxu0 0.0
      %1475 = vmatpush2.msra.mxu0 0.0
      %1476 = vmatprep.mubr.f32.mxu0 0.0
      %1477 = vmatmul.mubr.f32.gmra.mxu0 %v1407
      %v1478 = vpop.f32.mrf.mxu0
      %v1479 = vadd.f32 0.0, %v1478
      %v1480 = vpop.f32.mrf.mxu0
      %1481 = vmatprep.mubr.f32.mxu0 0.0
      %1482 = vmatmul.mubr.f32.gmra.mxu0 %v1410
      %v1483 = vpop.f32.mrf.mxu0
      %v1484 = vadd.f32 0.0, %v1483
      %v1485 = vpop.f32.mrf.mxu0
      %1486 = vdwg.mxu0
      %v1487 = vadd.f32 %v1383, %v1479
      %v1488 = vadd.f32 %v1388, %v1484
      %v1489 = vld [vmem:[%s4] sm:$0x1]
      %v1491 = vlaneseq
      %v1492 = vshrl.u32 %v1491, 7
      %v1493 = vsub.s32 0, %v1492
      %v1494 = vrot.slane %v1489, %v1493
      %v1496 = vadd.f32 %v1487, %v1494
      %v1497 = vadd.f32 %v1488, %v1494
      %v1498 = vmax.f32 %v1496, 0.0
      %v1499 = vmax.f32 %v1497, 0.0
      %v1500 = vadd.f32 %v1498, %v746
      %v1501 = vadd.f32 %v1499, %v747
      %1502 = vst.msk [vmem:[#allocation2 + $0x1] sm:$0xff] %vm287, %v1500
      %1503 = vst.msk [vmem:[#allocation2 + $0x9] sm:$0xff] %vm287, %v1501
      %v1504 = vld [vmem:[#allocation2] sm:$0xff]
      %v1505 = vld [vmem:[#allocation2 + $0x8] sm:$0xff]
      %s1506 = scalar_lea.vmem %s3, 288
      %v1507 = vld [vmem:[%s1506] sm:$0xff]
      %v1508 = vld [vmem:[%s1506 + $0x8] sm:$0xff]
      %v1509 = vld [vmem:[%s1506 + $0x10] sm:$0xff]
      %v1510 = vld [vmem:[%s1506 + $0x18] sm:$0xff]
      %v1511 = vld [vmem:[%s1506 + $0x20] sm:$0xff]
      %v1512 = vld [vmem:[%s1506 + $0x28] sm:$0xff]
      %v1513 = vld [vmem:[%s1506 + $0x30] sm:$0xff]
      %v1514 = vld [vmem:[%s1506 + $0x38] sm:$0xff]
      %v1515 = vld [vmem:[%s1506 + $0x40] sm:$0xff]
      %v1516 = vld [vmem:[%s1506 + $0x48] sm:$0xff]
      %v1517 = vld [vmem:[%s1506 + $0x50] sm:$0xff]
      %v1518 = vld [vmem:[%s1506 + $0x58] sm:$0xff]
      %v1519 = vld [vmem:[#allocation2 + $0x1] sm:$0xff]
      %v1520 = vld [vmem:[#allocation2 + $0x9] sm:$0xff]
      %s1521 = scalar_lea.vmem %s3, 384
      %v1522 = vld [vmem:[%s1521] sm:$0xff]
      %v1523 = vld [vmem:[%s1521 + $0x8] sm:$0xff]
      %v1524 = vld [vmem:[%s1521 + $0x10] sm:$0xff]
      %v1525 = vld [vmem:[%s1521 + $0x18] sm:$0xff]
      %v1526 = vld [vmem:[%s1521 + $0x20] sm:$0xff]
      %v1527 = vld [vmem:[%s1521 + $0x28] sm:$0xff]
      %v1528 = vld [vmem:[%s1521 + $0x30] sm:$0xff]
      %v1529 = vld [vmem:[%s1521 + $0x38] sm:$0xff]
      %v1530 = vld [vmem:[%s1521 + $0x40] sm:$0xff]
      %v1531 = vld [vmem:[%s1521 + $0x48] sm:$0xff]
      %v1532 = vld [vmem:[%s1521 + $0x50] sm:$0xff]
      %v1533 = vld [vmem:[%s1521 + $0x58] sm:$0xff]
      %v1535 = vsel %vm287, %v1519, 0
      %v1538 = vsel %vm287, %v1520, 0
      %1540 = vmatprep.subr.mxu0 0.0
      %1541 = vmatpush1.msra.mxu0 0.0
      %1542 = vmatprep.subr.mxu0 0.0
      %1543 = vmatpush1.msra.mxu0 0.0
      %1544 = vmatprep.subr.mxu0 0.0
      %1545 = vmatpush1.msra.mxu0 0.0
      %1546 = vmatprep.subr.mxu0 0.0
      %1547 = vmatpush1.msra.mxu0 0.0
      %1548 = vmatprep.subr.mxu0 0.0
      %1549 = vmatpush1.msra.mxu0 %v1533
      %1550 = vmatprep.subr.mxu0 0.0
      %1551 = vmatpush1.msra.mxu0 %v1532
      %1552 = vmatprep.subr.mxu0 0.0
      %1553 = vmatpush1.msra.mxu0 %v1531
      %1554 = vmatprep.subr.mxu0 0.0
      %1555 = vmatpush1.msra.mxu0 %v1530
      %1556 = vmatprep.subr.mxu0 0.0
      %1557 = vmatpush1.msra.mxu0 %v1529
      %1558 = vmatprep.subr.mxu0 0.0
      %1559 = vmatpush1.msra.mxu0 %v1528
      %1560 = vmatprep.subr.mxu0 0.0
      %1561 = vmatpush1.msra.mxu0 %v1527
      %1562 = vmatprep.subr.mxu0 0.0
      %1563 = vmatpush1.msra.mxu0 %v1526
      %1564 = vmatprep.subr.mxu0 0.0
      %1565 = vmatpush1.msra.mxu0 %v1525
      %1566 = vmatprep.subr.mxu0 0.0
      %1567 = vmatpush1.msra.mxu0 %v1524
      %1568 = vmatprep.subr.mxu0 0.0
      %1569 = vmatpush1.msra.mxu0 %v1523
      %1570 = vmatprep.subr.mxu0 0.0
      %1571 = vmatpush1.msra.mxu0 %v1522
      %1572 = vmatprep.subr.mxu0 0.0
      %1573 = vmatpush2.msra.mxu0 0.0
      %1574 = vmatprep.subr.mxu0 0.0
      %1575 = vmatpush2.msra.mxu0 0.0
      %1576 = vmatprep.subr.mxu0 0.0
      %1577 = vmatpush2.msra.mxu0 0.0
      %1578 = vmatprep.subr.mxu0 0.0
      %1579 = vmatpush2.msra.mxu0 0.0
      %1580 = vmatprep.subr.mxu0 0.0
      %1581 = vmatpush2.msra.mxu0 0.0
      %1582 = vmatprep.subr.mxu0 0.0
      %1583 = vmatpush2.msra.mxu0 0.0
      %1584 = vmatprep.subr.mxu0 0.0
      %1585 = vmatpush2.msra.mxu0 0.0
      %1586 = vmatprep.subr.mxu0 0.0
      %1587 = vmatpush2.msra.mxu0 0.0
      %1588 = vmatprep.subr.mxu0 0.0
      %1589 = vmatpush2.msra.mxu0 0.0
      %1590 = vmatprep.subr.mxu0 0.0
      %1591 = vmatpush2.msra.mxu0 0.0
      %1592 = vmatprep.subr.mxu0 0.0
      %1593 = vmatpush2.msra.mxu0 0.0
      %1594 = vmatprep.subr.mxu0 0.0
      %1595 = vmatpush2.msra.mxu0 0.0
      %1596 = vmatprep.subr.mxu0 0.0
      %1597 = vmatpush2.msra.mxu0 0.0
      %1598 = vmatprep.subr.mxu0 0.0
      %1599 = vmatpush2.msra.mxu0 0.0
      %1600 = vmatprep.subr.mxu0 0.0
      %1601 = vmatpush2.msra.mxu0 0.0
      %1602 = vmatprep.subr.mxu0 0.0
      %1603 = vmatpush2.msra.mxu0 0.0
      %1604 = vmatprep.mubr.f32.mxu0 0.0
      %1605 = vmatmul.mubr.f32.gmra.mxu0 %v1535
      %v1606 = vpop.f32.mrf.mxu0
      %v1607 = vadd.f32 0.0, %v1606
      %v1608 = vpop.f32.mrf.mxu0
      %1609 = vmatprep.mubr.f32.mxu0 0.0
      %1610 = vmatmul.mubr.f32.gmra.mxu0 %v1538
      %v1611 = vpop.f32.mrf.mxu0
      %v1612 = vadd.f32 0.0, %v1611
      %v1613 = vpop.f32.mrf.mxu0
      %1614 = vdwg.mxu0
      %v1616 = vsel %vm287, %v1504, 0
      %v1619 = vsel %vm287, %v1505, 0
      %1621 = vmatprep.subr.mxu0 0.0
      %1622 = vmatpush1.msra.mxu0 0.0
      %1623 = vmatprep.subr.mxu0 0.0
      %1624 = vmatpush1.msra.mxu0 0.0
      %1625 = vmatprep.subr.mxu0 0.0
      %1626 = vmatpush1.msra.mxu0 0.0
      %1627 = vmatprep.subr.mxu0 0.0
      %1628 = vmatpush1.msra.mxu0 0.0
      %1629 = vmatprep.subr.mxu0 0.0
      %1630 = vmatpush1.msra.mxu0 %v1518
      %1631 = vmatprep.subr.mxu0 0.0
      %1632 = vmatpush1.msra.mxu0 %v1517
      %1633 = vmatprep.subr.mxu0 0.0
      %1634 = vmatpush1.msra.mxu0 %v1516
      %1635 = vmatprep.subr.mxu0 0.0
      %1636 = vmatpush1.msra.mxu0 %v1515
      %1637 = vmatprep.subr.mxu0 0.0
      %1638 = vmatpush1.msra.mxu0 %v1514
      %1639 = vmatprep.subr.mxu0 0.0
      %1640 = vmatpush1.msra.mxu0 %v1513
      %1641 = vmatprep.subr.mxu0 0.0
      %1642 = vmatpush1.msra.mxu0 %v1512
      %1643 = vmatprep.subr.mxu0 0.0
      %1644 = vmatpush1.msra.mxu0 %v1511
      %1645 = vmatprep.subr.mxu0 0.0
      %1646 = vmatpush1.msra.mxu0 %v1510
      %1647 = vmatprep.subr.mxu0 0.0
      %1648 = vmatpush1.msra.mxu0 %v1509
      %1649 = vmatprep.subr.mxu0 0.0
      %1650 = vmatpush1.msra.mxu0 %v1508
      %1651 = vmatprep.subr.mxu0 0.0
      %1652 = vmatpush1.msra.mxu0 %v1507
      %1653 = vmatprep.subr.mxu0 0.0
      %1654 = vmatpush2.msra.mxu0 0.0
      %1655 = vmatprep.subr.mxu0 0.0
      %1656 = vmatpush2.msra.mxu0 0.0
      %1657 = vmatprep.subr.mxu0 0.0
      %1658 = vmatpush2.msra.mxu0 0.0
      %1659 = vmatprep.subr.mxu0 0.0
      %1660 = vmatpush2.msra.mxu0 0.0
      %1661 = vmatprep.subr.mxu0 0.0
      %1662 = vmatpush2.msra.mxu0 0.0
      %1663 = vmatprep.subr.mxu0 0.0
      %1664 = vmatpush2.msra.mxu0 0.0
      %1665 = vmatprep.subr.mxu0 0.0
      %1666 = vmatpush2.msra.mxu0 0.0
      %1667 = vmatprep.subr.mxu0 0.0
      %1668 = vmatpush2.msra.mxu0 0.0
      %1669 = vmatprep.subr.mxu0 0.0
      %1670 = vmatpush2.msra.mxu0 0.0
      %1671 = vmatprep.subr.mxu0 0.0
      %1672 = vmatpush2.msra.mxu0 0.0
      %1673 = vmatprep.subr.mxu0 0.0
      %1674 = vmatpush2.msra.mxu0 0.0
      %1675 = vmatprep.subr.mxu0 0.0
      %1676 = vmatpush2.msra.mxu0 0.0
      %1677 = vmatprep.subr.mxu0 0.0
      %1678 = vmatpush2.msra.mxu0 0.0
      %1679 = vmatprep.subr.mxu0 0.0
      %1680 = vmatpush2.msra.mxu0 0.0
      %1681 = vmatprep.subr.mxu0 0.0
      %1682 = vmatpush2.msra.mxu0 0.0
      %1683 = vmatprep.subr.mxu0 0.0
      %1684 = vmatpush2.msra.mxu0 0.0
      %1685 = vmatprep.mubr.f32.mxu0 0.0
      %1686 = vmatmul.mubr.f32.gmra.mxu0 %v1616
      %v1687 = vpop.f32.mrf.mxu0
      %v1688 = vadd.f32 %v1607, %v1687
      %v1689 = vpop.f32.mrf.mxu0
      %1690 = vmatprep.mubr.f32.mxu0 0.0
      %1691 = vmatmul.mubr.f32.gmra.mxu0 %v1619
      %v1692 = vpop.f32.mrf.mxu0
      %v1693 = vadd.f32 %v1612, %v1692
      %v1694 = vpop.f32.mrf.mxu0
      %1695 = vdwg.mxu0
      %v1696 = vld [vmem:[#allocation2 + $0x2] sm:$0xff]
      %v1697 = vld [vmem:[#allocation2 + $0xa] sm:$0xff]
      %s1698 = scalar_lea.vmem %s3, 480
      %v1699 = vld [vmem:[%s1698] sm:$0xff]
      %v1700 = vld [vmem:[%s1698 + $0x8] sm:$0xff]
      %v1701 = vld [vmem:[%s1698 + $0x10] sm:$0xff]
      %v1702 = vld [vmem:[%s1698 + $0x18] sm:$0xff]
      %v1703 = vld [vmem:[%s1698 + $0x20] sm:$0xff]
      %v1704 = vld [vmem:[%s1698 + $0x28] sm:$0xff]
      %v1705 = vld [vmem:[%s1698 + $0x30] sm:$0xff]
      %v1706 = vld [vmem:[%s1698 + $0x38] sm:$0xff]
      %v1707 = vld [vmem:[%s1698 + $0x40] sm:$0xff]
      %v1708 = vld [vmem:[%s1698 + $0x48] sm:$0xff]
      %v1709 = vld [vmem:[%s1698 + $0x50] sm:$0xff]
      %v1710 = vld [vmem:[%s1698 + $0x58] sm:$0xff]
      %v1712 = vsel %vm287, %v1696, 0
      %v1715 = vsel %vm287, %v1697, 0
      %1717 = vmatprep.subr.mxu0 0.0
      %1718 = vmatpush1.msra.mxu0 0.0
      %1719 = vmatprep.subr.mxu0 0.0
      %1720 = vmatpush1.msra.mxu0 0.0
      %1721 = vmatprep.subr.mxu0 0.0
      %1722 = vmatpush1.msra.mxu0 0.0
      %1723 = vmatprep.subr.mxu0 0.0
      %1724 = vmatpush1.msra.mxu0 0.0
      %1725 = vmatprep.subr.mxu0 0.0
      %1726 = vmatpush1.msra.mxu0 %v1710
      %1727 = vmatprep.subr.mxu0 0.0
      %1728 = vmatpush1.msra.mxu0 %v1709
      %1729 = vmatprep.subr.mxu0 0.0
      %1730 = vmatpush1.msra.mxu0 %v1708
      %1731 = vmatprep.subr.mxu0 0.0
      %1732 = vmatpush1.msra.mxu0 %v1707
      %1733 = vmatprep.subr.mxu0 0.0
      %1734 = vmatpush1.msra.mxu0 %v1706
      %1735 = vmatprep.subr.mxu0 0.0
      %1736 = vmatpush1.msra.mxu0 %v1705
      %1737 = vmatprep.subr.mxu0 0.0
      %1738 = vmatpush1.msra.mxu0 %v1704
      %1739 = vmatprep.subr.mxu0 0.0
      %1740 = vmatpush1.msra.mxu0 %v1703
      %1741 = vmatprep.subr.mxu0 0.0
      %1742 = vmatpush1.msra.mxu0 %v1702
      %1743 = vmatprep.subr.mxu0 0.0
      %1744 = vmatpush1.msra.mxu0 %v1701
      %1745 = vmatprep.subr.mxu0 0.0
      %1746 = vmatpush1.msra.mxu0 %v1700
      %1747 = vmatprep.subr.mxu0 0.0
      %1748 = vmatpush1.msra.mxu0 %v1699
      %1749 = vmatprep.subr.mxu0 0.0
      %1750 = vmatpush2.msra.mxu0 0.0
      %1751 = vmatprep.subr.mxu0 0.0
      %1752 = vmatpush2.msra.mxu0 0.0
      %1753 = vmatprep.subr.mxu0 0.0
      %1754 = vmatpush2.msra.mxu0 0.0
      %1755 = vmatprep.subr.mxu0 0.0
      %1756 = vmatpush2.msra.mxu0 0.0
      %1757 = vmatprep.subr.mxu0 0.0
      %1758 = vmatpush2.msra.mxu0 0.0
      %1759 = vmatprep.subr.mxu0 0.0
      %1760 = vmatpush2.msra.mxu0 0.0
      %1761 = vmatprep.subr.mxu0 0.0
      %1762 = vmatpush2.msra.mxu0 0.0
      %1763 = vmatprep.subr.mxu0 0.0
      %1764 = vmatpush2.msra.mxu0 0.0
      %1765 = vmatprep.subr.mxu0 0.0
      %1766 = vmatpush2.msra.mxu0 0.0
      %1767 = vmatprep.subr.mxu0 0.0
      %1768 = vmatpush2.msra.mxu0 0.0
      %1769 = vmatprep.subr.mxu0 0.0
      %1770 = vmatpush2.msra.mxu0 0.0
      %1771 = vmatprep.subr.mxu0 0.0
      %1772 = vmatpush2.msra.mxu0 0.0
      %1773 = vmatprep.subr.mxu0 0.0
      %1774 = vmatpush2.msra.mxu0 0.0
      %1775 = vmatprep.subr.mxu0 0.0
      %1776 = vmatpush2.msra.mxu0 0.0
      %1777 = vmatprep.subr.mxu0 0.0
      %1778 = vmatpush2.msra.mxu0 0.0
      %1779 = vmatprep.subr.mxu0 0.0
      %1780 = vmatpush2.msra.mxu0 0.0
      %1781 = vmatprep.mubr.f32.mxu0 0.0
      %1782 = vmatmul.mubr.f32.gmra.mxu0 %v1712
      %v1783 = vpop.f32.mrf.mxu0
      %v1784 = vadd.f32 0.0, %v1783
      %v1785 = vpop.f32.mrf.mxu0
      %1786 = vmatprep.mubr.f32.mxu0 0.0
      %1787 = vmatmul.mubr.f32.gmra.mxu0 %v1715
      %v1788 = vpop.f32.mrf.mxu0
      %v1789 = vadd.f32 0.0, %v1788
      %v1790 = vpop.f32.mrf.mxu0
      %1791 = vdwg.mxu0
      %v1792 = vadd.f32 %v1688, %v1784
      %v1793 = vadd.f32 %v1693, %v1789
      %s1794 = scalar_lea.vmem %s4, 1
      %v1795 = vld [vmem:[%s1794] sm:$0x1]
      %v1797 = vlaneseq
      %v1798 = vshrl.u32 %v1797, 7
      %v1799 = vsub.s32 0, %v1798
      %v1800 = vrot.slane %v1795, %v1799
      %v1802 = vadd.f32 %v1792, %v1800
      %v1803 = vadd.f32 %v1793, %v1800
      %v1804 = vmax.f32 %v1802, 0.0
      %v1805 = vmax.f32 %v1803, 0.0
      %v1806 = vadd.f32 %v1804, %v971
      %v1807 = vadd.f32 %v1805, %v972
      %1808 = vst.msk [vmem:[#allocation2 + $0x1] sm:$0xff] %vm287, %v1806
      %1809 = vst.msk [vmem:[#allocation2 + $0x9] sm:$0xff] %vm287, %v1807
      %v1810 = vld [vmem:[#allocation2] sm:$0xff]
      %v1811 = vld [vmem:[#allocation2 + $0x8] sm:$0xff]
      %s1812 = scalar_lea.vmem %s3, 576
      %v1813 = vld [vmem:[%s1812] sm:$0xff]
      %v1814 = vld [vmem:[%s1812 + $0x8] sm:$0xff]
      %v1815 = vld [vmem:[%s1812 + $0x10] sm:$0xff]
      %v1816 = vld [vmem:[%s1812 + $0x18] sm:$0xff]
      %v1817 = vld [vmem:[%s1812 + $0x20] sm:$0xff]
      %v1818 = vld [vmem:[%s1812 + $0x28] sm:$0xff]
      %v1819 = vld [vmem:[%s1812 + $0x30] sm:$0xff]
      %v1820 = vld [vmem:[%s1812 + $0x38] sm:$0xff]
      %v1821 = vld [vmem:[%s1812 + $0x40] sm:$0xff]
      %v1822 = vld [vmem:[%s1812 + $0x48] sm:$0xff]
      %v1823 = vld [vmem:[%s1812 + $0x50] sm:$0xff]
      %v1824 = vld [vmem:[%s1812 + $0x58] sm:$0xff]
      %v1825 = vld [vmem:[#allocation2 + $0x1] sm:$0xff]
      %v1826 = vld [vmem:[#allocation2 + $0x9] sm:$0xff]
      %s1827 = scalar_lea.vmem %s3, 672
      %v1828 = vld [vmem:[%s1827] sm:$0xff]
      %v1829 = vld [vmem:[%s1827 + $0x8] sm:$0xff]
      %v1830 = vld [vmem:[%s1827 + $0x10] sm:$0xff]
      %v1831 = vld [vmem:[%s1827 + $0x18] sm:$0xff]
      %v1832 = vld [vmem:[%s1827 + $0x20] sm:$0xff]
      %v1833 = vld [vmem:[%s1827 + $0x28] sm:$0xff]
      %v1834 = vld [vmem:[%s1827 + $0x30] sm:$0xff]
      %v1835 = vld [vmem:[%s1827 + $0x38] sm:$0xff]
      %v1836 = vld [vmem:[%s1827 + $0x40] sm:$0xff]
      %v1837 = vld [vmem:[%s1827 + $0x48] sm:$0xff]
      %v1838 = vld [vmem:[%s1827 + $0x50] sm:$0xff]
      %v1839 = vld [vmem:[%s1827 + $0x58] sm:$0xff]
      %v1841 = vsel %vm287, %v1825, 0
      %v1844 = vsel %vm287, %v1826, 0
      %1846 = vmatprep.subr.mxu0 0.0
      %1847 = vmatpush1.msra.mxu0 0.0
      %1848 = vmatprep.subr.mxu0 0.0
      %1849 = vmatpush1.msra.mxu0 0.0
      %1850 = vmatprep.subr.mxu0 0.0
      %1851 = vmatpush1.msra.mxu0 0.0
      %1852 = vmatprep.subr.mxu0 0.0
      %1853 = vmatpush1.msra.mxu0 0.0
      %1854 = vmatprep.subr.mxu0 0.0
      %1855 = vmatpush1.msra.mxu0 %v1839
      %1856 = vmatprep.subr.mxu0 0.0
      %1857 = vmatpush1.msra.mxu0 %v1838
      %1858 = vmatprep.subr.mxu0 0.0
      %1859 = vmatpush1.msra.mxu0 %v1837
      %1860 = vmatprep.subr.mxu0 0.0
      %1861 = vmatpush1.msra.mxu0 %v1836
      %1862 = vmatprep.subr.mxu0 0.0
      %1863 = vmatpush1.msra.mxu0 %v1835
      %1864 = vmatprep.subr.mxu0 0.0
      %1865 = vmatpush1.msra.mxu0 %v1834
      %1866 = vmatprep.subr.mxu0 0.0
      %1867 = vmatpush1.msra.mxu0 %v1833
      %1868 = vmatprep.subr.mxu0 0.0
      %1869 = vmatpush1.msra.mxu0 %v1832
      %1870 = vmatprep.subr.mxu0 0.0
      %1871 = vmatpush1.msra.mxu0 %v1831
      %1872 = vmatprep.subr.mxu0 0.0
      %1873 = vmatpush1.msra.mxu0 %v1830
      %1874 = vmatprep.subr.mxu0 0.0
      %1875 = vmatpush1.msra.mxu0 %v1829
      %1876 = vmatprep.subr.mxu0 0.0
      %1877 = vmatpush1.msra.mxu0 %v1828
      %1878 = vmatprep.subr.mxu0 0.0
      %1879 = vmatpush2.msra.mxu0 0.0
      %1880 = vmatprep.subr.mxu0 0.0
      %1881 = vmatpush2.msra.mxu0 0.0
      %1882 = vmatprep.subr.mxu0 0.0
      %1883 = vmatpush2.msra.mxu0 0.0
      %1884 = vmatprep.subr.mxu0 0.0
      %1885 = vmatpush2.msra.mxu0 0.0
      %1886 = vmatprep.subr.mxu0 0.0
      %1887 = vmatpush2.msra.mxu0 0.0
      %1888 = vmatprep.subr.mxu0 0.0
      %1889 = vmatpush2.msra.mxu0 0.0
      %1890 = vmatprep.subr.mxu0 0.0
      %1891 = vmatpush2.msra.mxu0 0.0
      %1892 = vmatprep.subr.mxu0 0.0
      %1893 = vmatpush2.msra.mxu0 0.0
      %1894 = vmatprep.subr.mxu0 0.0
      %1895 = vmatpush2.msra.mxu0 0.0
      %1896 = vmatprep.subr.mxu0 0.0
      %1897 = vmatpush2.msra.mxu0 0.0
      %1898 = vmatprep.subr.mxu0 0.0
      %1899 = vmatpush2.msra.mxu0 0.0
      %1900 = vmatprep.subr.mxu0 0.0
      %1901 = vmatpush2.msra.mxu0 0.0
      %1902 = vmatprep.subr.mxu0 0.0
      %1903 = vmatpush2.msra.mxu0 0.0
      %1904 = vmatprep.subr.mxu0 0.0
      %1905 = vmatpush2.msra.mxu0 0.0
      %1906 = vmatprep.subr.mxu0 0.0
      %1907 = vmatpush2.msra.mxu0 0.0
      %1908 = vmatprep.subr.mxu0 0.0
      %1909 = vmatpush2.msra.mxu0 0.0
      %1910 = vmatprep.mubr.f32.mxu0 0.0
      %1911 = vmatmul.mubr.f32.gmra.mxu0 %v1841
      %v1912 = vpop.f32.mrf.mxu0
      %v1913 = vadd.f32 0.0, %v1912
      %v1914 = vpop.f32.mrf.mxu0
      %1915 = vmatprep.mubr.f32.mxu0 0.0
      %1916 = vmatmul.mubr.f32.gmra.mxu0 %v1844
      %v1917 = vpop.f32.mrf.mxu0
      %v1918 = vadd.f32 0.0, %v1917
      %v1919 = vpop.f32.mrf.mxu0
      %1920 = vdwg.mxu0
      %v1922 = vsel %vm287, %v1810, 0
      %v1925 = vsel %vm287, %v1811, 0
      %1927 = vmatprep.subr.mxu0 0.0
      %1928 = vmatpush1.msra.mxu0 0.0
      %1929 = vmatprep.subr.mxu0 0.0
      %1930 = vmatpush1.msra.mxu0 0.0
      %1931 = vmatprep.subr.mxu0 0.0
      %1932 = vmatpush1.msra.mxu0 0.0
      %1933 = vmatprep.subr.mxu0 0.0
      %1934 = vmatpush1.msra.mxu0 0.0
      %1935 = vmatprep.subr.mxu0 0.0
      %1936 = vmatpush1.msra.mxu0 %v1824
      %1937 = vmatprep.subr.mxu0 0.0
      %1938 = vmatpush1.msra.mxu0 %v1823
      %1939 = vmatprep.subr.mxu0 0.0
      %1940 = vmatpush1.msra.mxu0 %v1822
      %1941 = vmatprep.subr.mxu0 0.0
      %1942 = vmatpush1.msra.mxu0 %v1821
      %1943 = vmatprep.subr.mxu0 0.0
      %1944 = vmatpush1.msra.mxu0 %v1820
      %1945 = vmatprep.subr.mxu0 0.0
      %1946 = vmatpush1.msra.mxu0 %v1819
      %1947 = vmatprep.subr.mxu0 0.0
      %1948 = vmatpush1.msra.mxu0 %v1818
      %1949 = vmatprep.subr.mxu0 0.0
      %1950 = vmatpush1.msra.mxu0 %v1817
      %1951 = vmatprep.subr.mxu0 0.0
      %1952 = vmatpush1.msra.mxu0 %v1816
      %1953 = vmatprep.subr.mxu0 0.0
      %1954 = vmatpush1.msra.mxu0 %v1815
      %1955 = vmatprep.subr.mxu0 0.0
      %1956 = vmatpush1.msra.mxu0 %v1814
      %1957 = vmatprep.subr.mxu0 0.0
      %1958 = vmatpush1.msra.mxu0 %v1813
      %1959 = vmatprep.subr.mxu0 0.0
      %1960 = vmatpush2.msra.mxu0 0.0
      %1961 = vmatprep.subr.mxu0 0.0
      %1962 = vmatpush2.msra.mxu0 0.0
      %1963 = vmatprep.subr.mxu0 0.0
      %1964 = vmatpush2.msra.mxu0 0.0
      %1965 = vmatprep.subr.mxu0 0.0
      %1966 = vmatpush2.msra.mxu0 0.0
      %1967 = vmatprep.subr.mxu0 0.0
      %1968 = vmatpush2.msra.mxu0 0.0
      %1969 = vmatprep.subr.mxu0 0.0
      %1970 = vmatpush2.msra.mxu0 0.0
      %1971 = vmatprep.subr.mxu0 0.0
      %1972 = vmatpush2.msra.mxu0 0.0
      %1973 = vmatprep.subr.mxu0 0.0
      %1974 = vmatpush2.msra.mxu0 0.0
      %1975 = vmatprep.subr.mxu0 0.0
      %1976 = vmatpush2.msra.mxu0 0.0
      %1977 = vmatprep.subr.mxu0 0.0
      %1978 = vmatpush2.msra.mxu0 0.0
      %1979 = vmatprep.subr.mxu0 0.0
      %1980 = vmatpush2.msra.mxu0 0.0
      %1981 = vmatprep.subr.mxu0 0.0
      %1982 = vmatpush2.msra.mxu0 0.0
      %1983 = vmatprep.subr.mxu0 0.0
      %1984 = vmatpush2.msra.mxu0 0.0
      %1985 = vmatprep.subr.mxu0 0.0
      %1986 = vmatpush2.msra.mxu0 0.0
      %1987 = vmatprep.subr.mxu0 0.0
      %1988 = vmatpush2.msra.mxu0 0.0
      %1989 = vmatprep.subr.mxu0 0.0
      %1990 = vmatpush2.msra.mxu0 0.0
      %1991 = vmatprep.mubr.f32.mxu0 0.0
      %1992 = vmatmul.mubr.f32.gmra.mxu0 %v1922
      %v1993 = vpop.f32.mrf.mxu0
      %v1994 = vadd.f32 %v1913, %v1993
      %v1995 = vpop.f32.mrf.mxu0
      %1996 = vmatprep.mubr.f32.mxu0 0.0
      %1997 = vmatmul.mubr.f32.gmra.mxu0 %v1925
      %v1998 = vpop.f32.mrf.mxu0
      %v1999 = vadd.f32 %v1918, %v1998
      %v2000 = vpop.f32.mrf.mxu0
      %2001 = vdwg.mxu0
      %v2002 = vld [vmem:[#allocation2 + $0x2] sm:$0xff]
      %v2003 = vld [vmem:[#allocation2 + $0xa] sm:$0xff]
      %s2004 = scalar_lea.vmem %s3, 768
      %v2005 = vld [vmem:[%s2004] sm:$0xff]
      %v2006 = vld [vmem:[%s2004 + $0x8] sm:$0xff]
      %v2007 = vld [vmem:[%s2004 + $0x10] sm:$0xff]
      %v2008 = vld [vmem:[%s2004 + $0x18] sm:$0xff]
      %v2009 = vld [vmem:[%s2004 + $0x20] sm:$0xff]
      %v2010 = vld [vmem:[%s2004 + $0x28] sm:$0xff]
      %v2011 = vld [vmem:[%s2004 + $0x30] sm:$0xff]
      %v2012 = vld [vmem:[%s2004 + $0x38] sm:$0xff]
      %v2013 = vld [vmem:[%s2004 + $0x40] sm:$0xff]
      %v2014 = vld [vmem:[%s2004 + $0x48] sm:$0xff]
      %v2015 = vld [vmem:[%s2004 + $0x50] sm:$0xff]
      %v2016 = vld [vmem:[%s2004 + $0x58] sm:$0xff]
      %v2018 = vsel %vm287, %v2002, 0
      %v2021 = vsel %vm287, %v2003, 0
      %2023 = vmatprep.subr.mxu0 0.0
      %2024 = vmatpush1.msra.mxu0 0.0
      %2025 = vmatprep.subr.mxu0 0.0
      %2026 = vmatpush1.msra.mxu0 0.0
      %2027 = vmatprep.subr.mxu0 0.0
      %2028 = vmatpush1.msra.mxu0 0.0
      %2029 = vmatprep.subr.mxu0 0.0
      %2030 = vmatpush1.msra.mxu0 0.0
      %2031 = vmatprep.subr.mxu0 0.0
      %2032 = vmatpush1.msra.mxu0 %v2016
      %2033 = vmatprep.subr.mxu0 0.0
      %2034 = vmatpush1.msra.mxu0 %v2015
      %2035 = vmatprep.subr.mxu0 0.0
      %2036 = vmatpush1.msra.mxu0 %v2014
      %2037 = vmatprep.subr.mxu0 0.0
      %2038 = vmatpush1.msra.mxu0 %v2013
      %2039 = vmatprep.subr.mxu0 0.0
      %2040 = vmatpush1.msra.mxu0 %v2012
      %2041 = vmatprep.subr.mxu0 0.0
      %2042 = vmatpush1.msra.mxu0 %v2011
      %2043 = vmatprep.subr.mxu0 0.0
      %2044 = vmatpush1.msra.mxu0 %v2010
      %2045 = vmatprep.subr.mxu0 0.0
      %2046 = vmatpush1.msra.mxu0 %v2009
      %2047 = vmatprep.subr.mxu0 0.0
      %2048 = vmatpush1.msra.mxu0 %v2008
      %2049 = vmatprep.subr.mxu0 0.0
      %2050 = vmatpush1.msra.mxu0 %v2007
      %2051 = vmatprep.subr.mxu0 0.0
      %2052 = vmatpush1.msra.mxu0 %v2006
      %2053 = vmatprep.subr.mxu0 0.0
      %2054 = vmatpush1.msra.mxu0 %v2005
      %2055 = vmatprep.subr.mxu0 0.0
      %2056 = vmatpush2.msra.mxu0 0.0
      %2057 = vmatprep.subr.mxu0 0.0
      %2058 = vmatpush2.msra.mxu0 0.0
      %2059 = vmatprep.subr.mxu0 0.0
      %2060 = vmatpush2.msra.mxu0 0.0
      %2061 = vmatprep.subr.mxu0 0.0
      %2062 = vmatpush2.msra.mxu0 0.0
      %2063 = vmatprep.subr.mxu0 0.0
      %2064 = vmatpush2.msra.mxu0 0.0
      %2065 = vmatprep.subr.mxu0 0.0
      %2066 = vmatpush2.msra.mxu0 0.0
      %2067 = vmatprep.subr.mxu0 0.0
      %2068 = vmatpush2.msra.mxu0 0.0
      %2069 = vmatprep.subr.mxu0 0.0
      %2070 = vmatpush2.msra.mxu0 0.0
      %2071 = vmatprep.subr.mxu0 0.0
      %2072 = vmatpush2.msra.mxu0 0.0
      %2073 = vmatprep.subr.mxu0 0.0
      %2074 = vmatpush2.msra.mxu0 0.0
      %2075 = vmatprep.subr.mxu0 0.0
      %2076 = vmatpush2.msra.mxu0 0.0
      %2077 = vmatprep.subr.mxu0 0.0
      %2078 = vmatpush2.msra.mxu0 0.0
      %2079 = vmatprep.subr.mxu0 0.0
      %2080 = vmatpush2.msra.mxu0 0.0
      %2081 = vmatprep.subr.mxu0 0.0
      %2082 = vmatpush2.msra.mxu0 0.0
      %2083 = vmatprep.subr.mxu0 0.0
      %2084 = vmatpush2.msra.mxu0 0.0
      %2085 = vmatprep.subr.mxu0 0.0
      %2086 = vmatpush2.msra.mxu0 0.0
      %2087 = vmatprep.mubr.f32.mxu0 0.0
      %2088 = vmatmul.mubr.f32.gmra.mxu0 %v2018
      %v2089 = vpop.f32.mrf.mxu0
      %v2090 = vadd.f32 0.0, %v2089
      %v2091 = vpop.f32.mrf.mxu0
      %2092 = vmatprep.mubr.f32.mxu0 0.0
      %2093 = vmatmul.mubr.f32.gmra.mxu0 %v2021
      %v2094 = vpop.f32.mrf.mxu0
      %v2095 = vadd.f32 0.0, %v2094
      %v2096 = vpop.f32.mrf.mxu0
      %2097 = vdwg.mxu0
      %v2098 = vadd.f32 %v1994, %v2090
      %v2099 = vadd.f32 %v1999, %v2095
      %s2100 = scalar_lea.vmem %s4, 2
      %v2101 = vld [vmem:[%s2100] sm:$0x1]
      %v2103 = vlaneseq
      %v2104 = vshrl.u32 %v2103, 7
      %v2105 = vsub.s32 0, %v2104
      %v2106 = vrot.slane %v2101, %v2105
      %v2108 = vadd.f32 %v2098, %v2106
      %v2109 = vadd.f32 %v2099, %v2106
      %v2110 = vmax.f32 %v2108, 0.0
      %v2111 = vmax.f32 %v2109, 0.0
      %v2112 = vld [vmem:[%s5] sm:$0xff]
      %v2113 = vld [vmem:[%s5 + $0x8] sm:$0xff]
      %v2114 = vld [vmem:[%s5 + $0x10] sm:$0xff]
      %v2115 = vld [vmem:[%s5 + $0x18] sm:$0xff]
      %v2116 = vld [vmem:[%s5 + $0x20] sm:$0xff]
      %v2117 = vld [vmem:[%s5 + $0x28] sm:$0xff]
      %v2118 = vld [vmem:[%s5 + $0x30] sm:$0xff]
      %v2119 = vld [vmem:[%s5 + $0x38] sm:$0xff]
      %v2120 = vld [vmem:[%s5 + $0x40] sm:$0xff]
      %v2121 = vld [vmem:[%s5 + $0x48] sm:$0xff]
      %v2122 = vld [vmem:[%s5 + $0x50] sm:$0xff]
      %v2123 = vld [vmem:[%s5 + $0x58] sm:$0xff]
      %v2124 = vld [vmem:[%s5 + $0x60] sm:$0xff]
      %v2125 = vld [vmem:[%s5 + $0x68] sm:$0xff]
      %v2126 = vld [vmem:[%s5 + $0x70] sm:$0xff]
      %v2127 = vld [vmem:[%s5 + $0x78] sm:$0xff]
      %v2128 = vld [vmem:[%s5 + $0x80] sm:$0xff]
      %v2129 = vld [vmem:[%s5 + $0x88] sm:$0xff]
      %v2130 = vld [vmem:[%s5 + $0x90] sm:$0xff]
      %v2131 = vld [vmem:[%s5 + $0x98] sm:$0xff]
      %v2132 = vld [vmem:[%s5 + $0xa0] sm:$0xff]
      %v2133 = vld [vmem:[%s5 + $0xa8] sm:$0xff]
      %v2134 = vld [vmem:[%s5 + $0xb0] sm:$0xff]
      %v2135 = vld [vmem:[%s5 + $0xb8] sm:$0xff]
      %v2136 = vld [vmem:[%s5 + $0xc0] sm:$0xff]
      %v2137 = vld [vmem:[%s5 + $0xc8] sm:$0xff]
      %v2138 = vld [vmem:[%s5 + $0xd0] sm:$0xff]
      %v2139 = vld [vmem:[%s5 + $0xd8] sm:$0xff]
      %v2140 = vld [vmem:[%s5 + $0xe0] sm:$0xff]
      %v2141 = vld [vmem:[%s5 + $0xe8] sm:$0xff]
      %v2142 = vld [vmem:[%s5 + $0xf0] sm:$0xff]
      %v2143 = vld [vmem:[%s5 + $0xf8] sm:$0xff]
      %v2144 = vld [vmem:[%s5 + $0x100] sm:$0xff]
      %v2145 = vld [vmem:[%s5 + $0x108] sm:$0xff]
      %v2146 = vld [vmem:[%s5 + $0x110] sm:$0xff]
      %v2147 = vld [vmem:[%s5 + $0x118] sm:$0xff]
      %v2148 = vld [vmem:[%s5 + $0x120] sm:$0xff]
      %v2149 = vld [vmem:[%s5 + $0x128] sm:$0xff]
      %v2150 = vld [vmem:[%s5 + $0x130] sm:$0xff]
      %v2151 = vld [vmem:[%s5 + $0x138] sm:$0xff]
      %v2152 = vld [vmem:[%s5 + $0x140] sm:$0xff]
      %v2153 = vld [vmem:[%s5 + $0x148] sm:$0xff]
      %v2154 = vld [vmem:[%s5 + $0x150] sm:$0xff]
      %v2155 = vld [vmem:[%s5 + $0x158] sm:$0xff]
      %v2156 = vld [vmem:[%s5 + $0x160] sm:$0xff]
      %v2157 = vld [vmem:[%s5 + $0x168] sm:$0xff]
      %v2158 = vld [vmem:[%s5 + $0x170] sm:$0xff]
      %v2159 = vld [vmem:[%s5 + $0x178] sm:$0xff]
      %s2160 = scalar_lea.vmem %s5, 384
      %v2161 = vld [vmem:[%s2160] sm:$0xff]
      %v2162 = vld [vmem:[%s2160 + $0x8] sm:$0xff]
      %v2163 = vld [vmem:[%s2160 + $0x10] sm:$0xff]
      %v2164 = vld [vmem:[%s2160 + $0x18] sm:$0xff]
      %v2165 = vld [vmem:[%s2160 + $0x20] sm:$0xff]
      %v2166 = vld [vmem:[%s2160 + $0x28] sm:$0xff]
      %v2167 = vld [vmem:[%s2160 + $0x30] sm:$0xff]
      %v2168 = vld [vmem:[%s2160 + $0x38] sm:$0xff]
      %v2169 = vld [vmem:[%s2160 + $0x40] sm:$0xff]
      %v2170 = vld [vmem:[%s2160 + $0x48] sm:$0xff]
      %v2171 = vld [vmem:[%s2160 + $0x50] sm:$0xff]
      %v2172 = vld [vmem:[%s2160 + $0x58] sm:$0xff]
      %v2173 = vld [vmem:[%s2160 + $0x60] sm:$0xff]
      %v2174 = vld [vmem:[%s2160 + $0x68] sm:$0xff]
      %v2175 = vld [vmem:[%s2160 + $0x70] sm:$0xff]
      %v2176 = vld [vmem:[%s2160 + $0x78] sm:$0xff]
      %v2177 = vld [vmem:[%s2160 + $0x80] sm:$0xff]
      %v2178 = vld [vmem:[%s2160 + $0x88] sm:$0xff]
      %v2179 = vld [vmem:[%s2160 + $0x90] sm:$0xff]
      %v2180 = vld [vmem:[%s2160 + $0x98] sm:$0xff]
      %v2181 = vld [vmem:[%s2160 + $0xa0] sm:$0xff]
      %v2182 = vld [vmem:[%s2160 + $0xa8] sm:$0xff]
      %v2183 = vld [vmem:[%s2160 + $0xb0] sm:$0xff]
      %v2184 = vld [vmem:[%s2160 + $0xb8] sm:$0xff]
      %v2185 = vld [vmem:[%s2160 + $0xc0] sm:$0xff]
      %v2186 = vld [vmem:[%s2160 + $0xc8] sm:$0xff]
      %v2187 = vld [vmem:[%s2160 + $0xd0] sm:$0xff]
      %v2188 = vld [vmem:[%s2160 + $0xd8] sm:$0xff]
      %v2189 = vld [vmem:[%s2160 + $0xe0] sm:$0xff]
      %v2190 = vld [vmem:[%s2160 + $0xe8] sm:$0xff]
      %v2191 = vld [vmem:[%s2160 + $0xf0] sm:$0xff]
      %v2192 = vld [vmem:[%s2160 + $0xf8] sm:$0xff]
      %v2193 = vld [vmem:[%s2160 + $0x100] sm:$0xff]
      %v2194 = vld [vmem:[%s2160 + $0x108] sm:$0xff]
      %v2195 = vld [vmem:[%s2160 + $0x110] sm:$0xff]
      %v2196 = vld [vmem:[%s2160 + $0x118] sm:$0xff]
      %v2197 = vld [vmem:[%s2160 + $0x120] sm:$0xff]
      %v2198 = vld [vmem:[%s2160 + $0x128] sm:$0xff]
      %v2199 = vld [vmem:[%s2160 + $0x130] sm:$0xff]
      %v2200 = vld [vmem:[%s2160 + $0x138] sm:$0xff]
      %v2201 = vld [vmem:[%s2160 + $0x140] sm:$0xff]
      %v2202 = vld [vmem:[%s2160 + $0x148] sm:$0xff]
      %v2203 = vld [vmem:[%s2160 + $0x150] sm:$0xff]
      %v2204 = vld [vmem:[%s2160 + $0x158] sm:$0xff]
      %v2205 = vld [vmem:[%s2160 + $0x160] sm:$0xff]
      %v2206 = vld [vmem:[%s2160 + $0x168] sm:$0xff]
      %v2207 = vld [vmem:[%s2160 + $0x170] sm:$0xff]
      %v2208 = vld [vmem:[%s2160 + $0x178] sm:$0xff]
      %v2210 = vsel %vm287, %v1804, 0
      %v2213 = vsel %vm287, %v1805, 0
      %2215 = vmatprep.subr.mxu0 0.0
      %2216 = vmatpush1.msra.mxu0 0.0
      %2217 = vmatprep.subr.mxu0 0.0
      %2218 = vmatpush1.msra.mxu0 0.0
      %2219 = vmatprep.subr.mxu0 0.0
      %2220 = vmatpush1.msra.mxu0 0.0
      %2221 = vmatprep.subr.mxu0 0.0
      %2222 = vmatpush1.msra.mxu0 0.0
      %2223 = vmatprep.subr.mxu0 %v2206
      %2224 = vmatpush1.msra.mxu0 %v2205
      %2225 = vmatprep.subr.mxu0 %v2202
      %2226 = vmatpush1.msra.mxu0 %v2201
      %2227 = vmatprep.subr.mxu0 %v2198
      %2228 = vmatpush1.msra.mxu0 %v2197
      %2229 = vmatprep.subr.mxu0 %v2194
      %2230 = vmatpush1.msra.mxu0 %v2193
      %2231 = vmatprep.subr.mxu0 %v2190
      %2232 = vmatpush1.msra.mxu0 %v2189
      %2233 = vmatprep.subr.mxu0 %v2186
      %2234 = vmatpush1.msra.mxu0 %v2185
      %2235 = vmatprep.subr.mxu0 %v2182
      %2236 = vmatpush1.msra.mxu0 %v2181
      %2237 = vmatprep.subr.mxu0 %v2178
      %2238 = vmatpush1.msra.mxu0 %v2177
      %2239 = vmatprep.subr.mxu0 %v2174
      %2240 = vmatpush1.msra.mxu0 %v2173
      %2241 = vmatprep.subr.mxu0 %v2170
      %2242 = vmatpush1.msra.mxu0 %v2169
      %2243 = vmatprep.subr.mxu0 %v2166
      %2244 = vmatpush1.msra.mxu0 %v2165
      %2245 = vmatprep.subr.mxu0 %v2162
      %2246 = vmatpush1.msra.mxu0 %v2161
      %2247 = vmatprep.subr.mxu0 0.0
      %2248 = vmatpush2.msra.mxu0 0.0
      %2249 = vmatprep.subr.mxu0 0.0
      %2250 = vmatpush2.msra.mxu0 0.0
      %2251 = vmatprep.subr.mxu0 0.0
      %2252 = vmatpush2.msra.mxu0 0.0
      %2253 = vmatprep.subr.mxu0 0.0
      %2254 = vmatpush2.msra.mxu0 0.0
      %2255 = vmatprep.subr.mxu0 0.0
      %2256 = vmatpush2.msra.mxu0 0.0
      %2257 = vmatprep.subr.mxu0 0.0
      %2258 = vmatpush2.msra.mxu0 0.0
      %2259 = vmatprep.subr.mxu0 0.0
      %2260 = vmatpush2.msra.mxu0 0.0
      %2261 = vmatprep.subr.mxu0 0.0
      %2262 = vmatpush2.msra.mxu0 0.0
      %2263 = vmatprep.subr.mxu0 0.0
      %2264 = vmatpush2.msra.mxu0 0.0
      %2265 = vmatprep.subr.mxu0 0.0
      %2266 = vmatpush2.msra.mxu0 0.0
      %2267 = vmatprep.subr.mxu0 0.0
      %2268 = vmatpush2.msra.mxu0 0.0
      %2269 = vmatprep.subr.mxu0 0.0
      %2270 = vmatpush2.msra.mxu0 0.0
      %2271 = vmatprep.subr.mxu0 0.0
      %2272 = vmatpush2.msra.mxu0 0.0
      %2273 = vmatprep.subr.mxu0 0.0
      %2274 = vmatpush2.msra.mxu0 0.0
      %2275 = vmatprep.subr.mxu0 0.0
      %2276 = vmatpush2.msra.mxu0 0.0
      %2277 = vmatprep.subr.mxu0 0.0
      %2278 = vmatpush2.msra.mxu0 0.0
      %2279 = vmatprep.mubr.f32.mxu0 0.0
      %2280 = vmatmul.mubr.f32.gmra.mxu0 %v2210
      %v2281 = vpop.f32.mrf.mxu0
      %v2282 = vadd.f32 0.0, %v2281
      %v2283 = vpop.f32.mrf.mxu0
      %v2284 = vadd.f32 0.0, %v2283
      %2285 = vmatprep.mubr.f32.mxu0 0.0
      %2286 = vmatmul.mubr.f32.gmra.mxu0 %v2213
      %v2287 = vpop.f32.mrf.mxu0
      %v2288 = vadd.f32 0.0, %v2287
      %v2289 = vpop.f32.mrf.mxu0
      %v2290 = vadd.f32 0.0, %v2289
      %2291 = vdwg.mxu0
      %2292 = vmatprep.subr.mxu0 0.0
      %2293 = vmatpush1.msra.mxu0 0.0
      %2294 = vmatprep.subr.mxu0 0.0
      %2295 = vmatpush1.msra.mxu0 0.0
      %2296 = vmatprep.subr.mxu0 0.0
      %2297 = vmatpush1.msra.mxu0 0.0
      %2298 = vmatprep.subr.mxu0 0.0
      %2299 = vmatpush1.msra.mxu0 0.0
      %2300 = vmatprep.subr.mxu0 %v2208
      %2301 = vmatpush1.msra.mxu0 %v2207
      %2302 = vmatprep.subr.mxu0 %v2204
      %2303 = vmatpush1.msra.mxu0 %v2203
      %2304 = vmatprep.subr.mxu0 %v2200
      %2305 = vmatpush1.msra.mxu0 %v2199
      %2306 = vmatprep.subr.mxu0 %v2196
      %2307 = vmatpush1.msra.mxu0 %v2195
      %2308 = vmatprep.subr.mxu0 %v2192
      %2309 = vmatpush1.msra.mxu0 %v2191
      %2310 = vmatprep.subr.mxu0 %v2188
      %2311 = vmatpush1.msra.mxu0 %v2187
      %2312 = vmatprep.subr.mxu0 %v2184
      %2313 = vmatpush1.msra.mxu0 %v2183
      %2314 = vmatprep.subr.mxu0 %v2180
      %2315 = vmatpush1.msra.mxu0 %v2179
      %2316 = vmatprep.subr.mxu0 %v2176
      %2317 = vmatpush1.msra.mxu0 %v2175
      %2318 = vmatprep.subr.mxu0 %v2172
      %2319 = vmatpush1.msra.mxu0 %v2171
      %2320 = vmatprep.subr.mxu0 %v2168
      %2321 = vmatpush1.msra.mxu0 %v2167
      %2322 = vmatprep.subr.mxu0 %v2164
      %2323 = vmatpush1.msra.mxu0 %v2163
      %2324 = vmatprep.subr.mxu0 0.0
      %2325 = vmatpush2.msra.mxu0 0.0
      %2326 = vmatprep.subr.mxu0 0.0
      %2327 = vmatpush2.msra.mxu0 0.0
      %2328 = vmatprep.subr.mxu0 0.0
      %2329 = vmatpush2.msra.mxu0 0.0
      %2330 = vmatprep.subr.mxu0 0.0
      %2331 = vmatpush2.msra.mxu0 0.0
      %2332 = vmatprep.subr.mxu0 0.0
      %2333 = vmatpush2.msra.mxu0 0.0
      %2334 = vmatprep.subr.mxu0 0.0
      %2335 = vmatpush2.msra.mxu0 0.0
      %2336 = vmatprep.subr.mxu0 0.0
      %2337 = vmatpush2.msra.mxu0 0.0
      %2338 = vmatprep.subr.mxu0 0.0
      %2339 = vmatpush2.msra.mxu0 0.0
      %2340 = vmatprep.subr.mxu0 0.0
      %2341 = vmatpush2.msra.mxu0 0.0
      %2342 = vmatprep.subr.mxu0 0.0
      %2343 = vmatpush2.msra.mxu0 0.0
      %2344 = vmatprep.subr.mxu0 0.0
      %2345 = vmatpush2.msra.mxu0 0.0
      %2346 = vmatprep.subr.mxu0 0.0
      %2347 = vmatpush2.msra.mxu0 0.0
      %2348 = vmatprep.subr.mxu0 0.0
      %2349 = vmatpush2.msra.mxu0 0.0
      %2350 = vmatprep.subr.mxu0 0.0
      %2351 = vmatpush2.msra.mxu0 0.0
      %2352 = vmatprep.subr.mxu0 0.0
      %2353 = vmatpush2.msra.mxu0 0.0
      %2354 = vmatprep.subr.mxu0 0.0
      %2355 = vmatpush2.msra.mxu0 0.0
      %2356 = vmatprep.mubr.f32.mxu0 0.0
      %2357 = vmatmul.mubr.f32.gmra.mxu0 %v2210
      %v2358 = vpop.f32.mrf.mxu0
      %v2359 = vadd.f32 0.0, %v2358
      %v2360 = vpop.f32.mrf.mxu0
      %v2361 = vadd.f32 0.0, %v2360
      %2362 = vmatprep.mubr.f32.mxu0 0.0
      %2363 = vmatmul.mubr.f32.gmra.mxu0 %v2213
      %v2364 = vpop.f32.mrf.mxu0
      %v2365 = vadd.f32 0.0, %v2364
      %v2366 = vpop.f32.mrf.mxu0
      %v2367 = vadd.f32 0.0, %v2366
      %2368 = vdwg.mxu0
      %v2370 = vsel %vm287, %v1498, 0
      %v2373 = vsel %vm287, %v1499, 0
      %2375 = vmatprep.subr.mxu0 0.0
      %2376 = vmatpush1.msra.mxu0 0.0
      %2377 = vmatprep.subr.mxu0 0.0
      %2378 = vmatpush1.msra.mxu0 0.0
      %2379 = vmatprep.subr.mxu0 0.0
      %2380 = vmatpush1.msra.mxu0 0.0
      %2381 = vmatprep.subr.mxu0 0.0
      %2382 = vmatpush1.msra.mxu0 0.0
      %2383 = vmatprep.subr.mxu0 %v2157
      %2384 = vmatpush1.msra.mxu0 %v2156
      %2385 = vmatprep.subr.mxu0 %v2153
      %2386 = vmatpush1.msra.mxu0 %v2152
      %2387 = vmatprep.subr.mxu0 %v2149
      %2388 = vmatpush1.msra.mxu0 %v2148
      %2389 = vmatprep.subr.mxu0 %v2145
      %2390 = vmatpush1.msra.mxu0 %v2144
      %2391 = vmatprep.subr.mxu0 %v2141
      %2392 = vmatpush1.msra.mxu0 %v2140
      %2393 = vmatprep.subr.mxu0 %v2137
      %2394 = vmatpush1.msra.mxu0 %v2136
      %2395 = vmatprep.subr.mxu0 %v2133
      %2396 = vmatpush1.msra.mxu0 %v2132
      %2397 = vmatprep.subr.mxu0 %v2129
      %2398 = vmatpush1.msra.mxu0 %v2128
      %2399 = vmatprep.subr.mxu0 %v2125
      %2400 = vmatpush1.msra.mxu0 %v2124
      %2401 = vmatprep.subr.mxu0 %v2121
      %2402 = vmatpush1.msra.mxu0 %v2120
      %2403 = vmatprep.subr.mxu0 %v2117
      %2404 = vmatpush1.msra.mxu0 %v2116
      %2405 = vmatprep.subr.mxu0 %v2113
      %2406 = vmatpush1.msra.mxu0 %v2112
      %2407 = vmatprep.subr.mxu0 0.0
      %2408 = vmatpush2.msra.mxu0 0.0
      %2409 = vmatprep.subr.mxu0 0.0
      %2410 = vmatpush2.msra.mxu0 0.0
      %2411 = vmatprep.subr.mxu0 0.0
      %2412 = vmatpush2.msra.mxu0 0.0
      %2413 = vmatprep.subr.mxu0 0.0
      %2414 = vmatpush2.msra.mxu0 0.0
      %2415 = vmatprep.subr.mxu0 0.0
      %2416 = vmatpush2.msra.mxu0 0.0
      %2417 = vmatprep.subr.mxu0 0.0
      %2418 = vmatpush2.msra.mxu0 0.0
      %2419 = vmatprep.subr.mxu0 0.0
      %2420 = vmatpush2.msra.mxu0 0.0
      %2421 = vmatprep.subr.mxu0 0.0
      %2422 = vmatpush2.msra.mxu0 0.0
      %2423 = vmatprep.subr.mxu0 0.0
      %2424 = vmatpush2.msra.mxu0 0.0
      %2425 = vmatprep.subr.mxu0 0.0
      %2426 = vmatpush2.msra.mxu0 0.0
      %2427 = vmatprep.subr.mxu0 0.0
      %2428 = vmatpush2.msra.mxu0 0.0
      %2429 = vmatprep.subr.mxu0 0.0
      %2430 = vmatpush2.msra.mxu0 0.0
      %2431 = vmatprep.subr.mxu0 0.0
      %2432 = vmatpush2.msra.mxu0 0.0
      %2433 = vmatprep.subr.mxu0 0.0
      %2434 = vmatpush2.msra.mxu0 0.0
      %2435 = vmatprep.subr.mxu0 0.0
      %2436 = vmatpush2.msra.mxu0 0.0
      %2437 = vmatprep.subr.mxu0 0.0
      %2438 = vmatpush2.msra.mxu0 0.0
      %2439 = vmatprep.mubr.f32.mxu0 0.0
      %2440 = vmatmul.mubr.f32.gmra.mxu0 %v2370
      %v2441 = vpop.f32.mrf.mxu0
      %v2442 = vadd.f32 %v2282, %v2441
      %v2443 = vpop.f32.mrf.mxu0
      %v2444 = vadd.f32 %v2284, %v2443
      %2445 = vmatprep.mubr.f32.mxu0 0.0
      %2446 = vmatmul.mubr.f32.gmra.mxu0 %v2373
      %v2447 = vpop.f32.mrf.mxu0
      %v2448 = vadd.f32 %v2288, %v2447
      %v2449 = vpop.f32.mrf.mxu0
      %v2450 = vadd.f32 %v2290, %v2449
      %2451 = vdwg.mxu0
      %2452 = vmatprep.subr.mxu0 0.0
      %2453 = vmatpush1.msra.mxu0 0.0
      %2454 = vmatprep.subr.mxu0 0.0
      %2455 = vmatpush1.msra.mxu0 0.0
      %2456 = vmatprep.subr.mxu0 0.0
      %2457 = vmatpush1.msra.mxu0 0.0
      %2458 = vmatprep.subr.mxu0 0.0
      %2459 = vmatpush1.msra.mxu0 0.0
      %2460 = vmatprep.subr.mxu0 %v2159
      %2461 = vmatpush1.msra.mxu0 %v2158
      %2462 = vmatprep.subr.mxu0 %v2155
      %2463 = vmatpush1.msra.mxu0 %v2154
      %2464 = vmatprep.subr.mxu0 %v2151
      %2465 = vmatpush1.msra.mxu0 %v2150
      %2466 = vmatprep.subr.mxu0 %v2147
      %2467 = vmatpush1.msra.mxu0 %v2146
      %2468 = vmatprep.subr.mxu0 %v2143
      %2469 = vmatpush1.msra.mxu0 %v2142
      %2470 = vmatprep.subr.mxu0 %v2139
      %2471 = vmatpush1.msra.mxu0 %v2138
      %2472 = vmatprep.subr.mxu0 %v2135
      %2473 = vmatpush1.msra.mxu0 %v2134
      %2474 = vmatprep.subr.mxu0 %v2131
      %2475 = vmatpush1.msra.mxu0 %v2130
      %2476 = vmatprep.subr.mxu0 %v2127
      %2477 = vmatpush1.msra.mxu0 %v2126
      %2478 = vmatprep.subr.mxu0 %v2123
      %2479 = vmatpush1.msra.mxu0 %v2122
      %2480 = vmatprep.subr.mxu0 %v2119
      %2481 = vmatpush1.msra.mxu0 %v2118
      %2482 = vmatprep.subr.mxu0 %v2115
      %2483 = vmatpush1.msra.mxu0 %v2114
      %2484 = vmatprep.subr.mxu0 0.0
      %2485 = vmatpush2.msra.mxu0 0.0
      %2486 = vmatprep.subr.mxu0 0.0
      %2487 = vmatpush2.msra.mxu0 0.0
      %2488 = vmatprep.subr.mxu0 0.0
      %2489 = vmatpush2.msra.mxu0 0.0
      %2490 = vmatprep.subr.mxu0 0.0
      %2491 = vmatpush2.msra.mxu0 0.0
      %2492 = vmatprep.subr.mxu0 0.0
      %2493 = vmatpush2.msra.mxu0 0.0
      %2494 = vmatprep.subr.mxu0 0.0
      %2495 = vmatpush2.msra.mxu0 0.0
      %2496 = vmatprep.subr.mxu0 0.0
      %2497 = vmatpush2.msra.mxu0 0.0
      %2498 = vmatprep.subr.mxu0 0.0
      %2499 = vmatpush2.msra.mxu0 0.0
      %2500 = vmatprep.subr.mxu0 0.0
      %2501 = vmatpush2.msra.mxu0 0.0
      %2502 = vmatprep.subr.mxu0 0.0
      %2503 = vmatpush2.msra.mxu0 0.0
      %2504 = vmatprep.subr.mxu0 0.0
      %2505 = vmatpush2.msra.mxu0 0.0
      %2506 = vmatprep.subr.mxu0 0.0
      %2507 = vmatpush2.msra.mxu0 0.0
      %2508 = vmatprep.subr.mxu0 0.0
      %2509 = vmatpush2.msra.mxu0 0.0
      %2510 = vmatprep.subr.mxu0 0.0
      %2511 = vmatpush2.msra.mxu0 0.0
      %2512 = vmatprep.subr.mxu0 0.0
      %2513 = vmatpush2.msra.mxu0 0.0
      %2514 = vmatprep.subr.mxu0 0.0
      %2515 = vmatpush2.msra.mxu0 0.0
      %2516 = vmatprep.mubr.f32.mxu0 0.0
      %2517 = vmatmul.mubr.f32.gmra.mxu0 %v2370
      %v2518 = vpop.f32.mrf.mxu0
      %v2519 = vadd.f32 %v2359, %v2518
      %v2520 = vpop.f32.mrf.mxu0
      %v2521 = vadd.f32 %v2361, %v2520
      %2522 = vmatprep.mubr.f32.mxu0 0.0
      %2523 = vmatmul.mubr.f32.gmra.mxu0 %v2373
      %v2524 = vpop.f32.mrf.mxu0
      %v2525 = vadd.f32 %v2365, %v2524
      %v2526 = vpop.f32.mrf.mxu0
      %v2527 = vadd.f32 %v2367, %v2526
      %2528 = vdwg.mxu0
      %s2529 = scalar_lea.vmem %s5, 768
      %v2530 = vld [vmem:[%s2529] sm:$0xff]
      %v2531 = vld [vmem:[%s2529 + $0x8] sm:$0xff]
      %v2532 = vld [vmem:[%s2529 + $0x10] sm:$0xff]
      %v2533 = vld [vmem:[%s2529 + $0x18] sm:$0xff]
      %v2534 = vld [vmem:[%s2529 + $0x20] sm:$0xff]
      %v2535 = vld [vmem:[%s2529 + $0x28] sm:$0xff]
      %v2536 = vld [vmem:[%s2529 + $0x30] sm:$0xff]
      %v2537 = vld [vmem:[%s2529 + $0x38] sm:$0xff]
      %v2538 = vld [vmem:[%s2529 + $0x40] sm:$0xff]
      %v2539 = vld [vmem:[%s2529 + $0x48] sm:$0xff]
      %v2540 = vld [vmem:[%s2529 + $0x50] sm:$0xff]
      %v2541 = vld [vmem:[%s2529 + $0x58] sm:$0xff]
      %v2542 = vld [vmem:[%s2529 + $0x60] sm:$0xff]
      %v2543 = vld [vmem:[%s2529 + $0x68] sm:$0xff]
      %v2544 = vld [vmem:[%s2529 + $0x70] sm:$0xff]
      %v2545 = vld [vmem:[%s2529 + $0x78] sm:$0xff]
      %v2546 = vld [vmem:[%s2529 + $0x80] sm:$0xff]
      %v2547 = vld [vmem:[%s2529 + $0x88] sm:$0xff]
      %v2548 = vld [vmem:[%s2529 + $0x90] sm:$0xff]
      %v2549 = vld [vmem:[%s2529 + $0x98] sm:$0xff]
      %v2550 = vld [vmem:[%s2529 + $0xa0] sm:$0xff]
      %v2551 = vld [vmem:[%s2529 + $0xa8] sm:$0xff]
      %v2552 = vld [vmem:[%s2529 + $0xb0] sm:$0xff]
      %v2553 = vld [vmem:[%s2529 + $0xb8] sm:$0xff]
      %v2554 = vld [vmem:[%s2529 + $0xc0] sm:$0xff]
      %v2555 = vld [vmem:[%s2529 + $0xc8] sm:$0xff]
      %v2556 = vld [vmem:[%s2529 + $0xd0] sm:$0xff]
      %v2557 = vld [vmem:[%s2529 + $0xd8] sm:$0xff]
      %v2558 = vld [vmem:[%s2529 + $0xe0] sm:$0xff]
      %v2559 = vld [vmem:[%s2529 + $0xe8] sm:$0xff]
      %v2560 = vld [vmem:[%s2529 + $0xf0] sm:$0xff]
      %v2561 = vld [vmem:[%s2529 + $0xf8] sm:$0xff]
      %v2562 = vld [vmem:[%s2529 + $0x100] sm:$0xff]
      %v2563 = vld [vmem:[%s2529 + $0x108] sm:$0xff]
      %v2564 = vld [vmem:[%s2529 + $0x110] sm:$0xff]
      %v2565 = vld [vmem:[%s2529 + $0x118] sm:$0xff]
      %v2566 = vld [vmem:[%s2529 + $0x120] sm:$0xff]
      %v2567 = vld [vmem:[%s2529 + $0x128] sm:$0xff]
      %v2568 = vld [vmem:[%s2529 + $0x130] sm:$0xff]
      %v2569 = vld [vmem:[%s2529 + $0x138] sm:$0xff]
      %v2570 = vld [vmem:[%s2529 + $0x140] sm:$0xff]
      %v2571 = vld [vmem:[%s2529 + $0x148] sm:$0xff]
      %v2572 = vld [vmem:[%s2529 + $0x150] sm:$0xff]
      %v2573 = vld [vmem:[%s2529 + $0x158] sm:$0xff]
      %v2574 = vld [vmem:[%s2529 + $0x160] sm:$0xff]
      %v2575 = vld [vmem:[%s2529 + $0x168] sm:$0xff]
      %v2576 = vld [vmem:[%s2529 + $0x170] sm:$0xff]
      %v2577 = vld [vmem:[%s2529 + $0x178] sm:$0xff]
      %v2579 = vsel %vm287, %v2110, 0
      %v2582 = vsel %vm287, %v2111, 0
      %2584 = vmatprep.subr.mxu0 0.0
      %2585 = vmatpush1.msra.mxu0 0.0
      %2586 = vmatprep.subr.mxu0 0.0
      %2587 = vmatpush1.msra.mxu0 0.0
      %2588 = vmatprep.subr.mxu0 0.0
      %2589 = vmatpush1.msra.mxu0 0.0
      %2590 = vmatprep.subr.mxu0 0.0
      %2591 = vmatpush1.msra.mxu0 0.0
      %2592 = vmatprep.subr.mxu0 %v2575
      %2593 = vmatpush1.msra.mxu0 %v2574
      %2594 = vmatprep.subr.mxu0 %v2571
      %2595 = vmatpush1.msra.mxu0 %v2570
      %2596 = vmatprep.subr.mxu0 %v2567
      %2597 = vmatpush1.msra.mxu0 %v2566
      %2598 = vmatprep.subr.mxu0 %v2563
      %2599 = vmatpush1.msra.mxu0 %v2562
      %2600 = vmatprep.subr.mxu0 %v2559
      %2601 = vmatpush1.msra.mxu0 %v2558
      %2602 = vmatprep.subr.mxu0 %v2555
      %2603 = vmatpush1.msra.mxu0 %v2554
      %2604 = vmatprep.subr.mxu0 %v2551
      %2605 = vmatpush1.msra.mxu0 %v2550
      %2606 = vmatprep.subr.mxu0 %v2547
      %2607 = vmatpush1.msra.mxu0 %v2546
      %2608 = vmatprep.subr.mxu0 %v2543
      %2609 = vmatpush1.msra.mxu0 %v2542
      %2610 = vmatprep.subr.mxu0 %v2539
      %2611 = vmatpush1.msra.mxu0 %v2538
      %2612 = vmatprep.subr.mxu0 %v2535
      %2613 = vmatpush1.msra.mxu0 %v2534
      %2614 = vmatprep.subr.mxu0 %v2531
      %2615 = vmatpush1.msra.mxu0 %v2530
      %2616 = vmatprep.subr.mxu0 0.0
      %2617 = vmatpush2.msra.mxu0 0.0
      %2618 = vmatprep.subr.mxu0 0.0
      %2619 = vmatpush2.msra.mxu0 0.0
      %2620 = vmatprep.subr.mxu0 0.0
      %2621 = vmatpush2.msra.mxu0 0.0
      %2622 = vmatprep.subr.mxu0 0.0
      %2623 = vmatpush2.msra.mxu0 0.0
      %2624 = vmatprep.subr.mxu0 0.0
      %2625 = vmatpush2.msra.mxu0 0.0
      %2626 = vmatprep.subr.mxu0 0.0
      %2627 = vmatpush2.msra.mxu0 0.0
      %2628 = vmatprep.subr.mxu0 0.0
      %2629 = vmatpush2.msra.mxu0 0.0
      %2630 = vmatprep.subr.mxu0 0.0
      %2631 = vmatpush2.msra.mxu0 0.0
      %2632 = vmatprep.subr.mxu0 0.0
      %2633 = vmatpush2.msra.mxu0 0.0
      %2634 = vmatprep.subr.mxu0 0.0
      %2635 = vmatpush2.msra.mxu0 0.0
      %2636 = vmatprep.subr.mxu0 0.0
      %2637 = vmatpush2.msra.mxu0 0.0
      %2638 = vmatprep.subr.mxu0 0.0
      %2639 = vmatpush2.msra.mxu0 0.0
      %2640 = vmatprep.subr.mxu0 0.0
      %2641 = vmatpush2.msra.mxu0 0.0
      %2642 = vmatprep.subr.mxu0 0.0
      %2643 = vmatpush2.msra.mxu0 0.0
      %2644 = vmatprep.subr.mxu0 0.0
      %2645 = vmatpush2.msra.mxu0 0.0
      %2646 = vmatprep.subr.mxu0 0.0
      %2647 = vmatpush2.msra.mxu0 0.0
      %2648 = vmatprep.mubr.f32.mxu0 0.0
      %2649 = vmatmul.mubr.f32.gmra.mxu0 %v2579
      %v2650 = vpop.f32.mrf.mxu0
      %v2651 = vadd.f32 0.0, %v2650
      %v2652 = vpop.f32.mrf.mxu0
      %v2653 = vadd.f32 0.0, %v2652
      %2654 = vmatprep.mubr.f32.mxu0 0.0
      %2655 = vmatmul.mubr.f32.gmra.mxu0 %v2582
      %v2656 = vpop.f32.mrf.mxu0
      %v2657 = vadd.f32 0.0, %v2656
      %v2658 = vpop.f32.mrf.mxu0
      %v2659 = vadd.f32 0.0, %v2658
      %2660 = vdwg.mxu0
      %2661 = vmatprep.subr.mxu0 0.0
      %2662 = vmatpush1.msra.mxu0 0.0
      %2663 = vmatprep.subr.mxu0 0.0
      %2664 = vmatpush1.msra.mxu0 0.0
      %2665 = vmatprep.subr.mxu0 0.0
      %2666 = vmatpush1.msra.mxu0 0.0
      %2667 = vmatprep.subr.mxu0 0.0
      %2668 = vmatpush1.msra.mxu0 0.0
      %2669 = vmatprep.subr.mxu0 %v2577
      %2670 = vmatpush1.msra.mxu0 %v2576
      %2671 = vmatprep.subr.mxu0 %v2573
      %2672 = vmatpush1.msra.mxu0 %v2572
      %2673 = vmatprep.subr.mxu0 %v2569
      %2674 = vmatpush1.msra.mxu0 %v2568
      %2675 = vmatprep.subr.mxu0 %v2565
      %2676 = vmatpush1.msra.mxu0 %v2564
      %2677 = vmatprep.subr.mxu0 %v2561
      %2678 = vmatpush1.msra.mxu0 %v2560
      %2679 = vmatprep.subr.mxu0 %v2557
      %2680 = vmatpush1.msra.mxu0 %v2556
      %2681 = vmatprep.subr.mxu0 %v2553
      %2682 = vmatpush1.msra.mxu0 %v2552
      %2683 = vmatprep.subr.mxu0 %v2549
      %2684 = vmatpush1.msra.mxu0 %v2548
      %2685 = vmatprep.subr.mxu0 %v2545
      %2686 = vmatpush1.msra.mxu0 %v2544
      %2687 = vmatprep.subr.mxu0 %v2541
      %2688 = vmatpush1.msra.mxu0 %v2540
      %2689 = vmatprep.subr.mxu0 %v2537
      %2690 = vmatpush1.msra.mxu0 %v2536
      %2691 = vmatprep.subr.mxu0 %v2533
      %2692 = vmatpush1.msra.mxu0 %v2532
      %2693 = vmatprep.subr.mxu0 0.0
      %2694 = vmatpush2.msra.mxu0 0.0
      %2695 = vmatprep.subr.mxu0 0.0
      %2696 = vmatpush2.msra.mxu0 0.0
      %2697 = vmatprep.subr.mxu0 0.0
      %2698 = vmatpush2.msra.mxu0 0.0
      %2699 = vmatprep.subr.mxu0 0.0
      %2700 = vmatpush2.msra.mxu0 0.0
      %2701 = vmatprep.subr.mxu0 0.0
      %2702 = vmatpush2.msra.mxu0 0.0
      %2703 = vmatprep.subr.mxu0 0.0
      %2704 = vmatpush2.msra.mxu0 0.0
      %2705 = vmatprep.subr.mxu0 0.0
      %2706 = vmatpush2.msra.mxu0 0.0
      %2707 = vmatprep.subr.mxu0 0.0
      %2708 = vmatpush2.msra.mxu0 0.0
      %2709 = vmatprep.subr.mxu0 0.0
      %2710 = vmatpush2.msra.mxu0 0.0
      %2711 = vmatprep.subr.mxu0 0.0
      %2712 = vmatpush2.msra.mxu0 0.0
      %2713 = vmatprep.subr.mxu0 0.0
      %2714 = vmatpush2.msra.mxu0 0.0
      %2715 = vmatprep.subr.mxu0 0.0
      %2716 = vmatpush2.msra.mxu0 0.0
      %2717 = vmatprep.subr.mxu0 0.0
      %2718 = vmatpush2.msra.mxu0 0.0
      %2719 = vmatprep.subr.mxu0 0.0
      %2720 = vmatpush2.msra.mxu0 0.0
      %2721 = vmatprep.subr.mxu0 0.0
      %2722 = vmatpush2.msra.mxu0 0.0
      %2723 = vmatprep.subr.mxu0 0.0
      %2724 = vmatpush2.msra.mxu0 0.0
      %2725 = vmatprep.mubr.f32.mxu0 0.0
      %2726 = vmatmul.mubr.f32.gmra.mxu0 %v2579
      %v2727 = vpop.f32.mrf.mxu0
      %v2728 = vadd.f32 0.0, %v2727
      %v2729 = vpop.f32.mrf.mxu0
      %v2730 = vadd.f32 0.0, %v2729
      %2731 = vmatprep.mubr.f32.mxu0 0.0
      %2732 = vmatmul.mubr.f32.gmra.mxu0 %v2582
      %v2733 = vpop.f32.mrf.mxu0
      %v2734 = vadd.f32 0.0, %v2733
      %v2735 = vpop.f32.mrf.mxu0
      %v2736 = vadd.f32 0.0, %v2735
      %2737 = vdwg.mxu0
      %v2738 = vadd.f32 %v2442, %v2651
      %v2739 = vadd.f32 %v2444, %v2653
      %v2740 = vadd.f32 %v2519, %v2728
      %v2741 = vadd.f32 %v2521, %v2730
      %v2742 = vadd.f32 %v2448, %v2657
      %v2743 = vadd.f32 %v2450, %v2659
      %v2744 = vadd.f32 %v2525, %v2734
      %v2745 = vadd.f32 %v2527, %v2736
      %s2746 = scalar_lea.vmem %s5, 1152
      %v2747 = vld [vmem:[%s2746] sm:$0xff]
      %v2748 = vld [vmem:[%s2746 + $0x8] sm:$0xff]
      %v2749 = vld [vmem:[%s2746 + $0x10] sm:$0xff]
      %v2750 = vld [vmem:[%s2746 + $0x18] sm:$0xff]
      %v2751 = vld [vmem:[%s2746 + $0x20] sm:$0xff]
      %v2752 = vld [vmem:[%s2746 + $0x28] sm:$0xff]
      %v2753 = vld [vmem:[%s2746 + $0x30] sm:$0xff]
      %v2754 = vld [vmem:[%s2746 + $0x38] sm:$0xff]
      %v2755 = vld [vmem:[%s2746 + $0x40] sm:$0xff]
      %v2756 = vld [vmem:[%s2746 + $0x48] sm:$0xff]
      %v2757 = vld [vmem:[%s2746 + $0x50] sm:$0xff]
      %v2758 = vld [vmem:[%s2746 + $0x58] sm:$0xff]
      %v2759 = vld [vmem:[%s2746 + $0x60] sm:$0xff]
      %v2760 = vld [vmem:[%s2746 + $0x68] sm:$0xff]
      %v2761 = vld [vmem:[%s2746 + $0x70] sm:$0xff]
      %v2762 = vld [vmem:[%s2746 + $0x78] sm:$0xff]
      %v2763 = vld [vmem:[%s2746 + $0x80] sm:$0xff]
      %v2764 = vld [vmem:[%s2746 + $0x88] sm:$0xff]
      %v2765 = vld [vmem:[%s2746 + $0x90] sm:$0xff]
      %v2766 = vld [vmem:[%s2746 + $0x98] sm:$0xff]
      %v2767 = vld [vmem:[%s2746 + $0xa0] sm:$0xff]
      %v2768 = vld [vmem:[%s2746 + $0xa8] sm:$0xff]
      %v2769 = vld [vmem:[%s2746 + $0xb0] sm:$0xff]
      %v2770 = vld [vmem:[%s2746 + $0xb8] sm:$0xff]
      %v2771 = vld [vmem:[%s2746 + $0xc0] sm:$0xff]
      %v2772 = vld [vmem:[%s2746 + $0xc8] sm:$0xff]
      %v2773 = vld [vmem:[%s2746 + $0xd0] sm:$0xff]
      %v2774 = vld [vmem:[%s2746 + $0xd8] sm:$0xff]
      %v2775 = vld [vmem:[%s2746 + $0xe0] sm:$0xff]
      %v2776 = vld [vmem:[%s2746 + $0xe8] sm:$0xff]
      %v2777 = vld [vmem:[%s2746 + $0xf0] sm:$0xff]
      %v2778 = vld [vmem:[%s2746 + $0xf8] sm:$0xff]
      %v2779 = vld [vmem:[%s2746 + $0x100] sm:$0xff]
      %v2780 = vld [vmem:[%s2746 + $0x108] sm:$0xff]
      %v2781 = vld [vmem:[%s2746 + $0x110] sm:$0xff]
      %v2782 = vld [vmem:[%s2746 + $0x118] sm:$0xff]
      %v2783 = vld [vmem:[%s2746 + $0x120] sm:$0xff]
      %v2784 = vld [vmem:[%s2746 + $0x128] sm:$0xff]
      %v2785 = vld [vmem:[%s2746 + $0x130] sm:$0xff]
      %v2786 = vld [vmem:[%s2746 + $0x138] sm:$0xff]
      %v2787 = vld [vmem:[%s2746 + $0x140] sm:$0xff]
      %v2788 = vld [vmem:[%s2746 + $0x148] sm:$0xff]
      %v2789 = vld [vmem:[%s2746 + $0x150] sm:$0xff]
      %v2790 = vld [vmem:[%s2746 + $0x158] sm:$0xff]
      %v2791 = vld [vmem:[%s2746 + $0x160] sm:$0xff]
      %v2792 = vld [vmem:[%s2746 + $0x168] sm:$0xff]
      %v2793 = vld [vmem:[%s2746 + $0x170] sm:$0xff]
      %v2794 = vld [vmem:[%s2746 + $0x178] sm:$0xff]
      %v2796 = vsel %vm287, %v1196, 0
      %v2799 = vsel %vm287, %v1197, 0
      %2801 = vmatprep.subr.mxu0 0.0
      %2802 = vmatpush1.msra.mxu0 0.0
      %2803 = vmatprep.subr.mxu0 0.0
      %2804 = vmatpush1.msra.mxu0 0.0
      %2805 = vmatprep.subr.mxu0 0.0
      %2806 = vmatpush1.msra.mxu0 0.0
      %2807 = vmatprep.subr.mxu0 0.0
      %2808 = vmatpush1.msra.mxu0 0.0
      %2809 = vmatprep.subr.mxu0 %v2792
      %2810 = vmatpush1.msra.mxu0 %v2791
      %2811 = vmatprep.subr.mxu0 %v2788
      %2812 = vmatpush1.msra.mxu0 %v2787
      %2813 = vmatprep.subr.mxu0 %v2784
      %2814 = vmatpush1.msra.mxu0 %v2783
      %2815 = vmatprep.subr.mxu0 %v2780
      %2816 = vmatpush1.msra.mxu0 %v2779
      %2817 = vmatprep.subr.mxu0 %v2776
      %2818 = vmatpush1.msra.mxu0 %v2775
      %2819 = vmatprep.subr.mxu0 %v2772
      %2820 = vmatpush1.msra.mxu0 %v2771
      %2821 = vmatprep.subr.mxu0 %v2768
      %2822 = vmatpush1.msra.mxu0 %v2767
      %2823 = vmatprep.subr.mxu0 %v2764
      %2824 = vmatpush1.msra.mxu0 %v2763
      %2825 = vmatprep.subr.mxu0 %v2760
      %2826 = vmatpush1.msra.mxu0 %v2759
      %2827 = vmatprep.subr.mxu0 %v2756
      %2828 = vmatpush1.msra.mxu0 %v2755
      %2829 = vmatprep.subr.mxu0 %v2752
      %2830 = vmatpush1.msra.mxu0 %v2751
      %2831 = vmatprep.subr.mxu0 %v2748
      %2832 = vmatpush1.msra.mxu0 %v2747
      %2833 = vmatprep.subr.mxu0 0.0
      %2834 = vmatpush2.msra.mxu0 0.0
      %2835 = vmatprep.subr.mxu0 0.0
      %2836 = vmatpush2.msra.mxu0 0.0
      %2837 = vmatprep.subr.mxu0 0.0
      %2838 = vmatpush2.msra.mxu0 0.0
      %2839 = vmatprep.subr.mxu0 0.0
      %2840 = vmatpush2.msra.mxu0 0.0
      %2841 = vmatprep.subr.mxu0 0.0
      %2842 = vmatpush2.msra.mxu0 0.0
      %2843 = vmatprep.subr.mxu0 0.0
      %2844 = vmatpush2.msra.mxu0 0.0
      %2845 = vmatprep.subr.mxu0 0.0
      %2846 = vmatpush2.msra.mxu0 0.0
      %2847 = vmatprep.subr.mxu0 0.0
      %2848 = vmatpush2.msra.mxu0 0.0
      %2849 = vmatprep.subr.mxu0 0.0
      %2850 = vmatpush2.msra.mxu0 0.0
      %2851 = vmatprep.subr.mxu0 0.0
      %2852 = vmatpush2.msra.mxu0 0.0
      %2853 = vmatprep.subr.mxu0 0.0
      %2854 = vmatpush2.msra.mxu0 0.0
      %2855 = vmatprep.subr.mxu0 0.0
      %2856 = vmatpush2.msra.mxu0 0.0
      %2857 = vmatprep.subr.mxu0 0.0
      %2858 = vmatpush2.msra.mxu0 0.0
      %2859 = vmatprep.subr.mxu0 0.0
      %2860 = vmatpush2.msra.mxu0 0.0
      %2861 = vmatprep.subr.mxu0 0.0
      %2862 = vmatpush2.msra.mxu0 0.0
      %2863 = vmatprep.subr.mxu0 0.0
      %2864 = vmatpush2.msra.mxu0 0.0
      %2865 = vmatprep.mubr.f32.mxu0 0.0
      %2866 = vmatmul.mubr.f32.gmra.mxu0 %v2796
      %v2867 = vpop.f32.mrf.mxu0
      %v2868 = vadd.f32 0.0, %v2867
      %v2869 = vpop.f32.mrf.mxu0
      %v2870 = vadd.f32 0.0, %v2869
      %2871 = vmatprep.mubr.f32.mxu0 0.0
      %2872 = vmatmul.mubr.f32.gmra.mxu0 %v2799
      %v2873 = vpop.f32.mrf.mxu0
      %v2874 = vadd.f32 0.0, %v2873
      %v2875 = vpop.f32.mrf.mxu0
      %v2876 = vadd.f32 0.0, %v2875
      %2877 = vdwg.mxu0
      %2878 = vmatprep.subr.mxu0 0.0
      %2879 = vmatpush1.msra.mxu0 0.0
      %2880 = vmatprep.subr.mxu0 0.0
      %2881 = vmatpush1.msra.mxu0 0.0
      %2882 = vmatprep.subr.mxu0 0.0
      %2883 = vmatpush1.msra.mxu0 0.0
      %2884 = vmatprep.subr.mxu0 0.0
      %2885 = vmatpush1.msra.mxu0 0.0
      %2886 = vmatprep.subr.mxu0 %v2794
      %2887 = vmatpush1.msra.mxu0 %v2793
      %2888 = vmatprep.subr.mxu0 %v2790
      %2889 = vmatpush1.msra.mxu0 %v2789
      %2890 = vmatprep.subr.mxu0 %v2786
      %2891 = vmatpush1.msra.mxu0 %v2785
      %2892 = vmatprep.subr.mxu0 %v2782
      %2893 = vmatpush1.msra.mxu0 %v2781
      %2894 = vmatprep.subr.mxu0 %v2778
      %2895 = vmatpush1.msra.mxu0 %v2777
      %2896 = vmatprep.subr.mxu0 %v2774
      %2897 = vmatpush1.msra.mxu0 %v2773
      %2898 = vmatprep.subr.mxu0 %v2770
      %2899 = vmatpush1.msra.mxu0 %v2769
      %2900 = vmatprep.subr.mxu0 %v2766
      %2901 = vmatpush1.msra.mxu0 %v2765
      %2902 = vmatprep.subr.mxu0 %v2762
      %2903 = vmatpush1.msra.mxu0 %v2761
      %2904 = vmatprep.subr.mxu0 %v2758
      %2905 = vmatpush1.msra.mxu0 %v2757
      %2906 = vmatprep.subr.mxu0 %v2754
      %2907 = vmatpush1.msra.mxu0 %v2753
      %2908 = vmatprep.subr.mxu0 %v2750
      %2909 = vmatpush1.msra.mxu0 %v2749
      %2910 = vmatprep.subr.mxu0 0.0
      %2911 = vmatpush2.msra.mxu0 0.0
      %2912 = vmatprep.subr.mxu0 0.0
      %2913 = vmatpush2.msra.mxu0 0.0
      %2914 = vmatprep.subr.mxu0 0.0
      %2915 = vmatpush2.msra.mxu0 0.0
      %2916 = vmatprep.subr.mxu0 0.0
      %2917 = vmatpush2.msra.mxu0 0.0
      %2918 = vmatprep.subr.mxu0 0.0
      %2919 = vmatpush2.msra.mxu0 0.0
      %2920 = vmatprep.subr.mxu0 0.0
      %2921 = vmatpush2.msra.mxu0 0.0
      %2922 = vmatprep.subr.mxu0 0.0
      %2923 = vmatpush2.msra.mxu0 0.0
      %2924 = vmatprep.subr.mxu0 0.0
      %2925 = vmatpush2.msra.mxu0 0.0
      %2926 = vmatprep.subr.mxu0 0.0
      %2927 = vmatpush2.msra.mxu0 0.0
      %2928 = vmatprep.subr.mxu0 0.0
      %2929 = vmatpush2.msra.mxu0 0.0
      %2930 = vmatprep.subr.mxu0 0.0
      %2931 = vmatpush2.msra.mxu0 0.0
      %2932 = vmatprep.subr.mxu0 0.0
      %2933 = vmatpush2.msra.mxu0 0.0
      %2934 = vmatprep.subr.mxu0 0.0
      %2935 = vmatpush2.msra.mxu0 0.0
      %2936 = vmatprep.subr.mxu0 0.0
      %2937 = vmatpush2.msra.mxu0 0.0
      %2938 = vmatprep.subr.mxu0 0.0
      %2939 = vmatpush2.msra.mxu0 0.0
      %2940 = vmatprep.subr.mxu0 0.0
      %2941 = vmatpush2.msra.mxu0 0.0
      %2942 = vmatprep.mubr.f32.mxu0 0.0
      %2943 = vmatmul.mubr.f32.gmra.mxu0 %v2796
      %v2944 = vpop.f32.mrf.mxu0
      %v2945 = vadd.f32 0.0, %v2944
      %v2946 = vpop.f32.mrf.mxu0
      %v2947 = vadd.f32 0.0, %v2946
      %2948 = vmatprep.mubr.f32.mxu0 0.0
      %2949 = vmatmul.mubr.f32.gmra.mxu0 %v2799
      %v2950 = vpop.f32.mrf.mxu0
      %v2951 = vadd.f32 0.0, %v2950
      %v2952 = vpop.f32.mrf.mxu0
      %v2953 = vadd.f32 0.0, %v2952
      %2954 = vdwg.mxu0
      %v2955 = vadd.f32 %v2738, %v2868
      %v2956 = vadd.f32 %v2739, %v2870
      %v2957 = vadd.f32 %v2740, %v2945
      %v2958 = vadd.f32 %v2741, %v2947
      %v2959 = vadd.f32 %v2742, %v2874
      %v2960 = vadd.f32 %v2743, %v2876
      %v2961 = vadd.f32 %v2744, %v2951
      %v2962 = vadd.f32 %v2745, %v2953
      %v2963 = vld [vmem:[%s6] sm:$0xf]
      %v2965 = vlaneseq
      %v2966 = vshrl.u32 %v2965, 7
      %v2967 = vsub.s32 0, %v2966
      %v2968 = vrot.slane %v2963, %v2967
      %v2969 = vlaneseq
      %v2970 = vshrl.u32 %v2969, 7
      %v2971 = vsub.s32 1, %v2970
      %v2972 = vrot.slane %v2963, %v2971
      %v2973 = vlaneseq
      %v2974 = vshrl.u32 %v2973, 7
      %v2975 = vsub.s32 2, %v2974
      %v2976 = vrot.slane %v2963, %v2975
      %v2977 = vlaneseq
      %v2978 = vshrl.u32 %v2977, 7
      %v2979 = vsub.s32 3, %v2978
      %v2980 = vrot.slane %v2963, %v2979
      %v2985 = vadd.f32 %v2955, %v2968
      %v2986 = vadd.f32 %v2956, %v2972
      %v2987 = vadd.f32 %v2957, %v2976
      %v2988 = vadd.f32 %v2958, %v2980
      %v2989 = vadd.f32 %v2959, %v2968
      %v2990 = vadd.f32 %v2960, %v2972
      %v2991 = vadd.f32 %v2961, %v2976
      %v2992 = vadd.f32 %v2962, %v2980
      %v2993 = vadd.f32 %v2985, %v292
      %v2994 = vadd.f32 %v2986, %v293
      %v2995 = vadd.f32 %v2987, %v294
      %v2996 = vadd.f32 %v2988, %v295
      %v2997 = vadd.f32 %v2989, %v296
      %v2998 = vadd.f32 %v2990, %v297
      %v2999 = vadd.f32 %v2991, %v298
      %v3000 = vadd.f32 %v2992, %v299
      %v3001 = vmax.f32 %v2993, 0.0
      %v3002 = vmax.f32 %v2994, 0.0
      %v3003 = vmax.f32 %v2995, 0.0
      %v3004 = vmax.f32 %v2996, 0.0
      %v3005 = vmax.f32 %v2997, 0.0
      %v3006 = vmax.f32 %v2998, 0.0
      %v3007 = vmax.f32 %v2999, 0.0
      %v3008 = vmax.f32 %v3000, 0.0
      %3009 = vst [vmem:[%s285] sm:$0xff] %v3001
      %3010 = vst [vmem:[%s285 + $0x8] sm:$0xff] %v3002
      %3011 = vst [vmem:[%s285 + $0x10] sm:$0xff] %v3003
      %3012 = vst [vmem:[%s285 + $0x18] sm:$0xff] %v3004
      %3013 = vst [vmem:[%s285 + $0x20] sm:$0xff] %v3005
      %3014 = vst [vmem:[%s285 + $0x28] sm:$0xff] %v3006
      %3015 = vst [vmem:[%s285 + $0x30] sm:$0xff] %v3007
      %3016 = vst [vmem:[%s285 + $0x38] sm:$0xff] %v3008
      %s3017 = smul.u32 2, %s18
      %p3018 = scmp.lt.s32.totalorder %s3017, 3
      %s3019 = scalar_select %p3018, %s3017, 3
      %s3020 = smul.addr %s3019, 4
      %s3021 = smul.addr %s3020, 8
      %s3022 = scalar_lea.vmem %s7, %s3021
      // Predicated region
      $region49: #{bottle2neck_pallas.1} parent=47 // pred_check
        %p3023 = pneg %p188
      $region50: #{bottle2neck_pallas.1} parent=47 // pred_check_branch
        %3025 = sbr.rel (%p3023) target = $region52
      $region51: #{bottle2neck_pallas.1} parent=47 // pred_region
        %s3026 = smul.u32 2, %s18
      $region52: #{bottle2neck_pallas.1} parent=47 // pred_fallthru
        _
    $region48: #{bottle2neck_pallas.1} parent=5 // pred_fallthru
      _
    %p3027 = scmp.le.s32.totalorder 2, %s13
    // Predicated region
    $region53: #{bottle2neck_pallas.1} parent=5 // pred_check
      %p3028 = pneg %p3027
    $region54: #{bottle2neck_pallas.1} parent=5 // pred_check_branch
      %3030 = sbr.rel (%p3028) target = $region56
    $region55: #{bottle2neck_pallas.1} parent=5 // pred_region
      %s3031 = ssub.s32 %s13, 2
      // Predicated region
      $region57: #{bottle2neck_pallas.1} parent=55 // pred_check
        %p3032 = pneg %p194
      $region58: #{bottle2neck_pallas.1} parent=55 // pred_check_branch
        %3034 = sbr.rel (%p3032) target = $region60
      $region59: #{bottle2neck_pallas.1} parent=55 // pred_region
        %s3035 = smul.u32 2, %s19
        %p3036 = scmp.lt.s32.totalorder %s3035, 3
        %s3037 = scalar_select %p3036, %s3035, 3
        %s3038 = smul.addr %s3037, 4
        %s3039 = smul.addr %s3038, 8
        %s3040 = scalar_lea.vmem %s7, %s3039
      $region60: #{bottle2neck_pallas.1} parent=55 // pred_fallthru
        _
    $region56: #{bottle2neck_pallas.1} parent=5 // pred_fallthru
      _
  $region6: #{bottle2neck_pallas.1} parent=0 // loop_footer
    %s17 = sadd.s32 1, %s13
  $region7: #{bottle2neck_pallas.1} parent=0 // loop_footer_branch
    %12 = sbr.rel target = $region3
  $region8: #{bottle2neck_pallas.1} parent=0 // loop_exit
    _

</llo_original>
